<compile_context>
chip_gen: v7x
topology: tpu7x:2x2x1
jax: 0.10.0
libtpu: 0.0.40
codegen_flags: <defaults>
</compile_context>

<pallas_src>
import math
import functools

import jax
import jax.numpy as jnp
from jax import lax
from jax.experimental import pallas as pl
from jax.experimental.pallas import tpu as pltpu


# --------------------------------------------------------------------------
# Pallas kernel
# --------------------------------------------------------------------------
def _layer_norm(x, gamma, beta, eps=1e-5):
    mu = jnp.mean(x, axis=-1, keepdims=True)
    var = jnp.mean((x - mu) ** 2, axis=-1, keepdims=True)
    return (x - mu) * jax.lax.rsqrt(var + eps) * gamma + beta


def topic_encoder_kernel(
    ids_ref,      # VMEM (M, 1)    int32 flat gather indices (pad/BOS -> zero row)
    emb_ref,      # VMEM (Vp, E)   f32 embedding table * sqrt(E); row V.. = 0
    pe_ref,       # VMEM (M, E)    f32 positional encoding, tiled per document
    bias_ref,     # VMEM (M, M)    f32 block-diagonal + key-padding additive bias
    hmask_ref,    # VMEM (H, 1, E) f32 per-head lane masks
    w_in_ref,     # VMEM (E, 3E)   bf16 fused QKV weight^T (q cols pre-scaled)
    b_in_ref,     # VMEM (1, 3E)   f32 fused QKV bias (q pre-scaled)
    w_out_ref,    # VMEM (E, E)    bf16 out_proj.weight^T
    b_out_ref,    # VMEM (1, E)    f32
    g1_ref,       # VMEM (1, E)    f32 norm1.weight
    beta1_ref,    # VMEM (1, E)    f32 norm1.bias
    w1_ref,       # VMEM (E, F)    bf16 linear1.weight^T
    b1_ref,       # VMEM (1, F)    f32
    w2_ref,       # VMEM (F, E)    bf16 linear2.weight^T
    b2_ref,       # VMEM (1, E)    f32
    g2_ref,       # VMEM (1, E)    f32 norm2.weight
    beta2_ref,    # VMEM (1, E)    f32 norm2.bias
    o_ref,        # VMEM (M, E)    f32 output
    *,
    num_heads: int,
):
    M, E = o_ref.shape
    Vp = emb_ref.shape[0]
    H = num_heads

    # ---- vectorized embedding gather: one-hot (M,Vp) @ table (Vp,E) on MXU ----
    vocab_iota = lax.broadcasted_iota(jnp.int32, (M, Vp), 1)
    onehot = (ids_ref[...] == vocab_iota).astype(jnp.float32)
    x_emb = jnp.dot(onehot, emb_ref[...],
                    preferred_element_type=jnp.float32)            # (M, E) exact rows

    # ---- + positional encoding (sqrt(E) folded into table, dropout = 0) ----
    x2d = x_emb + pe_ref[...]                                      # (M, E) f32 residual
    xb = x2d.astype(jnp.bfloat16)

    # ---- fused QKV projection: single MXU push with N = 3E ----
    qkv = jnp.dot(xb, w_in_ref[...],
                  preferred_element_type=jnp.float32) + b_in_ref[...]   # (M, 3E) f32
    q2d = qkv[:, 0:E]
    k2d = qkv[:, E:2 * E]
    v2d = qkv[:, 2 * E:3 * E]
    kb = k2d.astype(jnp.bfloat16)                                  # shared across heads

    bias = bias_ref[...]                                           # f32, keeps -1e30 finite

    # ---- multi-head self-attention, flattened batch (one (M,M) matmul/head) ----
    # Q masked to head-h lanes restricts the score contraction to head h;
    # V masked to head-h lanes makes PV land only in head-h output lanes, so
    # summing the per-head PV terms yields the concatenated head output directly.
    concat = None
    for h in range(H):                                             # static loop, H = 4
        mh = hmask_ref[h]                                          # (1, E) f32
        qh = (q2d * mh).astype(jnp.bfloat16)                       # cast right before MXU
        vh = (v2d * mh).astype(jnp.bfloat16)
        s_h = lax.dot_general(qh, kb, (((1,), (1,)), ((), ())),
                              preferred_element_type=jnp.float32) + bias   # (M, M) f32
        m_h = jnp.max(s_h, axis=-1, keepdims=True)
        p_h = jnp.exp(s_h - m_h)
        p_h = p_h * pl.reciprocal(jnp.sum(p_h, axis=-1, keepdims=True), approx=False)
        pv_h = jnp.dot(p_h.astype(jnp.bfloat16), vh,
                       preferred_element_type=jnp.float32)         # (M, E), head-h lanes
        concat = pv_h if concat is None else concat + pv_h

    # ---- single output projection ----
    attn2d = jnp.dot(concat.astype(jnp.bfloat16), w_out_ref[...],
                     preferred_element_type=jnp.float32) + b_out_ref[...]

    # ---- residual + LayerNorm 1 (post-norm, eps=1e-5) ----
    x1 = _layer_norm(x2d + attn2d, g1_ref[...], beta1_ref[...])

    # ---- feed-forward: linear1 -> ReLU -> linear2 (dropout = 0) ----
    h1 = jnp.dot(x1.astype(jnp.bfloat16), w1_ref[...],
                 preferred_element_type=jnp.float32) + b1_ref[...]
    h1 = jnp.maximum(h1, 0.0)
    h2 = jnp.dot(h1.astype(jnp.bfloat16), w2_ref[...],
                 preferred_element_type=jnp.float32) + b2_ref[...]

    # ---- residual + LayerNorm 2 ----
    x2 = _layer_norm(x1 + h2, g2_ref[...], beta2_ref[...])
    o_ref[...] = x2.astype(o_ref.dtype)


# --------------------------------------------------------------------------
# Host-side preparation (pad/scale table, pre-transpose, fold scales, bf16)
# --------------------------------------------------------------------------
def prepare_weights(params, num_heads):
    E = params['w_out'].shape[0]
    V = params['embedding'].shape[0]
    H = num_heads
    D = E // H
    attn_scale = 1.0 / math.sqrt(D)
    Vp = ((V + 1 + 127) // 128) * 128          # lane-dense one-hot; row V.. are zeros

    # embedding table: * sqrt(E) folded in, zero row appended, padded to Vp
    emb = jnp.zeros((Vp, E), jnp.float32).at[:V].set(
        params['embedding'] * math.sqrt(E))

    col_scale = jnp.concatenate([jnp.full((E,), attn_scale, jnp.float32),
                                 jnp.ones((2 * E,), jnp.float32)])
    w_in_t = (params['w_in'].T * col_scale[None, :]).astype(jnp.bfloat16)   # (E, 3E)
    b_in = (params['b_in'] * col_scale[None, :]).astype(jnp.float32)        # (1, 3E)

    lane = jnp.arange(E)
    hmask = (lane[None, :] // D ==
             jnp.arange(H)[:, None]).astype(jnp.float32)[:, None, :]        # (H, 1, E)

    return dict(
        emb=emb, zero_row=V,
        w_in_t=w_in_t, b_in=b_in, hmask=hmask,
        w_out_t=params['w_out'].T.astype(jnp.bfloat16), b_out=params['b_out'],
        gamma1=params['gamma1'], beta1=params['beta1'],
        w1_t=params['w1'].T.astype(jnp.bfloat16), b1=params['b1'],
        w2_t=params['w2'].T.astype(jnp.bfloat16), b2=params['b2'],
        gamma2=params['gamma2'], beta2=params['beta2'],
    )


def positional_encoding(seq_len, d_model):
    position = jnp.arange(seq_len, dtype=jnp.float32)[:, None]
    div_term = jnp.exp(jnp.arange(0, d_model, 2, dtype=jnp.float32)
                       * (-math.log(10000.0) / d_model))
    pe = jnp.zeros((seq_len, d_model), jnp.float32)
    pe = pe.at[:, 0::2].set(jnp.sin(position * div_term))
    pe = pe.at[:, 1::2].set(jnp.cos(position * div_term))
    return pe


# --------------------------------------------------------------------------
# pallas_call wrapper (one call per batch of documents; M = B * S_pad rows)
# --------------------------------------------------------------------------
def transformer_encoder_layer(doc_sorted, prepared, num_heads, seq_len, s_pad):
    Bp, S = doc_sorted.shape
    Vp, E = prepared['emb'].shape
    F = prepared['w1_t'].shape[-1]
    H = num_heads
    M = Bp * s_pad
    S1 = seq_len + 1

    rows = jnp.arange(M, dtype=jnp.int32)
    b_idx = rows // s_pad
    s_idx = rows % s_pad

    # flat gather indices: position 0 (prepended zero token) and pad rows -> zero row
    real = (s_idx >= 1) & (s_idx < S1)
    tok = doc_sorted[b_idx, jnp.clip(s_idx - 1, 0, seq_len - 1)]
    ids_flat = jnp.where(real, tok, prepared['zero_row']).astype(jnp.int32)[:, None]

    pe_tiled = jnp.tile(positional_encoding(s_pad, E), (Bp, 1))             # (M, E)

    # block-diagonal (per-document) + key-padding additive bias (f32, finite)
    same_doc = b_idx[:, None] == b_idx[None, :]
    key_valid = s_idx[None, :] < S1
    attn_bias = jnp.where(same_doc & key_valid, 0.0, -1e30).astype(jnp.float32)

    kernel = functools.partial(topic_encoder_kernel, num_heads=num_heads)

    args = (ids_flat, prepared['emb'], pe_tiled, attn_bias, prepared['hmask'],
            prepared['w_in_t'], prepared['b_in'],
            prepared['w_out_t'], prepared['b_out'],
            prepared['gamma1'], prepared['beta1'],
            prepared['w1_t'], prepared['b1'],
            prepared['w2_t'], prepared['b2'],
            prepared['gamma2'], prepared['beta2'])

    flops = int(2 * M * Vp * E            # one-hot embedding gather
                + 2 * M * E * 3 * E       # fused QKV
                + H * 4 * M * M * E       # scores + PV
                + 2 * M * E * E           # out_proj
                + 4 * M * E * F)          # FFN
    bytes_accessed = int(sum(a.size * a.dtype.itemsize for a in args) + M * E * 4)
    ce = pl.CostEstimate(flops=flops,
                         transcendentals=int(H * M * M + H * M + 2 * M),
                         bytes_accessed=bytes_accessed)

    vmem = pl.BlockSpec(memory_space=pltpu.MemorySpace.VMEM)
    out2d = pl.pallas_call(
        kernel,
        out_shape=jax.ShapeDtypeStruct((M, E), jnp.float32),
        in_specs=[vmem] * len(args),
        out_specs=vmem,
        cost_estimate=ce,
    )(*args)
    return out2d.reshape(Bp, s_pad, E)


# --------------------------------------------------------------------------
# Full forward (plain JAX glue: argsort / permutation / final slicing)
# --------------------------------------------------------------------------
def topic_transformer_forward(params, doc_tokens, doc_lengths, num_heads):
    """doc_tokens: (B, S) int32 token ids; doc_lengths: (B,) int32."""
    B, S = doc_tokens.shape
    S1 = S + 1
    S_pad = ((S1 + 7) // 8) * 8            # pad sequence to a multiple of 8 sublanes

    labels = doc_tokens                                    # labels = doc_tensor (pre-perm)
    perm_idx = jnp.argsort(-doc_lengths)                   # sort(0, descending=True)
    doc_sorted = doc_tokens[perm_idx]

    prepared = prepare_weights(params, num_heads)
    out_bse = transformer_encoder_layer(doc_sorted, prepared, num_heads, S, S_pad)
    out_bse = out_bse[:, :S1, :]                           # drop padded rows
    out_sbe = jnp.transpose(out_bse, (1, 0, 2))            # PyTorch seq-first (S1, B, E)
    # reference returns output[:, :-1, :] (drops the LAST BATCH element, as written)
    return out_sbe[:, :-1, :], labels


def init_params(key, num_words, embedding_dim, dim_ff):
    E, F = embedding_dim, dim_ff
    ks = jax.random.split(key, 5)

    def unif(k, shape, bound):
        return jax.random.uniform(k, shape, jnp.float32, -bound, bound)

    return dict(
        embedding=0.02 * jax.random.normal(ks[0], (num_words, E), jnp.float32),
        w_in=unif(ks[1], (3 * E, E), 1.0 / math.sqrt(E)),
        b_in=jnp.zeros((1, 3 * E), jnp.float32),
        w_out=unif(ks[2], (E, E), 1.0 / math.sqrt(E)),
        b_out=jnp.zeros((1, E), jnp.float32),
        gamma1=jnp.ones((1, E), jnp.float32),
        beta1=jnp.zeros((1, E), jnp.float32),
        w1=unif(ks[3], (F, E), 1.0 / math.sqrt(E)),
        b1=jnp.zeros((1, F), jnp.float32),
        w2=unif(ks[4], (E, F), 1.0 / math.sqrt(F)),
        b2=jnp.zeros((1, E), jnp.float32),
        gamma2=jnp.ones((1, E), jnp.float32),
        beta2=jnp.zeros((1, E), jnp.float32),
    )


if __name__ == "__main__":
    # Module hyperparameters (small, consistent with the forward):
    hidden_dim = 4          # nn.TransformerEncoderLayer(d_model, nhead) -> nhead = hidden_dim
    embedding_dim = 32
    num_words = 100
    batch_size = 2
    seq_len = 8
    dim_feedforward = 2048  # nn.TransformerEncoderLayer default

    key = jax.random.PRNGKey(0)
    k_params, k_tok = jax.random.split(key)

    params = init_params(k_params, num_words, embedding_dim, dim_feedforward)
    doc_tokens = jax.random.randint(k_tok, (batch_size, seq_len), 0, num_words,
                                    dtype=jnp.int32)
    doc_lengths = jnp.array([seq_len, seq_len - 2], dtype=jnp.int32)

    fwd = jax.jit(topic_transformer_forward, static_argnums=(3,))
    output, labels = fwd(params, doc_tokens, doc_lengths, hidden_dim)
    jax.block_until_ready((output, labels))

    assert output.shape == (seq_len + 1, batch_size - 1, embedding_dim), output.shape
    assert labels.shape == (batch_size, seq_len), labels.shape
    print("KERNEL_OK")
</pallas_src>

<mosaic_0001>
module attributes {stable_mosaic.version = 11 : i64} {
  func.func @topic_encoder_kernel(%arg0: memref<32x1xi32, #tpu.memory_space<vmem>>, %arg1: memref<128x32xf32, #tpu.memory_space<vmem>>, %arg2: memref<32x32xf32, #tpu.memory_space<vmem>>, %arg3: memref<32x32xf32, #tpu.memory_space<vmem>>, %arg4: memref<4x1x32xf32, #tpu.memory_space<vmem>>, %arg5: memref<32x96xbf16, #tpu.memory_space<vmem>>, %arg6: memref<1x96xf32, #tpu.memory_space<vmem>>, %arg7: memref<32x32xbf16, #tpu.memory_space<vmem>>, %arg8: memref<1x32xf32, #tpu.memory_space<vmem>>, %arg9: memref<1x32xf32, #tpu.memory_space<vmem>>, %arg10: memref<1x32xf32, #tpu.memory_space<vmem>>, %arg11: memref<32x2048xbf16, #tpu.memory_space<vmem>>, %arg12: memref<1x2048xf32, #tpu.memory_space<vmem>>, %arg13: memref<2048x32xbf16, #tpu.memory_space<vmem>>, %arg14: memref<1x32xf32, #tpu.memory_space<vmem>>, %arg15: memref<1x32xf32, #tpu.memory_space<vmem>>, %arg16: memref<1x32xf32, #tpu.memory_space<vmem>>, %arg17: memref<32x32xf32, #tpu.memory_space<vmem>>) attributes {dimension_semantics = [], scalar_prefetch = 0 : i64, scratch_operands = 0 : i64, tpu.core_type = #tpu.core_type<tc>} {
    %0 = tpu.iota {dimensions = array<i32: 1>} : vector<32x128xi32>
    %c0 = arith.constant 0 : index
    %c0_0 = arith.constant 0 : index
    %1 = vector.load %arg0[%c0, %c0_0] : memref<32x1xi32, #tpu.memory_space<vmem>>, vector<32x1xi32>
    %2 = vector.broadcast %1 : vector<32x1xi32> to vector<32x128xi32>
    %3 = arith.cmpi eq, %2, %0 : vector<32x128xi32>
    %4 = arith.extui %3 : vector<32x128xi1> to vector<32x128xi32>
    %5 = arith.sitofp %4 : vector<32x128xi32> to vector<32x128xf32>
    %c0_1 = arith.constant 0 : index
    %c0_2 = arith.constant 0 : index
    %6 = vector.load %arg1[%c0_1, %c0_2] : memref<128x32xf32, #tpu.memory_space<vmem>>, vector<128x32xf32>
    %cst = arith.constant dense<0.000000e+00> : vector<32x32xf32>
    %7 = tpu.matmul %5, %6, %cst {dimension_numbers = #tpu.dot_dimension_numbers<[1], [0], [0], [1], [0, 0, 1, 1], [], []>} : vector<32x128xf32>, vector<128x32xf32>, vector<32x32xf32> -> vector<32x32xf32>
    %c0_3 = arith.constant 0 : index
    %c0_4 = arith.constant 0 : index
    %8 = vector.load %arg2[%c0_3, %c0_4] : memref<32x32xf32, #tpu.memory_space<vmem>>, vector<32x32xf32>
    %9 = arith.addf %7, %8 : vector<32x32xf32>
    %10 = arith.truncf %9 : vector<32x32xf32> to vector<32x32xbf16>
    %c0_5 = arith.constant 0 : index
    %c0_6 = arith.constant 0 : index
    %11 = vector.load %arg5[%c0_5, %c0_6] : memref<32x96xbf16, #tpu.memory_space<vmem>>, vector<32x96xbf16>
    %cst_7 = arith.constant dense<0.000000e+00> : vector<32x96xf32>
    %12 = tpu.matmul %10, %11, %cst_7 {dimension_numbers = #tpu.dot_dimension_numbers<[1], [0], [0], [1], [0, 0, 1, 1], [], []>} : vector<32x32xbf16>, vector<32x96xbf16>, vector<32x96xf32> -> vector<32x96xf32>
    %c0_8 = arith.constant 0 : index
    %c0_9 = arith.constant 0 : index
    %13 = vector.load %arg6[%c0_8, %c0_9] : memref<1x96xf32, #tpu.memory_space<vmem>>, vector<1x96xf32>
    %14 = vector.broadcast %13 : vector<1x96xf32> to vector<32x96xf32>
    %15 = arith.addf %12, %14 : vector<32x96xf32>
    %16 = vector.extract_strided_slice %15 {offsets = [0, 0], sizes = [32, 32], strides = [1, 1]} : vector<32x96xf32> to vector<32x32xf32>
    %17 = vector.extract_strided_slice %15 {offsets = [0, 32], sizes = [32, 32], strides = [1, 1]} : vector<32x96xf32> to vector<32x32xf32>
    %18 = vector.extract_strided_slice %15 {offsets = [0, 64], sizes = [32, 32], strides = [1, 1]} : vector<32x96xf32> to vector<32x32xf32>
    %19 = arith.truncf %17 : vector<32x32xf32> to vector<32x32xbf16>
    %c0_10 = arith.constant 0 : index
    %c0_11 = arith.constant 0 : index
    %20 = vector.load %arg3[%c0_10, %c0_11] : memref<32x32xf32, #tpu.memory_space<vmem>>, vector<32x32xf32>
    %c0_12 = arith.constant 0 : index
    %c0_13 = arith.constant 0 : index
    %c0_14 = arith.constant 0 : index
    %21 = vector.load %arg4[%c0_12, %c0_13, %c0_14] : memref<4x1x32xf32, #tpu.memory_space<vmem>>, vector<1x1x32xf32>
    %22 = vector.shape_cast %21 : vector<1x1x32xf32> to vector<1x32xf32>
    %23 = vector.broadcast %22 : vector<1x32xf32> to vector<32x32xf32>
    %24 = arith.mulf %16, %23 : vector<32x32xf32>
    %25 = arith.truncf %24 : vector<32x32xf32> to vector<32x32xbf16>
    %26 = vector.broadcast %22 : vector<1x32xf32> to vector<32x32xf32>
    %27 = arith.mulf %18, %26 : vector<32x32xf32>
    %28 = arith.truncf %27 : vector<32x32xf32> to vector<32x32xbf16>
    %cst_15 = arith.constant dense<0.000000e+00> : vector<32x32xf32>
    %29 = tpu.matmul %25, %19, %cst_15 {dimension_numbers = #tpu.dot_dimension_numbers<[1], [1], [0], [0], [0, 0, 1, 0], [], []>} : vector<32x32xbf16>, vector<32x32xbf16>, vector<32x32xf32> -> vector<32x32xf32>
    %30 = arith.addf %29, %20 : vector<32x32xf32>
    %cst_16 = arith.constant dense<0xFF800000> : vector<32xf32>
    %31 = vector.multi_reduction <maximumf>, %30, %cst_16 [1] : vector<32x32xf32> to vector<32xf32>
    %32 = vector.shape_cast %31 : vector<32xf32> to vector<32x1xf32>
    %33 = vector.broadcast %32 : vector<32x1xf32> to vector<32x32xf32>
    %34 = arith.subf %30, %33 : vector<32x32xf32>
    %35 = math.exp %34 : vector<32x32xf32>
    %cst_17 = arith.constant dense<0.000000e+00> : vector<32xf32>
    %36 = vector.multi_reduction <add>, %35, %cst_17 [1] : vector<32x32xf32> to vector<32xf32>
    %37 = vector.shape_cast %36 : vector<32xf32> to vector<32x1xf32>
    %38 = tpu.reciprocal %37 : vector<32x1xf32> -> vector<32x1xf32>
    %39 = vector.broadcast %38 : vector<32x1xf32> to vector<32x32xf32>
    %40 = arith.mulf %35, %39 : vector<32x32xf32>
    %41 = arith.truncf %40 : vector<32x32xf32> to vector<32x32xbf16>
    %cst_18 = arith.constant dense<0.000000e+00> : vector<32x32xf32>
    %42 = tpu.matmul %41, %28, %cst_18 {dimension_numbers = #tpu.dot_dimension_numbers<[1], [0], [0], [1], [0, 0, 1, 1], [], []>} : vector<32x32xbf16>, vector<32x32xbf16>, vector<32x32xf32> -> vector<32x32xf32>
    %c1 = arith.constant 1 : index
    %c0_19 = arith.constant 0 : index
    %c0_20 = arith.constant 0 : index
    %43 = vector.load %arg4[%c1, %c0_19, %c0_20] : memref<4x1x32xf32, #tpu.memory_space<vmem>>, vector<1x1x32xf32>
    %44 = vector.shape_cast %43 : vector<1x1x32xf32> to vector<1x32xf32>
    %45 = vector.broadcast %44 : vector<1x32xf32> to vector<32x32xf32>
    %46 = arith.mulf %16, %45 : vector<32x32xf32>
    %47 = arith.truncf %46 : vector<32x32xf32> to vector<32x32xbf16>
    %48 = vector.broadcast %44 : vector<1x32xf32> to vector<32x32xf32>
    %49 = arith.mulf %18, %48 : vector<32x32xf32>
    %50 = arith.truncf %49 : vector<32x32xf32> to vector<32x32xbf16>
    %cst_21 = arith.constant dense<0.000000e+00> : vector<32x32xf32>
    %51 = tpu.matmul %47, %19, %cst_21 {dimension_numbers = #tpu.dot_dimension_numbers<[1], [1], [0], [0], [0, 0, 1, 0], [], []>} : vector<32x32xbf16>, vector<32x32xbf16>, vector<32x32xf32> -> vector<32x32xf32>
    %52 = arith.addf %51, %20 : vector<32x32xf32>
    %cst_22 = arith.constant dense<0xFF800000> : vector<32xf32>
    %53 = vector.multi_reduction <maximumf>, %52, %cst_22 [1] : vector<32x32xf32> to vector<32xf32>
    %54 = vector.shape_cast %53 : vector<32xf32> to vector<32x1xf32>
    %55 = vector.broadcast %54 : vector<32x1xf32> to vector<32x32xf32>
    %56 = arith.subf %52, %55 : vector<32x32xf32>
    %57 = math.exp %56 : vector<32x32xf32>
    %cst_23 = arith.constant dense<0.000000e+00> : vector<32xf32>
    %58 = vector.multi_reduction <add>, %57, %cst_23 [1] : vector<32x32xf32> to vector<32xf32>
    %59 = vector.shape_cast %58 : vector<32xf32> to vector<32x1xf32>
    %60 = tpu.reciprocal %59 : vector<32x1xf32> -> vector<32x1xf32>
    %61 = vector.broadcast %60 : vector<32x1xf32> to vector<32x32xf32>
    %62 = arith.mulf %57, %61 : vector<32x32xf32>
    %63 = arith.truncf %62 : vector<32x32xf32> to vector<32x32xbf16>
    %cst_24 = arith.constant dense<0.000000e+00> : vector<32x32xf32>
    %64 = tpu.matmul %63, %50, %cst_24 {dimension_numbers = #tpu.dot_dimension_numbers<[1], [0], [0], [1], [0, 0, 1, 1], [], []>} : vector<32x32xbf16>, vector<32x32xbf16>, vector<32x32xf32> -> vector<32x32xf32>
    %65 = arith.addf %42, %64 : vector<32x32xf32>
    %c2 = arith.constant 2 : index
    %c0_25 = arith.constant 0 : index
    %c0_26 = arith.constant 0 : index
    %66 = vector.load %arg4[%c2, %c0_25, %c0_26] : memref<4x1x32xf32, #tpu.memory_space<vmem>>, vector<1x1x32xf32>
    %67 = vector.shape_cast %66 : vector<1x1x32xf32> to vector<1x32xf32>
    %68 = vector.broadcast %67 : vector<1x32xf32> to vector<32x32xf32>
    %69 = arith.mulf %16, %68 : vector<32x32xf32>
    %70 = arith.truncf %69 : vector<32x32xf32> to vector<32x32xbf16>
    %71 = vector.broadcast %67 : vector<1x32xf32> to vector<32x32xf32>
    %72 = arith.mulf %18, %71 : vector<32x32xf32>
    %73 = arith.truncf %72 : vector<32x32xf32> to vector<32x32xbf16>
    %cst_27 = arith.constant dense<0.000000e+00> : vector<32x32xf32>
    %74 = tpu.matmul %70, %19, %cst_27 {dimension_numbers = #tpu.dot_dimension_numbers<[1], [1], [0], [0], [0, 0, 1, 0], [], []>} : vector<32x32xbf16>, vector<32x32xbf16>, vector<32x32xf32> -> vector<32x32xf32>
    %75 = arith.addf %74, %20 : vector<32x32xf32>
    %cst_28 = arith.constant dense<0xFF800000> : vector<32xf32>
    %76 = vector.multi_reduction <maximumf>, %75, %cst_28 [1] : vector<32x32xf32> to vector<32xf32>
    %77 = vector.shape_cast %76 : vector<32xf32> to vector<32x1xf32>
    %78 = vector.broadcast %77 : vector<32x1xf32> to vector<32x32xf32>
    %79 = arith.subf %75, %78 : vector<32x32xf32>
    %80 = math.exp %79 : vector<32x32xf32>
    %cst_29 = arith.constant dense<0.000000e+00> : vector<32xf32>
    %81 = vector.multi_reduction <add>, %80, %cst_29 [1] : vector<32x32xf32> to vector<32xf32>
    %82 = vector.shape_cast %81 : vector<32xf32> to vector<32x1xf32>
    %83 = tpu.reciprocal %82 : vector<32x1xf32> -> vector<32x1xf32>
    %84 = vector.broadcast %83 : vector<32x1xf32> to vector<32x32xf32>
    %85 = arith.mulf %80, %84 : vector<32x32xf32>
    %86 = arith.truncf %85 : vector<32x32xf32> to vector<32x32xbf16>
    %cst_30 = arith.constant dense<0.000000e+00> : vector<32x32xf32>
    %87 = tpu.matmul %86, %73, %cst_30 {dimension_numbers = #tpu.dot_dimension_numbers<[1], [0], [0], [1], [0, 0, 1, 1], [], []>} : vector<32x32xbf16>, vector<32x32xbf16>, vector<32x32xf32> -> vector<32x32xf32>
    %88 = arith.addf %65, %87 : vector<32x32xf32>
    %c3 = arith.constant 3 : index
    %c0_31 = arith.constant 0 : index
    %c0_32 = arith.constant 0 : index
    %89 = vector.load %arg4[%c3, %c0_31, %c0_32] : memref<4x1x32xf32, #tpu.memory_space<vmem>>, vector<1x1x32xf32>
    %90 = vector.shape_cast %89 : vector<1x1x32xf32> to vector<1x32xf32>
    %91 = vector.broadcast %90 : vector<1x32xf32> to vector<32x32xf32>
    %92 = arith.mulf %16, %91 : vector<32x32xf32>
    %93 = arith.truncf %92 : vector<32x32xf32> to vector<32x32xbf16>
    %94 = vector.broadcast %90 : vector<1x32xf32> to vector<32x32xf32>
    %95 = arith.mulf %18, %94 : vector<32x32xf32>
    %96 = arith.truncf %95 : vector<32x32xf32> to vector<32x32xbf16>
    %cst_33 = arith.constant dense<0.000000e+00> : vector<32x32xf32>
    %97 = tpu.matmul %93, %19, %cst_33 {dimension_numbers = #tpu.dot_dimension_numbers<[1], [1], [0], [0], [0, 0, 1, 0], [], []>} : vector<32x32xbf16>, vector<32x32xbf16>, vector<32x32xf32> -> vector<32x32xf32>
    %98 = arith.addf %97, %20 : vector<32x32xf32>
    %cst_34 = arith.constant dense<0xFF800000> : vector<32xf32>
    %99 = vector.multi_reduction <maximumf>, %98, %cst_34 [1] : vector<32x32xf32> to vector<32xf32>
    %100 = vector.shape_cast %99 : vector<32xf32> to vector<32x1xf32>
    %101 = vector.broadcast %100 : vector<32x1xf32> to vector<32x32xf32>
    %102 = arith.subf %98, %101 : vector<32x32xf32>
    %103 = math.exp %102 : vector<32x32xf32>
    %cst_35 = arith.constant dense<0.000000e+00> : vector<32xf32>
    %104 = vector.multi_reduction <add>, %103, %cst_35 [1] : vector<32x32xf32> to vector<32xf32>
    %105 = vector.shape_cast %104 : vector<32xf32> to vector<32x1xf32>
    %106 = tpu.reciprocal %105 : vector<32x1xf32> -> vector<32x1xf32>
    %107 = vector.broadcast %106 : vector<32x1xf32> to vector<32x32xf32>
    %108 = arith.mulf %103, %107 : vector<32x32xf32>
    %109 = arith.truncf %108 : vector<32x32xf32> to vector<32x32xbf16>
    %cst_36 = arith.constant dense<0.000000e+00> : vector<32x32xf32>
    %110 = tpu.matmul %109, %96, %cst_36 {dimension_numbers = #tpu.dot_dimension_numbers<[1], [0], [0], [1], [0, 0, 1, 1], [], []>} : vector<32x32xbf16>, vector<32x32xbf16>, vector<32x32xf32> -> vector<32x32xf32>
    %111 = arith.addf %88, %110 : vector<32x32xf32>
    %112 = arith.truncf %111 : vector<32x32xf32> to vector<32x32xbf16>
    %c0_37 = arith.constant 0 : index
    %c0_38 = arith.constant 0 : index
    %113 = vector.load %arg7[%c0_37, %c0_38] : memref<32x32xbf16, #tpu.memory_space<vmem>>, vector<32x32xbf16>
    %cst_39 = arith.constant dense<0.000000e+00> : vector<32x32xf32>
    %114 = tpu.matmul %112, %113, %cst_39 {dimension_numbers = #tpu.dot_dimension_numbers<[1], [0], [0], [1], [0, 0, 1, 1], [], []>} : vector<32x32xbf16>, vector<32x32xbf16>, vector<32x32xf32> -> vector<32x32xf32>
    %c0_40 = arith.constant 0 : index
    %c0_41 = arith.constant 0 : index
    %115 = vector.load %arg8[%c0_40, %c0_41] : memref<1x32xf32, #tpu.memory_space<vmem>>, vector<1x32xf32>
    %116 = vector.broadcast %115 : vector<1x32xf32> to vector<32x32xf32>
    %117 = arith.addf %114, %116 : vector<32x32xf32>
    %118 = arith.addf %9, %117 : vector<32x32xf32>
    %c0_42 = arith.constant 0 : index
    %c0_43 = arith.constant 0 : index
    %119 = vector.load %arg9[%c0_42, %c0_43] : memref<1x32xf32, #tpu.memory_space<vmem>>, vector<1x32xf32>
    %c0_44 = arith.constant 0 : index
    %c0_45 = arith.constant 0 : index
    %120 = vector.load %arg10[%c0_44, %c0_45] : memref<1x32xf32, #tpu.memory_space<vmem>>, vector<1x32xf32>
    %cst_46 = arith.constant dense<0.000000e+00> : vector<32xf32>
    %121 = vector.multi_reduction <add>, %118, %cst_46 [1] : vector<32x32xf32> to vector<32xf32>
    %122 = vector.shape_cast %121 : vector<32xf32> to vector<32x1xf32>
    %cst_47 = arith.constant 3.200000e+01 : f32
    %123 = vector.broadcast %cst_47 : f32 to vector<32x1xf32>
    %124 = arith.divf %122, %123 : vector<32x1xf32>
    %125 = vector.broadcast %124 : vector<32x1xf32> to vector<32x32xf32>
    %126 = arith.subf %118, %125 : vector<32x32xf32>
    %127 = arith.mulf %126, %126 : vector<32x32xf32>
    %cst_48 = arith.constant dense<0.000000e+00> : vector<32xf32>
    %128 = vector.multi_reduction <add>, %127, %cst_48 [1] : vector<32x32xf32> to vector<32xf32>
    %129 = vector.shape_cast %128 : vector<32xf32> to vector<32x1xf32>
    %cst_49 = arith.constant 3.200000e+01 : f32
    %130 = vector.broadcast %cst_49 : f32 to vector<32x1xf32>
    %131 = arith.divf %129, %130 : vector<32x1xf32>
    %132 = vector.broadcast %124 : vector<32x1xf32> to vector<32x32xf32>
    %133 = arith.subf %118, %132 : vector<32x32xf32>
    %cst_50 = arith.constant 9.99999974E-6 : f32
    %134 = vector.broadcast %cst_50 : f32 to vector<32x1xf32>
    %135 = arith.addf %131, %134 : vector<32x1xf32>
    %136 = math.rsqrt %135 : vector<32x1xf32>
    %137 = vector.broadcast %136 : vector<32x1xf32> to vector<32x32xf32>
    %138 = arith.mulf %133, %137 : vector<32x32xf32>
    %139 = vector.broadcast %119 : vector<1x32xf32> to vector<32x32xf32>
    %140 = arith.mulf %138, %139 : vector<32x32xf32>
    %141 = vector.broadcast %120 : vector<1x32xf32> to vector<32x32xf32>
    %142 = arith.addf %140, %141 : vector<32x32xf32>
    %143 = arith.truncf %142 : vector<32x32xf32> to vector<32x32xbf16>
    %c0_51 = arith.constant 0 : index
    %c0_52 = arith.constant 0 : index
    %144 = vector.load %arg11[%c0_51, %c0_52] : memref<32x2048xbf16, #tpu.memory_space<vmem>>, vector<32x2048xbf16>
    %cst_53 = arith.constant dense<0.000000e+00> : vector<32x2048xf32>
    %145 = tpu.matmul %143, %144, %cst_53 {dimension_numbers = #tpu.dot_dimension_numbers<[1], [0], [0], [1], [0, 0, 1, 1], [], []>} : vector<32x32xbf16>, vector<32x2048xbf16>, vector<32x2048xf32> -> vector<32x2048xf32>
    %c0_54 = arith.constant 0 : index
    %c0_55 = arith.constant 0 : index
    %146 = vector.load %arg12[%c0_54, %c0_55] : memref<1x2048xf32, #tpu.memory_space<vmem>>, vector<1x2048xf32>
    %147 = vector.broadcast %146 : vector<1x2048xf32> to vector<32x2048xf32>
    %148 = arith.addf %145, %147 : vector<32x2048xf32>
    %cst_56 = arith.constant 0.000000e+00 : f32
    %149 = vector.broadcast %cst_56 : f32 to vector<32x2048xf32>
    %150 = arith.maximumf %148, %149 : vector<32x2048xf32>
    %151 = arith.truncf %150 : vector<32x2048xf32> to vector<32x2048xbf16>
    %c0_57 = arith.constant 0 : index
    %c0_58 = arith.constant 0 : index
    %152 = vector.load %arg13[%c0_57, %c0_58] : memref<2048x32xbf16, #tpu.memory_space<vmem>>, vector<2048x32xbf16>
    %cst_59 = arith.constant dense<0.000000e+00> : vector<32x32xf32>
    %153 = tpu.matmul %151, %152, %cst_59 {dimension_numbers = #tpu.dot_dimension_numbers<[1], [0], [0], [1], [0, 0, 1, 1], [], []>} : vector<32x2048xbf16>, vector<2048x32xbf16>, vector<32x32xf32> -> vector<32x32xf32>
    %c0_60 = arith.constant 0 : index
    %c0_61 = arith.constant 0 : index
    %154 = vector.load %arg14[%c0_60, %c0_61] : memref<1x32xf32, #tpu.memory_space<vmem>>, vector<1x32xf32>
    %155 = vector.broadcast %154 : vector<1x32xf32> to vector<32x32xf32>
    %156 = arith.addf %153, %155 : vector<32x32xf32>
    %157 = arith.addf %142, %156 : vector<32x32xf32>
    %c0_62 = arith.constant 0 : index
    %c0_63 = arith.constant 0 : index
    %158 = vector.load %arg15[%c0_62, %c0_63] : memref<1x32xf32, #tpu.memory_space<vmem>>, vector<1x32xf32>
    %c0_64 = arith.constant 0 : index
    %c0_65 = arith.constant 0 : index
    %159 = vector.load %arg16[%c0_64, %c0_65] : memref<1x32xf32, #tpu.memory_space<vmem>>, vector<1x32xf32>
    %cst_66 = arith.constant dense<0.000000e+00> : vector<32xf32>
    %160 = vector.multi_reduction <add>, %157, %cst_66 [1] : vector<32x32xf32> to vector<32xf32>
    %161 = vector.shape_cast %160 : vector<32xf32> to vector<32x1xf32>
    %cst_67 = arith.constant 3.200000e+01 : f32
    %162 = vector.broadcast %cst_67 : f32 to vector<32x1xf32>
    %163 = arith.divf %161, %162 : vector<32x1xf32>
    %164 = vector.broadcast %163 : vector<32x1xf32> to vector<32x32xf32>
    %165 = arith.subf %157, %164 : vector<32x32xf32>
    %166 = arith.mulf %165, %165 : vector<32x32xf32>
    %cst_68 = arith.constant dense<0.000000e+00> : vector<32xf32>
    %167 = vector.multi_reduction <add>, %166, %cst_68 [1] : vector<32x32xf32> to vector<32xf32>
    %168 = vector.shape_cast %167 : vector<32xf32> to vector<32x1xf32>
    %cst_69 = arith.constant 3.200000e+01 : f32
    %169 = vector.broadcast %cst_69 : f32 to vector<32x1xf32>
    %170 = arith.divf %168, %169 : vector<32x1xf32>
    %171 = vector.broadcast %163 : vector<32x1xf32> to vector<32x32xf32>
    %172 = arith.subf %157, %171 : vector<32x32xf32>
    %cst_70 = arith.constant 9.99999974E-6 : f32
    %173 = vector.broadcast %cst_70 : f32 to vector<32x1xf32>
    %174 = arith.addf %170, %173 : vector<32x1xf32>
    %175 = math.rsqrt %174 : vector<32x1xf32>
    %176 = vector.broadcast %175 : vector<32x1xf32> to vector<32x32xf32>
    %177 = arith.mulf %172, %176 : vector<32x32xf32>
    %178 = vector.broadcast %158 : vector<1x32xf32> to vector<32x32xf32>
    %179 = arith.mulf %177, %178 : vector<32x32xf32>
    %180 = vector.broadcast %159 : vector<1x32xf32> to vector<32x32xf32>
    %181 = arith.addf %179, %180 : vector<32x32xf32>
    %c0_71 = arith.constant 0 : index
    %c0_72 = arith.constant 0 : index
    %182 = vector.load %arg17[%c0_71, %c0_72] : memref<32x32xf32, #tpu.memory_space<vmem>>, vector<32x32xf32>
    tpu.vector_store %arg17[%c0_71, %c0_72], %181 {strides = array<i32>} : memref<32x32xf32, #tpu.memory_space<vmem>>, vector<32x32xf32>,
    return
  }
}

</mosaic_0001>

<llo_original>
// kernel: neg.1
$region0: #{neg.1}
  #allocation0 [shape = 's32[1]{0}', space=sflag, size = 0x4, scoped, tag = 'scoped memory for neg.1']
  %s0 = inlined_call_operand.vmem [shape: s32[2], index: 0, kind: input, shape index: {}]
  %s1 = inlined_call_operand.vmem [shape: s32[2], index: 1, kind: output, shape index: {}]
  %v2 = vld [vmem:[%s0] sm:$0x1]
  %3 = xla_tuple %v2
  %4 = xla_tuple %3
  %v5 = vsub.s32 0, %v2
  %6 = xla_tuple %v5
  %7 = vst [vmem:[%s1] sm:$0x1] %v5

// kernel: mul.31
$region0: #{mul.31}
  #allocation0 [shape = 's32[1]{0}', space=sflag, size = 0x4, scoped, tag = 'scoped memory for mul.31']
  %s0 = inlined_call_operand.vmem [shape: f32[1,96], index: 0, kind: input, shape index: {}]
  %s1 = inlined_call_operand.vmem [shape: f32[1,96], index: 1, kind: input, shape index: {}]
  %s2 = inlined_call_operand.vmem [shape: f32[1,96], index: 2, kind: output, shape index: {}]
  %v3 = vld [vmem:[%s0] sm:$0x1]
  %v4 = vld [vmem:[%s1] sm:$0x1]
  %5 = xla_tuple %v3, %v4
  %6 = xla_tuple %5
  %v7 = vmul.f32 %v3, %v4
  %8 = xla_tuple %v7
  %9 = vst [vmem:[%s2] sm:$0x1] %v7

// kernel: topic_transformer_forward.1
$region0: #{topic_transformer_forward.1}
  #allocation0 [shape = 'u32[]', space=smem, size = 0x4, offset = 0x4, fixed_abs, tag = 'smem constant byte address 0x4 - core index']
  #allocation1 [shape = 'u32[144,128]{1,0:T(1,128)}', space=vmem, size = 0x12000, scoped, tag = 'internal scratch']
  %s0 = inlined_call_operand.vmem [shape: s32[32,1], index: 0, kind: input, shape index: {}]
  %s1 = inlined_call_operand.vmem [shape: f32[128,32], index: 1, kind: input, shape index: {}]
  %s2 = inlined_call_operand.vmem [shape: f32[32,32], index: 2, kind: input, shape index: {}]
  %s3 = inlined_call_operand.vmem [shape: f32[32,32], index: 3, kind: input, shape index: {}]
  %s4 = inlined_call_operand.vmem [shape: f32[4,1,32], index: 4, kind: input, shape index: {}]
  %s5 = inlined_call_operand.vmem [shape: bf16[32,96], index: 5, kind: input, shape index: {}]
  %s6 = inlined_call_operand.vmem [shape: f32[1,96], index: 6, kind: input, shape index: {}]
  %s7 = inlined_call_operand.vmem [shape: bf16[32,32], index: 7, kind: input, shape index: {}]
  %s8 = inlined_call_operand.vmem [shape: f32[1,32], index: 8, kind: input, shape index: {}]
  %s9 = inlined_call_operand.vmem [shape: f32[1,32], index: 9, kind: input, shape index: {}]
  %s10 = inlined_call_operand.vmem [shape: f32[1,32], index: 10, kind: input, shape index: {}]
  %s11 = inlined_call_operand.vmem [shape: bf16[32,2048], index: 11, kind: input, shape index: {}]
  %s12 = inlined_call_operand.vmem [shape: f32[1,2048], index: 12, kind: input, shape index: {}]
  %s13 = inlined_call_operand.vmem [shape: bf16[2048,32], index: 13, kind: input, shape index: {}]
  %s14 = inlined_call_operand.vmem [shape: f32[1,32], index: 14, kind: input, shape index: {}]
  %s15 = inlined_call_operand.vmem [shape: f32[1,32], index: 15, kind: input, shape index: {}]
  %s16 = inlined_call_operand.vmem [shape: f32[1,32], index: 16, kind: input, shape index: {}]
  %s17 = inlined_call_operand.vmem [shape: f32[32,32], index: 17, kind: output, shape index: {}]
  %s18 = sld [smem:[#allocation0]]
  $region78: #{topic_transformer_forward.1} parent=0
    _
  %s20 = ssub.s32 1, %s18
  %s21 = scalar_select 0, %s20, %s18
  // Predicated region
  $region2: #{topic_transformer_forward.1} parent=0 // pred_check
    _
  $region3: #{topic_transformer_forward.1} parent=0 // pred_check_branch
    %23 = sbr.rel (0) target = $region5
  $region4: #{topic_transformer_forward.1} parent=0 // pred_region
    _
  $region5: #{topic_transformer_forward.1} parent=0 // pred_fallthru
    _
  // Predicated region
  $region6: #{topic_transformer_forward.1} parent=0 // pred_check
    _
  $region7: #{topic_transformer_forward.1} parent=0 // pred_check_branch
    %25 = sbr.rel (0) target = $region9
  $region8: #{topic_transformer_forward.1} parent=0 // pred_region
    _
  $region9: #{topic_transformer_forward.1} parent=0 // pred_fallthru
    _
  // Predicated region
  $region10: #{topic_transformer_forward.1} parent=0 // pred_check
    _
  $region11: #{topic_transformer_forward.1} parent=0 // pred_check_branch
    %27 = sbr.rel (0) target = $region13
  $region12: #{topic_transformer_forward.1} parent=0 // pred_region
    _
  $region13: #{topic_transformer_forward.1} parent=0 // pred_fallthru
    _
  // Predicated region
  $region14: #{topic_transformer_forward.1} parent=0 // pred_check
    _
  $region15: #{topic_transformer_forward.1} parent=0 // pred_check_branch
    %29 = sbr.rel (0) target = $region17
  $region16: #{topic_transformer_forward.1} parent=0 // pred_region
    _
  $region17: #{topic_transformer_forward.1} parent=0 // pred_fallthru
    _
  // Predicated region
  $region18: #{topic_transformer_forward.1} parent=0 // pred_check
    _
  $region19: #{topic_transformer_forward.1} parent=0 // pred_check_branch
    %31 = sbr.rel (0) target = $region21
  $region20: #{topic_transformer_forward.1} parent=0 // pred_region
    _
  $region21: #{topic_transformer_forward.1} parent=0 // pred_fallthru
    _
  // Predicated region
  $region22: #{topic_transformer_forward.1} parent=0 // pred_check
    _
  $region23: #{topic_transformer_forward.1} parent=0 // pred_check_branch
    %33 = sbr.rel (0) target = $region25
  $region24: #{topic_transformer_forward.1} parent=0 // pred_region
    _
  $region25: #{topic_transformer_forward.1} parent=0 // pred_fallthru
    _
  // Predicated region
  $region26: #{topic_transformer_forward.1} parent=0 // pred_check
    _
  $region27: #{topic_transformer_forward.1} parent=0 // pred_check_branch
    %35 = sbr.rel (0) target = $region29
  $region28: #{topic_transformer_forward.1} parent=0 // pred_region
    _
  $region29: #{topic_transformer_forward.1} parent=0 // pred_fallthru
    _
  // Predicated region
  $region30: #{topic_transformer_forward.1} parent=0 // pred_check
    _
  $region31: #{topic_transformer_forward.1} parent=0 // pred_check_branch
    %37 = sbr.rel (0) target = $region33
  $region32: #{topic_transformer_forward.1} parent=0 // pred_region
    _
  $region33: #{topic_transformer_forward.1} parent=0 // pred_fallthru
    _
  // Predicated region
  $region34: #{topic_transformer_forward.1} parent=0 // pred_check
    _
  $region35: #{topic_transformer_forward.1} parent=0 // pred_check_branch
    %39 = sbr.rel (0) target = $region37
  $region36: #{topic_transformer_forward.1} parent=0 // pred_region
    _
  $region37: #{topic_transformer_forward.1} parent=0 // pred_fallthru
    _
  // Predicated region
  $region38: #{topic_transformer_forward.1} parent=0 // pred_check
    _
  $region39: #{topic_transformer_forward.1} parent=0 // pred_check_branch
    %41 = sbr.rel (0) target = $region41
  $region40: #{topic_transformer_forward.1} parent=0 // pred_region
    _
  $region41: #{topic_transformer_forward.1} parent=0 // pred_fallthru
    _
  // Predicated region
  $region42: #{topic_transformer_forward.1} parent=0 // pred_check
    _
  $region43: #{topic_transformer_forward.1} parent=0 // pred_check_branch
    %43 = sbr.rel (0) target = $region45
  $region44: #{topic_transformer_forward.1} parent=0 // pred_region
    _
  $region45: #{topic_transformer_forward.1} parent=0 // pred_fallthru
    _
  // Predicated region
  $region46: #{topic_transformer_forward.1} parent=0 // pred_check
    _
  $region47: #{topic_transformer_forward.1} parent=0 // pred_check_branch
    %45 = sbr.rel (0) target = $region49
  $region48: #{topic_transformer_forward.1} parent=0 // pred_region
    _
  $region49: #{topic_transformer_forward.1} parent=0 // pred_fallthru
    _
  // Predicated region
  $region50: #{topic_transformer_forward.1} parent=0 // pred_check
    _
  $region51: #{topic_transformer_forward.1} parent=0 // pred_check_branch
    %47 = sbr.rel (0) target = $region53
  $region52: #{topic_transformer_forward.1} parent=0 // pred_region
    _
  $region53: #{topic_transformer_forward.1} parent=0 // pred_fallthru
    _
  // Predicated region
  $region54: #{topic_transformer_forward.1} parent=0 // pred_check
    _
  $region55: #{topic_transformer_forward.1} parent=0 // pred_check_branch
    %49 = sbr.rel (0) target = $region57
  $region56: #{topic_transformer_forward.1} parent=0 // pred_region
    _
  $region57: #{topic_transformer_forward.1} parent=0 // pred_fallthru
    _
  // Predicated region
  $region58: #{topic_transformer_forward.1} parent=0 // pred_check
    _
  $region59: #{topic_transformer_forward.1} parent=0 // pred_check_branch
    %51 = sbr.rel (0) target = $region61
  $region60: #{topic_transformer_forward.1} parent=0 // pred_region
    _
  $region61: #{topic_transformer_forward.1} parent=0 // pred_fallthru
    _
  // Predicated region
  $region62: #{topic_transformer_forward.1} parent=0 // pred_check
    _
  $region63: #{topic_transformer_forward.1} parent=0 // pred_check_branch
    %53 = sbr.rel (0) target = $region65
  $region64: #{topic_transformer_forward.1} parent=0 // pred_region
    _
  $region65: #{topic_transformer_forward.1} parent=0 // pred_fallthru
    _
  // Predicated region
  $region66: #{topic_transformer_forward.1} parent=0 // pred_check
    _
  $region67: #{topic_transformer_forward.1} parent=0 // pred_check_branch
    %55 = sbr.rel (0) target = $region69
  $region68: #{topic_transformer_forward.1} parent=0 // pred_region
    _
  $region69: #{topic_transformer_forward.1} parent=0 // pred_fallthru
    _
  %v57 = vlaneseq
  %v58 = vand.u32 %v57, 127
  %v59 = vld [vmem:[%s0] sm:$0xff]
  %v60 = vld [vmem:[%s0 + $0x8] sm:$0xff]
  %v61 = vld [vmem:[%s0 + $0x10] sm:$0xff]
  %v62 = vld [vmem:[%s0 + $0x18] sm:$0xff]
  %63 = vset.pattern.permute.xlu0 0
  %64 = vperm.xlu0 %63, %v59
  %v65 = vpop.permute.xlu0 %64
  %66 = vset.pattern.permute.xlu0 0
  %67 = vperm.xlu0 %66, %v60
  %v68 = vpop.permute.xlu0 %67
  %69 = vset.pattern.permute.xlu0 0
  %70 = vperm.xlu0 %69, %v61
  %v71 = vpop.permute.xlu0 %70
  %72 = vset.pattern.permute.xlu0 0
  %73 = vperm.xlu0 %72, %v62
  %v74 = vpop.permute.xlu0 %73
  %vm75 = vcmp.eq.s32.totalorder %v65, %v58
  %vm76 = vcmp.eq.s32.totalorder %v68, %v58
  %vm77 = vcmp.eq.s32.totalorder %v71, %v58
  %vm78 = vcmp.eq.s32.totalorder %v74, %v58
  %v79 = vsel %vm75, 1, 0
  %v80 = vsel %vm76, 1, 0
  %v81 = vsel %vm77, 1, 0
  %v82 = vsel %vm78, 1, 0
  %v83 = vcvt.s32.f32 %v79
  %v84 = vcvt.s32.f32 %v80
  %v85 = vcvt.s32.f32 %v81
  %v86 = vcvt.s32.f32 %v82
  %v87 = vld [vmem:[%s1] sm:$0xff]
  %v88 = vld [vmem:[%s1 + $0x8] sm:$0xff]
  %v89 = vld [vmem:[%s1 + $0x10] sm:$0xff]
  %v90 = vld [vmem:[%s1 + $0x18] sm:$0xff]
  %v91 = vld [vmem:[%s1 + $0x20] sm:$0xff]
  %v92 = vld [vmem:[%s1 + $0x28] sm:$0xff]
  %v93 = vld [vmem:[%s1 + $0x30] sm:$0xff]
  %v94 = vld [vmem:[%s1 + $0x38] sm:$0xff]
  %v95 = vld [vmem:[%s1 + $0x40] sm:$0xff]
  %v96 = vld [vmem:[%s1 + $0x48] sm:$0xff]
  %v97 = vld [vmem:[%s1 + $0x50] sm:$0xff]
  %v98 = vld [vmem:[%s1 + $0x58] sm:$0xff]
  %v99 = vld [vmem:[%s1 + $0x60] sm:$0xff]
  %v100 = vld [vmem:[%s1 + $0x68] sm:$0xff]
  %v101 = vld [vmem:[%s1 + $0x70] sm:$0xff]
  %v102 = vld [vmem:[%s1 + $0x78] sm:$0xff]
  %v103 = vld [vmem:[%s2] sm:$0xff]
  %v104 = vld [vmem:[%s2 + $0x8] sm:$0xff]
  %v105 = vld [vmem:[%s2 + $0x10] sm:$0xff]
  %v106 = vld [vmem:[%s2 + $0x18] sm:$0xff]
  %107 = vmatprep.subr.mxu0 0.0
  %108 = vmatpush1.msra.mxu0 %v87
  %109 = vmatprep.subr.mxu0 0.0
  %110 = vmatpush1.msra.mxu0 %v88
  %111 = vmatprep.subr.mxu0 0.0
  %112 = vmatpush1.msra.mxu0 %v89
  %113 = vmatprep.subr.mxu0 0.0
  %114 = vmatpush1.msra.mxu0 %v90
  %115 = vmatprep.subr.mxu0 0.0
  %116 = vmatpush1.msra.mxu0 %v91
  %117 = vmatprep.subr.mxu0 0.0
  %118 = vmatpush1.msra.mxu0 %v92
  %119 = vmatprep.subr.mxu0 0.0
  %120 = vmatpush1.msra.mxu0 %v93
  %121 = vmatprep.subr.mxu0 0.0
  %122 = vmatpush1.msra.mxu0 %v94
  %123 = vmatprep.subr.mxu0 0.0
  %124 = vmatpush1.msra.mxu0 %v95
  %125 = vmatprep.subr.mxu0 0.0
  %126 = vmatpush1.msra.mxu0 %v96
  %127 = vmatprep.subr.mxu0 0.0
  %128 = vmatpush1.msra.mxu0 %v97
  %129 = vmatprep.subr.mxu0 0.0
  %130 = vmatpush1.msra.mxu0 %v98
  %131 = vmatprep.subr.mxu0 0.0
  %132 = vmatpush1.msra.mxu0 %v99
  %133 = vmatprep.subr.mxu0 0.0
  %134 = vmatpush1.msra.mxu0 %v100
  %135 = vmatprep.subr.mxu0 0.0
  %136 = vmatpush1.msra.mxu0 %v101
  %137 = vmatprep.subr.mxu0 0.0
  %138 = vmatpush1.msra.mxu0 %v102
  %139 = vmatprep.subr.mxu0 0.0
  %140 = vmatpush1.msra.mxu0 0.0
  %141 = vmatprep.subr.mxu0 0.0
  %142 = vmatpush1.msra.mxu0 0.0
  %143 = vmatprep.subr.mxu0 0.0
  %144 = vmatpush1.msra.mxu0 0.0
  %145 = vmatprep.subr.mxu0 0.0
  %146 = vmatpush1.msra.mxu0 0.0
  %147 = vmatprep.subr.mxu0 0.0
  %148 = vmatpush1.msra.mxu0 0.0
  %149 = vmatprep.subr.mxu0 0.0
  %150 = vmatpush1.msra.mxu0 0.0
  %151 = vmatprep.subr.mxu0 0.0
  %152 = vmatpush1.msra.mxu0 0.0
  %153 = vmatprep.subr.mxu0 0.0
  %154 = vmatpush1.msra.mxu0 0.0
  %155 = vmatprep.subr.mxu0 0.0
  %156 = vmatpush1.msra.mxu0 0.0
  %157 = vmatprep.subr.mxu0 0.0
  %158 = vmatpush1.msra.mxu0 0.0
  %159 = vmatprep.subr.mxu0 0.0
  %160 = vmatpush1.msra.mxu0 0.0
  %161 = vmatprep.subr.mxu0 0.0
  %162 = vmatpush1.msra.mxu0 0.0
  %163 = vmatprep.subr.mxu0 0.0
  %164 = vmatpush1.msra.mxu0 0.0
  %165 = vmatprep.subr.mxu0 0.0
  %166 = vmatpush1.msra.mxu0 0.0
  %167 = vmatprep.subr.mxu0 0.0
  %168 = vmatpush1.msra.mxu0 0.0
  %169 = vmatprep.subr.mxu0 0.0
  %170 = vmatpush1.msra.mxu0 0.0
  %171 = vmatprep.mubr.f32.mxu0 0.0
  %172 = vmatmul.mubr.f32.gmra.mrb[0].mxu0 %v83
  %v173 = vpop.f32.mrb[0].mxu0
  %v174 = vadd.f32 %v103, %v173
  %v175 = vpop.f32.mrb[0].mxu0
  %176 = vmatprep.mubr.f32.mxu0 0.0
  %177 = vmatmul.mubr.f32.gmra.mrb[0].mxu0 %v84
  %v178 = vpop.f32.mrb[0].mxu0
  %v179 = vadd.f32 %v104, %v178
  %v180 = vpop.f32.mrb[0].mxu0
  %181 = vmatprep.mubr.f32.mxu0 0.0
  %182 = vmatmul.mubr.f32.gmra.mrb[0].mxu0 %v85
  %v183 = vpop.f32.mrb[0].mxu0
  %v184 = vadd.f32 %v105, %v183
  %v185 = vpop.f32.mrb[0].mxu0
  %186 = vmatprep.mubr.f32.mxu0 0.0
  %187 = vmatmul.mubr.f32.gmra.mrb[0].mxu0 %v86
  %v188 = vpop.f32.mrb[0].mxu0
  %v189 = vadd.f32 %v106, %v188
  %v190 = vpop.f32.mrb[0].mxu0
  %191 = vdwg.mxu0
  %v192 = vpack.c.bf16 %v179, %v174
  %v193 = vpack.c.bf16 %v189, %v184
  %v194 = vld [vmem:[%s5] sm:$0xf]
  %v195 = vld [vmem:[%s5 + $0x4] sm:$0xf]
  %v196 = vld [vmem:[%s5 + $0x8] sm:$0xf]
  %v197 = vld [vmem:[%s5 + $0xc] sm:$0xf]
  %v198 = vld [vmem:[%s6] sm:$0x1]
  %v200 = vlaneseq
  %v201 = vshrl.u32 %v200, 7
  %v202 = vsub.s32 0, %v201
  %v203 = vrot.slane %v198, %v202
  %v209 = vunpack.c.l.b16 %v194
  %v210 = vunpack.c.l.b16 %v195
  %v211 = vunpack.c.l.b16 %v196
  %v212 = vunpack.c.l.b16 %v197
  %v213 = vpack.c.b16 %v210, %v209
  %v214 = vpack.c.b16 %v212, %v211
  %vm217 = vcmask 261120
  %v219 = vsel %vm217, %v192, 0
  %v222 = vsel %vm217, %v193, 0
  %224 = vmatprep.subr.bf16.mxu0 0
  %225 = vmatpush1.bf16.msra.mxu0 %v213
  %226 = vmatprep.subr.bf16.mxu0 0
  %227 = vmatpush1.bf16.msra.mxu0 %v214
  %228 = vmatprep.subr.bf16.mxu0 0
  %229 = vmatpush1.bf16.msra.mxu0 0
  %230 = vmatprep.subr.bf16.mxu0 0
  %231 = vmatpush1.bf16.msra.mxu0 0
  %232 = vmatprep.subr.bf16.mxu0 0
  %233 = vmatpush1.bf16.msra.mxu0 0
  %234 = vmatprep.subr.bf16.mxu0 0
  %235 = vmatpush1.bf16.msra.mxu0 0
  %236 = vmatprep.subr.bf16.mxu0 0
  %237 = vmatpush1.bf16.msra.mxu0 0
  %238 = vmatprep.subr.bf16.mxu0 0
  %239 = vmatpush1.bf16.msra.mxu0 0
  %240 = vmatprep.subr.bf16.mxu0 0
  %241 = vmatpush1.bf16.msra.mxu0 0
  %242 = vmatprep.subr.bf16.mxu0 0
  %243 = vmatpush1.bf16.msra.mxu0 0
  %244 = vmatprep.subr.bf16.mxu0 0
  %245 = vmatpush1.bf16.msra.mxu0 0
  %246 = vmatprep.subr.bf16.mxu0 0
  %247 = vmatpush1.bf16.msra.mxu0 0
  %248 = vmatprep.subr.bf16.mxu0 0
  %249 = vmatpush1.bf16.msra.mxu0 0
  %250 = vmatprep.subr.bf16.mxu0 0
  %251 = vmatpush1.bf16.msra.mxu0 0
  %252 = vmatprep.subr.bf16.mxu0 0
  %253 = vmatpush1.bf16.msra.mxu0 0
  %254 = vmatprep.subr.bf16.mxu0 0
  %255 = vmatpush1.bf16.msra.mxu0 0
  %256 = vmatprep.mubr.bf16.mxu0 0
  %257 = vmatmul.mubr.bf16.gmra.mrb[0].mxu0 %v219
  %v258 = vpop.f32.mrb[0].mxu0
  %v259 = vadd.f32 %v203, %v258
  %v260 = vpop.f32.mrb[0].mxu0
  %v261 = vpop.f32.mrb[0].mxu0
  %v262 = vadd.f32 %v203, %v261
  %v263 = vpop.f32.mrb[0].mxu0
  %264 = vmatprep.mubr.bf16.mxu0 0
  %265 = vmatmul.mubr.bf16.gmra.mrb[0].mxu0 %v222
  %v266 = vpop.f32.mrb[0].mxu0
  %v267 = vadd.f32 %v203, %v266
  %v268 = vpop.f32.mrb[0].mxu0
  %v269 = vpop.f32.mrb[0].mxu0
  %v270 = vadd.f32 %v203, %v269
  %v271 = vpop.f32.mrb[0].mxu0
  %272 = vdwg.mxu0
  %v273 = vpack.c.bf16 %v262, %v259
  %v274 = vpack.c.bf16 %v270, %v267
  %v275 = vld [vmem:[%s3] sm:$0xff]
  %v276 = vld [vmem:[%s3 + $0x8] sm:$0xff]
  %v277 = vld [vmem:[%s3 + $0x10] sm:$0xff]
  %v278 = vld [vmem:[%s3 + $0x18] sm:$0xff]
  %v279 = vld [vmem:[%s4] sm:$0x1]
  %v281 = vlaneseq
  %v282 = vshrl.u32 %v281, 7
  %v283 = vsub.s32 0, %v282
  %v284 = vrot.slane %v279, %v283
  %v286 = vmul.f32 %v259, %v284
  %v287 = vmul.f32 %v262, %v284
  %v288 = vmul.f32 %v267, %v284
  %v289 = vmul.f32 %v270, %v284
  %v290 = vpack.c.bf16 %v287, %v286
  %v291 = vpack.c.bf16 %v289, %v288
  %292 = vrot.lane.b32.xlu0 %v284, 64
  %v293 = vpop.permute.xlu0 %292
  %v295 = vmul.f32 %v259, %v293
  %v296 = vmul.f32 %v262, %v293
  %v297 = vmul.f32 %v267, %v293
  %v298 = vmul.f32 %v270, %v293
  %v299 = vpack.c.bf16 %v296, %v295
  %v300 = vpack.c.bf16 %v298, %v297
  %303 = vrot.lane.b32.xlu0 %v273, 96
  %v304 = vpop.permute.xlu0 %303
  %305 = vrot.lane.b32.xlu0 %v274, 96
  %v306 = vpop.permute.xlu0 %305
  %v308 = vsel %vm217, %v290, 0
  %v311 = vsel %vm217, %v291, 0
  %v314 = vsel %vm217, %v304, 0
  %v317 = vsel %vm217, %v306, 0
  %319 = vmatprep.subr.bf16.mxu0 0
  %320 = vmatpush1.bf16.xpose.msra.mxu0 %v314
  %321 = vmatprep.subr.bf16.mxu0 0
  %322 = vmatpush1.bf16.xpose.msra.mxu0 %v317
  %323 = vmatprep.subr.bf16.mxu0 0
  %324 = vmatpush1.bf16.xpose.msra.mxu0 0
  %325 = vmatprep.subr.bf16.mxu0 0
  %326 = vmatpush1.bf16.xpose.msra.mxu0 0
  %327 = vmatprep.subr.bf16.mxu0 0
  %328 = vmatpush1.bf16.xpose.msra.mxu0 0
  %329 = vmatprep.subr.bf16.mxu0 0
  %330 = vmatpush1.bf16.xpose.msra.mxu0 0
  %331 = vmatprep.subr.bf16.mxu0 0
  %332 = vmatpush1.bf16.xpose.msra.mxu0 0
  %333 = vmatprep.subr.bf16.mxu0 0
  %334 = vmatpush1.bf16.xpose.msra.mxu0 0
  %335 = vmatprep.subr.bf16.mxu0 0
  %336 = vmatpush1.bf16.xpose.msra.mxu0 0
  %337 = vmatprep.subr.bf16.mxu0 0
  %338 = vmatpush1.bf16.xpose.msra.mxu0 0
  %339 = vmatprep.subr.bf16.mxu0 0
  %340 = vmatpush1.bf16.xpose.msra.mxu0 0
  %341 = vmatprep.subr.bf16.mxu0 0
  %342 = vmatpush1.bf16.xpose.msra.mxu0 0
  %343 = vmatprep.subr.bf16.mxu0 0
  %344 = vmatpush1.bf16.xpose.msra.mxu0 0
  %345 = vmatprep.subr.bf16.mxu0 0
  %346 = vmatpush1.bf16.xpose.msra.mxu0 0
  %347 = vmatprep.subr.bf16.mxu0 0
  %348 = vmatpush1.bf16.xpose.msra.mxu0 0
  %349 = vmatprep.subr.bf16.mxu0 0
  %350 = vmatpush1.bf16.xpose.msra.mxu0 0
  %351 = vmatprep.mubr.bf16.mxu0 0
  %352 = vmatmul.mubr.bf16.gmra.mrb[0].mxu0 %v308
  %v353 = vpop.f32.mrb[0].mxu0
  %v354 = vadd.f32 %v275, %v353
  %v355 = vpop.f32.mrb[0].mxu0
  %v356 = vpop.f32.mrb[0].mxu0
  %v357 = vadd.f32 %v276, %v356
  %v358 = vpop.f32.mrb[0].mxu0
  %359 = vmatprep.mubr.bf16.mxu0 0
  %360 = vmatmul.mubr.bf16.gmra.mrb[0].mxu0 %v311
  %v361 = vpop.f32.mrb[0].mxu0
  %v362 = vadd.f32 %v277, %v361
  %v363 = vpop.f32.mrb[0].mxu0
  %v364 = vpop.f32.mrb[0].mxu0
  %v365 = vadd.f32 %v278, %v364
  %v366 = vpop.f32.mrb[0].mxu0
  %367 = vdwg.mxu0
  %v368 = vsel %vm217, %v354, -inf
  %369 = vmax.xlane.f32.xlu0 %v368
  %v370 = vpop.xlane.xlu0 %369
  %v371 = vsel %vm217, %v357, -inf
  %372 = vmax.xlane.f32.xlu0 %v371
  %v373 = vpop.xlane.xlu0 %372
  %v374 = vsel %vm217, %v362, -inf
  %375 = vmax.xlane.f32.xlu0 %v374
  %v376 = vpop.xlane.xlu0 %375
  %v377 = vsel %vm217, %v365, -inf
  %378 = vmax.xlane.f32.xlu0 %v377
  %v379 = vpop.xlane.xlu0 %378
  %v380 = vsub.f32 %v354, %v370
  %v381 = vsub.f32 %v357, %v373
  %v382 = vsub.f32 %v362, %v376
  %v383 = vsub.f32 %v365, %v379
  %v384 = vmul.f32 %v380, 1.442695
  %v385 = vpow.pop %v384
  %v386 = vmul.f32 %v381, 1.442695
  %v387 = vpow.pop %v386
  %v388 = vmul.f32 %v382, 1.442695
  %v389 = vpow.pop %v388
  %v390 = vmul.f32 %v383, 1.442695
  %v391 = vpow.pop %v390
  %v392 = vsel %vm217, %v385, 0.0
  %393 = vadd.xlane.f32.xlu0 %v392
  %v394 = vpop.xlane.xlu0 %393
  %v395 = vsel %vm217, %v387, 0.0
  %396 = vadd.xlane.f32.xlu0 %v395
  %v397 = vpop.xlane.xlu0 %396
  %v398 = vsel %vm217, %v389, 0.0
  %399 = vadd.xlane.f32.xlu0 %v398
  %v400 = vpop.xlane.xlu0 %399
  %v401 = vsel %vm217, %v391, 0.0
  %402 = vadd.xlane.f32.xlu0 %v401
  %v403 = vpop.xlane.xlu0 %402
  %v404 = vrcp.pop %v394
  %v405 = vrcp.pop %v397
  %v406 = vrcp.pop %v400
  %v407 = vrcp.pop %v403
  %v408 = vmul.f32 %v385, %v404
  %v409 = vmul.f32 %v387, %v405
  %v410 = vmul.f32 %v389, %v406
  %v411 = vmul.f32 %v391, %v407
  %v412 = vpack.c.bf16 %v409, %v408
  %v413 = vpack.c.bf16 %v411, %v410
  %s414 = scalar_lea.vmem %s4, 1
  %v415 = vld [vmem:[%s414] sm:$0x1]
  %v417 = vlaneseq
  %v418 = vshrl.u32 %v417, 7
  %v419 = vsub.s32 0, %v418
  %v420 = vrot.slane %v415, %v419
  %v422 = vmul.f32 %v259, %v420
  %v423 = vmul.f32 %v262, %v420
  %v424 = vmul.f32 %v267, %v420
  %v425 = vmul.f32 %v270, %v420
  %v426 = vpack.c.bf16 %v423, %v422
  %v427 = vpack.c.bf16 %v425, %v424
  %428 = vrot.lane.b32.xlu0 %v420, 64
  %v429 = vpop.permute.xlu0 %428
  %v431 = vmul.f32 %v259, %v429
  %v432 = vmul.f32 %v262, %v429
  %v433 = vmul.f32 %v267, %v429
  %v434 = vmul.f32 %v270, %v429
  %v435 = vpack.c.bf16 %v432, %v431
  %v436 = vpack.c.bf16 %v434, %v433
  %v438 = vsel %vm217, %v426, 0
  %v441 = vsel %vm217, %v427, 0
  %443 = vmatprep.subr.bf16.mxu0 0
  %444 = vmatpush1.bf16.xpose.msra.mxu0 %v314
  %445 = vmatprep.subr.bf16.mxu0 0
  %446 = vmatpush1.bf16.xpose.msra.mxu0 %v317
  %447 = vmatprep.subr.bf16.mxu0 0
  %448 = vmatpush1.bf16.xpose.msra.mxu0 0
  %449 = vmatprep.subr.bf16.mxu0 0
  %450 = vmatpush1.bf16.xpose.msra.mxu0 0
  %451 = vmatprep.subr.bf16.mxu0 0
  %452 = vmatpush1.bf16.xpose.msra.mxu0 0
  %453 = vmatprep.subr.bf16.mxu0 0
  %454 = vmatpush1.bf16.xpose.msra.mxu0 0
  %455 = vmatprep.subr.bf16.mxu0 0
  %456 = vmatpush1.bf16.xpose.msra.mxu0 0
  %457 = vmatprep.subr.bf16.mxu0 0
  %458 = vmatpush1.bf16.xpose.msra.mxu0 0
  %459 = vmatprep.subr.bf16.mxu0 0
  %460 = vmatpush1.bf16.xpose.msra.mxu0 0
  %461 = vmatprep.subr.bf16.mxu0 0
  %462 = vmatpush1.bf16.xpose.msra.mxu0 0
  %463 = vmatprep.subr.bf16.mxu0 0
  %464 = vmatpush1.bf16.xpose.msra.mxu0 0
  %465 = vmatprep.subr.bf16.mxu0 0
  %466 = vmatpush1.bf16.xpose.msra.mxu0 0
  %467 = vmatprep.subr.bf16.mxu0 0
  %468 = vmatpush1.bf16.xpose.msra.mxu0 0
  %469 = vmatprep.subr.bf16.mxu0 0
  %470 = vmatpush1.bf16.xpose.msra.mxu0 0
  %471 = vmatprep.subr.bf16.mxu0 0
  %472 = vmatpush1.bf16.xpose.msra.mxu0 0
  %473 = vmatprep.subr.bf16.mxu0 0
  %474 = vmatpush1.bf16.xpose.msra.mxu0 0
  %475 = vmatprep.mubr.bf16.mxu0 0
  %476 = vmatmul.mubr.bf16.gmra.mrb[0].mxu0 %v438
  %v477 = vpop.f32.mrb[0].mxu0
  %v478 = vadd.f32 %v275, %v477
  %v479 = vpop.f32.mrb[0].mxu0
  %v480 = vpop.f32.mrb[0].mxu0
  %v481 = vadd.f32 %v276, %v480
  %v482 = vpop.f32.mrb[0].mxu0
  %483 = vmatprep.mubr.bf16.mxu0 0
  %484 = vmatmul.mubr.bf16.gmra.mrb[0].mxu0 %v441
  %v485 = vpop.f32.mrb[0].mxu0
  %v486 = vadd.f32 %v277, %v485
  %v487 = vpop.f32.mrb[0].mxu0
  %v488 = vpop.f32.mrb[0].mxu0
  %v489 = vadd.f32 %v278, %v488
  %v490 = vpop.f32.mrb[0].mxu0
  %491 = vdwg.mxu0
  %v492 = vsel %vm217, %v478, -inf
  %493 = vmax.xlane.f32.xlu0 %v492
  %v494 = vpop.xlane.xlu0 %493
  %v495 = vsel %vm217, %v481, -inf
  %496 = vmax.xlane.f32.xlu0 %v495
  %v497 = vpop.xlane.xlu0 %496
  %v498 = vsel %vm217, %v486, -inf
  %499 = vmax.xlane.f32.xlu0 %v498
  %v500 = vpop.xlane.xlu0 %499
  %v501 = vsel %vm217, %v489, -inf
  %502 = vmax.xlane.f32.xlu0 %v501
  %v503 = vpop.xlane.xlu0 %502
  %v504 = vsub.f32 %v478, %v494
  %v505 = vsub.f32 %v481, %v497
  %v506 = vsub.f32 %v486, %v500
  %v507 = vsub.f32 %v489, %v503
  %v508 = vmul.f32 %v504, 1.442695
  %v509 = vpow.pop %v508
  %v510 = vmul.f32 %v505, 1.442695
  %v511 = vpow.pop %v510
  %v512 = vmul.f32 %v506, 1.442695
  %v513 = vpow.pop %v512
  %v514 = vmul.f32 %v507, 1.442695
  %v515 = vpow.pop %v514
  %v516 = vsel %vm217, %v509, 0.0
  %517 = vadd.xlane.f32.xlu0 %v516
  %v518 = vpop.xlane.xlu0 %517
  %v519 = vsel %vm217, %v511, 0.0
  %520 = vadd.xlane.f32.xlu0 %v519
  %v521 = vpop.xlane.xlu0 %520
  %v522 = vsel %vm217, %v513, 0.0
  %523 = vadd.xlane.f32.xlu0 %v522
  %v524 = vpop.xlane.xlu0 %523
  %v525 = vsel %vm217, %v515, 0.0
  %526 = vadd.xlane.f32.xlu0 %v525
  %v527 = vpop.xlane.xlu0 %526
  %v528 = vrcp.pop %v518
  %v529 = vrcp.pop %v521
  %v530 = vrcp.pop %v524
  %v531 = vrcp.pop %v527
  %v532 = vmul.f32 %v509, %v528
  %v533 = vmul.f32 %v511, %v529
  %v534 = vmul.f32 %v513, %v530
  %v535 = vmul.f32 %v515, %v531
  %v536 = vpack.c.bf16 %v533, %v532
  %v537 = vpack.c.bf16 %v535, %v534
  %540 = vrot.lane.b32.xlu0 %v435, 64
  %v541 = vpop.permute.xlu0 %540
  %542 = vrot.lane.b32.xlu0 %v436, 64
  %v543 = vpop.permute.xlu0 %542
  %v547 = vsel %vm217, %v536, 0
  %v550 = vsel %vm217, %v537, 0
  %552 = vmatprep.subr.bf16.mxu0 0
  %553 = vmatpush1.bf16.msra.mxu0 %v541
  %554 = vmatprep.subr.bf16.mxu0 0
  %555 = vmatpush1.bf16.msra.mxu0 %v543
  %556 = vmatprep.subr.bf16.mxu0 0
  %557 = vmatpush1.bf16.msra.mxu0 0
  %558 = vmatprep.subr.bf16.mxu0 0
  %559 = vmatpush1.bf16.msra.mxu0 0
  %560 = vmatprep.subr.bf16.mxu0 0
  %561 = vmatpush1.bf16.msra.mxu0 0
  %562 = vmatprep.subr.bf16.mxu0 0
  %563 = vmatpush1.bf16.msra.mxu0 0
  %564 = vmatprep.subr.bf16.mxu0 0
  %565 = vmatpush1.bf16.msra.mxu0 0
  %566 = vmatprep.subr.bf16.mxu0 0
  %567 = vmatpush1.bf16.msra.mxu0 0
  %568 = vmatprep.subr.bf16.mxu0 0
  %569 = vmatpush1.bf16.msra.mxu0 0
  %570 = vmatprep.subr.bf16.mxu0 0
  %571 = vmatpush1.bf16.msra.mxu0 0
  %572 = vmatprep.subr.bf16.mxu0 0
  %573 = vmatpush1.bf16.msra.mxu0 0
  %574 = vmatprep.subr.bf16.mxu0 0
  %575 = vmatpush1.bf16.msra.mxu0 0
  %576 = vmatprep.subr.bf16.mxu0 0
  %577 = vmatpush1.bf16.msra.mxu0 0
  %578 = vmatprep.subr.bf16.mxu0 0
  %579 = vmatpush1.bf16.msra.mxu0 0
  %580 = vmatprep.subr.bf16.mxu0 0
  %581 = vmatpush1.bf16.msra.mxu0 0
  %582 = vmatprep.subr.bf16.mxu0 0
  %583 = vmatpush1.bf16.msra.mxu0 0
  %584 = vmatprep.mubr.bf16.mxu0 0
  %585 = vmatmul.mubr.bf16.gmra.mrb[0].mxu0 %v547
  %v586 = vpop.f32.mrb[0].mxu0
  %v587 = vadd.f32 0.0, %v586
  %v588 = vpop.f32.mrb[0].mxu0
  %v589 = vpop.f32.mrb[0].mxu0
  %v590 = vadd.f32 0.0, %v589
  %v591 = vpop.f32.mrb[0].mxu0
  %592 = vmatprep.mubr.bf16.mxu0 0
  %593 = vmatmul.mubr.bf16.gmra.mrb[0].mxu0 %v550
  %v594 = vpop.f32.mrb[0].mxu0
  %v595 = vadd.f32 0.0, %v594
  %v596 = vpop.f32.mrb[0].mxu0
  %v597 = vpop.f32.mrb[0].mxu0
  %v598 = vadd.f32 0.0, %v597
  %v599 = vpop.f32.mrb[0].mxu0
  %600 = vdwg.mxu0
  %603 = vrot.lane.b32.xlu0 %v299, 64
  %v604 = vpop.permute.xlu0 %603
  %605 = vrot.lane.b32.xlu0 %v300, 64
  %v606 = vpop.permute.xlu0 %605
  %v610 = vsel %vm217, %v412, 0
  %v613 = vsel %vm217, %v413, 0
  %615 = vmatprep.subr.bf16.mxu0 0
  %616 = vmatpush1.bf16.msra.mxu0 %v604
  %617 = vmatprep.subr.bf16.mxu0 0
  %618 = vmatpush1.bf16.msra.mxu0 %v606
  %619 = vmatprep.subr.bf16.mxu0 0
  %620 = vmatpush1.bf16.msra.mxu0 0
  %621 = vmatprep.subr.bf16.mxu0 0
  %622 = vmatpush1.bf16.msra.mxu0 0
  %623 = vmatprep.subr.bf16.mxu0 0
  %624 = vmatpush1.bf16.msra.mxu0 0
  %625 = vmatprep.subr.bf16.mxu0 0
  %626 = vmatpush1.bf16.msra.mxu0 0
  %627 = vmatprep.subr.bf16.mxu0 0
  %628 = vmatpush1.bf16.msra.mxu0 0
  %629 = vmatprep.subr.bf16.mxu0 0
  %630 = vmatpush1.bf16.msra.mxu0 0
  %631 = vmatprep.subr.bf16.mxu0 0
  %632 = vmatpush1.bf16.msra.mxu0 0
  %633 = vmatprep.subr.bf16.mxu0 0
  %634 = vmatpush1.bf16.msra.mxu0 0
  %635 = vmatprep.subr.bf16.mxu0 0
  %636 = vmatpush1.bf16.msra.mxu0 0
  %637 = vmatprep.subr.bf16.mxu0 0
  %638 = vmatpush1.bf16.msra.mxu0 0
  %639 = vmatprep.subr.bf16.mxu0 0
  %640 = vmatpush1.bf16.msra.mxu0 0
  %641 = vmatprep.subr.bf16.mxu0 0
  %642 = vmatpush1.bf16.msra.mxu0 0
  %643 = vmatprep.subr.bf16.mxu0 0
  %644 = vmatpush1.bf16.msra.mxu0 0
  %645 = vmatprep.subr.bf16.mxu0 0
  %646 = vmatpush1.bf16.msra.mxu0 0
  %647 = vmatprep.mubr.bf16.mxu0 0
  %648 = vmatmul.mubr.bf16.gmra.mrb[0].mxu0 %v610
  %v649 = vpop.f32.mrb[0].mxu0
  %v650 = vadd.f32 %v587, %v649
  %v651 = vpop.f32.mrb[0].mxu0
  %v652 = vpop.f32.mrb[0].mxu0
  %v653 = vadd.f32 %v590, %v652
  %v654 = vpop.f32.mrb[0].mxu0
  %655 = vmatprep.mubr.bf16.mxu0 0
  %656 = vmatmul.mubr.bf16.gmra.mrb[0].mxu0 %v613
  %v657 = vpop.f32.mrb[0].mxu0
  %v658 = vadd.f32 %v595, %v657
  %v659 = vpop.f32.mrb[0].mxu0
  %v660 = vpop.f32.mrb[0].mxu0
  %v661 = vadd.f32 %v598, %v660
  %v662 = vpop.f32.mrb[0].mxu0
  %663 = vdwg.mxu0
  %s664 = scalar_lea.vmem %s4, 2
  %v665 = vld [vmem:[%s664] sm:$0x1]
  %v667 = vlaneseq
  %v668 = vshrl.u32 %v667, 7
  %v669 = vsub.s32 0, %v668
  %v670 = vrot.slane %v665, %v669
  %v672 = vmul.f32 %v259, %v670
  %v673 = vmul.f32 %v262, %v670
  %v674 = vmul.f32 %v267, %v670
  %v675 = vmul.f32 %v270, %v670
  %v676 = vpack.c.bf16 %v673, %v672
  %v677 = vpack.c.bf16 %v675, %v674
  %678 = vrot.lane.b32.xlu0 %v670, 64
  %v679 = vpop.permute.xlu0 %678
  %v681 = vmul.f32 %v259, %v679
  %v682 = vmul.f32 %v262, %v679
  %v683 = vmul.f32 %v267, %v679
  %v684 = vmul.f32 %v270, %v679
  %v685 = vpack.c.bf16 %v682, %v681
  %v686 = vpack.c.bf16 %v684, %v683
  %v688 = vsel %vm217, %v676, 0
  %v691 = vsel %vm217, %v677, 0
  %693 = vmatprep.subr.bf16.mxu0 0
  %694 = vmatpush1.bf16.xpose.msra.mxu0 %v314
  %695 = vmatprep.subr.bf16.mxu0 0
  %696 = vmatpush1.bf16.xpose.msra.mxu0 %v317
  %697 = vmatprep.subr.bf16.mxu0 0
  %698 = vmatpush1.bf16.xpose.msra.mxu0 0
  %699 = vmatprep.subr.bf16.mxu0 0
  %700 = vmatpush1.bf16.xpose.msra.mxu0 0
  %701 = vmatprep.subr.bf16.mxu0 0
  %702 = vmatpush1.bf16.xpose.msra.mxu0 0
  %703 = vmatprep.subr.bf16.mxu0 0
  %704 = vmatpush1.bf16.xpose.msra.mxu0 0
  %705 = vmatprep.subr.bf16.mxu0 0
  %706 = vmatpush1.bf16.xpose.msra.mxu0 0
  %707 = vmatprep.subr.bf16.mxu0 0
  %708 = vmatpush1.bf16.xpose.msra.mxu0 0
  %709 = vmatprep.subr.bf16.mxu0 0
  %710 = vmatpush1.bf16.xpose.msra.mxu0 0
  %711 = vmatprep.subr.bf16.mxu0 0
  %712 = vmatpush1.bf16.xpose.msra.mxu0 0
  %713 = vmatprep.subr.bf16.mxu0 0
  %714 = vmatpush1.bf16.xpose.msra.mxu0 0
  %715 = vmatprep.subr.bf16.mxu0 0
  %716 = vmatpush1.bf16.xpose.msra.mxu0 0
  %717 = vmatprep.subr.bf16.mxu0 0
  %718 = vmatpush1.bf16.xpose.msra.mxu0 0
  %719 = vmatprep.subr.bf16.mxu0 0
  %720 = vmatpush1.bf16.xpose.msra.mxu0 0
  %721 = vmatprep.subr.bf16.mxu0 0
  %722 = vmatpush1.bf16.xpose.msra.mxu0 0
  %723 = vmatprep.subr.bf16.mxu0 0
  %724 = vmatpush1.bf16.xpose.msra.mxu0 0
  %725 = vmatprep.mubr.bf16.mxu0 0
  %726 = vmatmul.mubr.bf16.gmra.mrb[0].mxu0 %v688
  %v727 = vpop.f32.mrb[0].mxu0
  %v728 = vadd.f32 %v275, %v727
  %v729 = vpop.f32.mrb[0].mxu0
  %v730 = vpop.f32.mrb[0].mxu0
  %v731 = vadd.f32 %v276, %v730
  %v732 = vpop.f32.mrb[0].mxu0
  %733 = vmatprep.mubr.bf16.mxu0 0
  %734 = vmatmul.mubr.bf16.gmra.mrb[0].mxu0 %v691
  %v735 = vpop.f32.mrb[0].mxu0
  %v736 = vadd.f32 %v277, %v735
  %v737 = vpop.f32.mrb[0].mxu0
  %v738 = vpop.f32.mrb[0].mxu0
  %v739 = vadd.f32 %v278, %v738
  %v740 = vpop.f32.mrb[0].mxu0
  %741 = vdwg.mxu0
  %v742 = vsel %vm217, %v728, -inf
  %743 = vmax.xlane.f32.xlu0 %v742
  %v744 = vpop.xlane.xlu0 %743
  %v745 = vsel %vm217, %v731, -inf
  %746 = vmax.xlane.f32.xlu0 %v745
  %v747 = vpop.xlane.xlu0 %746
  %v748 = vsel %vm217, %v736, -inf
  %749 = vmax.xlane.f32.xlu0 %v748
  %v750 = vpop.xlane.xlu0 %749
  %v751 = vsel %vm217, %v739, -inf
  %752 = vmax.xlane.f32.xlu0 %v751
  %v753 = vpop.xlane.xlu0 %752
  %v754 = vsub.f32 %v728, %v744
  %v755 = vsub.f32 %v731, %v747
  %v756 = vsub.f32 %v736, %v750
  %v757 = vsub.f32 %v739, %v753
  %v758 = vmul.f32 %v754, 1.442695
  %v759 = vpow.pop %v758
  %v760 = vmul.f32 %v755, 1.442695
  %v761 = vpow.pop %v760
  %v762 = vmul.f32 %v756, 1.442695
  %v763 = vpow.pop %v762
  %v764 = vmul.f32 %v757, 1.442695
  %v765 = vpow.pop %v764
  %v766 = vsel %vm217, %v759, 0.0
  %767 = vadd.xlane.f32.xlu0 %v766
  %v768 = vpop.xlane.xlu0 %767
  %v769 = vsel %vm217, %v761, 0.0
  %770 = vadd.xlane.f32.xlu0 %v769
  %v771 = vpop.xlane.xlu0 %770
  %v772 = vsel %vm217, %v763, 0.0
  %773 = vadd.xlane.f32.xlu0 %v772
  %v774 = vpop.xlane.xlu0 %773
  %v775 = vsel %vm217, %v765, 0.0
  %776 = vadd.xlane.f32.xlu0 %v775
  %v777 = vpop.xlane.xlu0 %776
  %v778 = vrcp.pop %v768
  %v779 = vrcp.pop %v771
  %v780 = vrcp.pop %v774
  %v781 = vrcp.pop %v777
  %v782 = vmul.f32 %v759, %v778
  %v783 = vmul.f32 %v761, %v779
  %v784 = vmul.f32 %v763, %v780
  %v785 = vmul.f32 %v765, %v781
  %v786 = vpack.c.bf16 %v783, %v782
  %v787 = vpack.c.bf16 %v785, %v784
  %790 = vrot.lane.b32.xlu0 %v685, 64
  %v791 = vpop.permute.xlu0 %790
  %792 = vrot.lane.b32.xlu0 %v686, 64
  %v793 = vpop.permute.xlu0 %792
  %v797 = vsel %vm217, %v786, 0
  %v800 = vsel %vm217, %v787, 0
  %802 = vmatprep.subr.bf16.mxu0 0
  %803 = vmatpush1.bf16.msra.mxu0 %v791
  %804 = vmatprep.subr.bf16.mxu0 0
  %805 = vmatpush1.bf16.msra.mxu0 %v793
  %806 = vmatprep.subr.bf16.mxu0 0
  %807 = vmatpush1.bf16.msra.mxu0 0
  %808 = vmatprep.subr.bf16.mxu0 0
  %809 = vmatpush1.bf16.msra.mxu0 0
  %810 = vmatprep.subr.bf16.mxu0 0
  %811 = vmatpush1.bf16.msra.mxu0 0
  %812 = vmatprep.subr.bf16.mxu0 0
  %813 = vmatpush1.bf16.msra.mxu0 0
  %814 = vmatprep.subr.bf16.mxu0 0
  %815 = vmatpush1.bf16.msra.mxu0 0
  %816 = vmatprep.subr.bf16.mxu0 0
  %817 = vmatpush1.bf16.msra.mxu0 0
  %818 = vmatprep.subr.bf16.mxu0 0
  %819 = vmatpush1.bf16.msra.mxu0 0
  %820 = vmatprep.subr.bf16.mxu0 0
  %821 = vmatpush1.bf16.msra.mxu0 0
  %822 = vmatprep.subr.bf16.mxu0 0
  %823 = vmatpush1.bf16.msra.mxu0 0
  %824 = vmatprep.subr.bf16.mxu0 0
  %825 = vmatpush1.bf16.msra.mxu0 0
  %826 = vmatprep.subr.bf16.mxu0 0
  %827 = vmatpush1.bf16.msra.mxu0 0
  %828 = vmatprep.subr.bf16.mxu0 0
  %829 = vmatpush1.bf16.msra.mxu0 0
  %830 = vmatprep.subr.bf16.mxu0 0
  %831 = vmatpush1.bf16.msra.mxu0 0
  %832 = vmatprep.subr.bf16.mxu0 0
  %833 = vmatpush1.bf16.msra.mxu0 0
  %834 = vmatprep.mubr.bf16.mxu0 0
  %835 = vmatmul.mubr.bf16.gmra.mrb[0].mxu0 %v797
  %v836 = vpop.f32.mrb[0].mxu0
  %v837 = vadd.f32 0.0, %v836
  %v838 = vpop.f32.mrb[0].mxu0
  %v839 = vpop.f32.mrb[0].mxu0
  %v840 = vadd.f32 0.0, %v839
  %v841 = vpop.f32.mrb[0].mxu0
  %842 = vmatprep.mubr.bf16.mxu0 0
  %843 = vmatmul.mubr.bf16.gmra.mrb[0].mxu0 %v800
  %v844 = vpop.f32.mrb[0].mxu0
  %v845 = vadd.f32 0.0, %v844
  %v846 = vpop.f32.mrb[0].mxu0
  %v847 = vpop.f32.mrb[0].mxu0
  %v848 = vadd.f32 0.0, %v847
  %v849 = vpop.f32.mrb[0].mxu0
  %850 = vdwg.mxu0
  %v851 = vadd.f32 %v650, %v837
  %v852 = vadd.f32 %v653, %v840
  %v853 = vadd.f32 %v658, %v845
  %v854 = vadd.f32 %v661, %v848
  %s855 = scalar_lea.vmem %s4, 3
  %v856 = vld [vmem:[%s855] sm:$0x1]
  %v858 = vlaneseq
  %v859 = vshrl.u32 %v858, 7
  %v860 = vsub.s32 0, %v859
  %v861 = vrot.slane %v856, %v860
  %v863 = vmul.f32 %v259, %v861
  %v864 = vmul.f32 %v262, %v861
  %v865 = vmul.f32 %v267, %v861
  %v866 = vmul.f32 %v270, %v861
  %v867 = vpack.c.bf16 %v864, %v863
  %v868 = vpack.c.bf16 %v866, %v865
  %869 = vrot.lane.b32.xlu0 %v861, 64
  %v870 = vpop.permute.xlu0 %869
  %v872 = vmul.f32 %v259, %v870
  %v873 = vmul.f32 %v262, %v870
  %v874 = vmul.f32 %v267, %v870
  %v875 = vmul.f32 %v270, %v870
  %v876 = vpack.c.bf16 %v873, %v872
  %v877 = vpack.c.bf16 %v875, %v874
  %v879 = vsel %vm217, %v867, 0
  %v882 = vsel %vm217, %v868, 0
  %884 = vmatprep.subr.bf16.mxu0 0
  %885 = vmatpush1.bf16.xpose.msra.mxu0 %v314
  %886 = vmatprep.subr.bf16.mxu0 0
  %887 = vmatpush1.bf16.xpose.msra.mxu0 %v317
  %888 = vmatprep.subr.bf16.mxu0 0
  %889 = vmatpush1.bf16.xpose.msra.mxu0 0
  %890 = vmatprep.subr.bf16.mxu0 0
  %891 = vmatpush1.bf16.xpose.msra.mxu0 0
  %892 = vmatprep.subr.bf16.mxu0 0
  %893 = vmatpush1.bf16.xpose.msra.mxu0 0
  %894 = vmatprep.subr.bf16.mxu0 0
  %895 = vmatpush1.bf16.xpose.msra.mxu0 0
  %896 = vmatprep.subr.bf16.mxu0 0
  %897 = vmatpush1.bf16.xpose.msra.mxu0 0
  %898 = vmatprep.subr.bf16.mxu0 0
  %899 = vmatpush1.bf16.xpose.msra.mxu0 0
  %900 = vmatprep.subr.bf16.mxu0 0
  %901 = vmatpush1.bf16.xpose.msra.mxu0 0
  %902 = vmatprep.subr.bf16.mxu0 0
  %903 = vmatpush1.bf16.xpose.msra.mxu0 0
  %904 = vmatprep.subr.bf16.mxu0 0
  %905 = vmatpush1.bf16.xpose.msra.mxu0 0
  %906 = vmatprep.subr.bf16.mxu0 0
  %907 = vmatpush1.bf16.xpose.msra.mxu0 0
  %908 = vmatprep.subr.bf16.mxu0 0
  %909 = vmatpush1.bf16.xpose.msra.mxu0 0
  %910 = vmatprep.subr.bf16.mxu0 0
  %911 = vmatpush1.bf16.xpose.msra.mxu0 0
  %912 = vmatprep.subr.bf16.mxu0 0
  %913 = vmatpush1.bf16.xpose.msra.mxu0 0
  %914 = vmatprep.subr.bf16.mxu0 0
  %915 = vmatpush1.bf16.xpose.msra.mxu0 0
  %916 = vmatprep.mubr.bf16.mxu0 0
  %917 = vmatmul.mubr.bf16.gmra.mrb[0].mxu0 %v879
  %v918 = vpop.f32.mrb[0].mxu0
  %v919 = vadd.f32 %v275, %v918
  %v920 = vpop.f32.mrb[0].mxu0
  %v921 = vpop.f32.mrb[0].mxu0
  %v922 = vadd.f32 %v276, %v921
  %v923 = vpop.f32.mrb[0].mxu0
  %924 = vmatprep.mubr.bf16.mxu0 0
  %925 = vmatmul.mubr.bf16.gmra.mrb[0].mxu0 %v882
  %v926 = vpop.f32.mrb[0].mxu0
  %v927 = vadd.f32 %v277, %v926
  %v928 = vpop.f32.mrb[0].mxu0
  %v929 = vpop.f32.mrb[0].mxu0
  %v930 = vadd.f32 %v278, %v929
  %v931 = vpop.f32.mrb[0].mxu0
  %932 = vdwg.mxu0
  %v933 = vsel %vm217, %v919, -inf
  %934 = vmax.xlane.f32.xlu0 %v933
  %v935 = vpop.xlane.xlu0 %934
  %v936 = vsel %vm217, %v922, -inf
  %937 = vmax.xlane.f32.xlu0 %v936
  %v938 = vpop.xlane.xlu0 %937
  %v939 = vsel %vm217, %v927, -inf
  %940 = vmax.xlane.f32.xlu0 %v939
  %v941 = vpop.xlane.xlu0 %940
  %v942 = vsel %vm217, %v930, -inf
  %943 = vmax.xlane.f32.xlu0 %v942
  %v944 = vpop.xlane.xlu0 %943
  %v945 = vsub.f32 %v919, %v935
  %v946 = vsub.f32 %v922, %v938
  %v947 = vsub.f32 %v927, %v941
  %v948 = vsub.f32 %v930, %v944
  %v949 = vmul.f32 %v945, 1.442695
  %v950 = vpow.pop %v949
  %v951 = vmul.f32 %v946, 1.442695
  %v952 = vpow.pop %v951
  %v953 = vmul.f32 %v947, 1.442695
  %v954 = vpow.pop %v953
  %v955 = vmul.f32 %v948, 1.442695
  %v956 = vpow.pop %v955
  %v957 = vsel %vm217, %v950, 0.0
  %958 = vadd.xlane.f32.xlu0 %v957
  %v959 = vpop.xlane.xlu0 %958
  %v960 = vsel %vm217, %v952, 0.0
  %961 = vadd.xlane.f32.xlu0 %v960
  %v962 = vpop.xlane.xlu0 %961
  %v963 = vsel %vm217, %v954, 0.0
  %964 = vadd.xlane.f32.xlu0 %v963
  %v965 = vpop.xlane.xlu0 %964
  %v966 = vsel %vm217, %v956, 0.0
  %967 = vadd.xlane.f32.xlu0 %v966
  %v968 = vpop.xlane.xlu0 %967
  %v969 = vrcp.pop %v959
  %v970 = vrcp.pop %v962
  %v971 = vrcp.pop %v965
  %v972 = vrcp.pop %v968
  %v973 = vmul.f32 %v950, %v969
  %v974 = vmul.f32 %v952, %v970
  %v975 = vmul.f32 %v954, %v971
  %v976 = vmul.f32 %v956, %v972
  %v977 = vpack.c.bf16 %v974, %v973
  %v978 = vpack.c.bf16 %v976, %v975
  %981 = vrot.lane.b32.xlu0 %v876, 64
  %v982 = vpop.permute.xlu0 %981
  %983 = vrot.lane.b32.xlu0 %v877, 64
  %v984 = vpop.permute.xlu0 %983
  %v988 = vsel %vm217, %v977, 0
  %v991 = vsel %vm217, %v978, 0
  %993 = vmatprep.subr.bf16.mxu0 0
  %994 = vmatpush1.bf16.msra.mxu0 %v982
  %995 = vmatprep.subr.bf16.mxu0 0
  %996 = vmatpush1.bf16.msra.mxu0 %v984
  %997 = vmatprep.subr.bf16.mxu0 0
  %998 = vmatpush1.bf16.msra.mxu0 0
  %999 = vmatprep.subr.bf16.mxu0 0
  %1000 = vmatpush1.bf16.msra.mxu0 0
  %1001 = vmatprep.subr.bf16.mxu0 0
  %1002 = vmatpush1.bf16.msra.mxu0 0
  %1003 = vmatprep.subr.bf16.mxu0 0
  %1004 = vmatpush1.bf16.msra.mxu0 0
  %1005 = vmatprep.subr.bf16.mxu0 0
  %1006 = vmatpush1.bf16.msra.mxu0 0
  %1007 = vmatprep.subr.bf16.mxu0 0
  %1008 = vmatpush1.bf16.msra.mxu0 0
  %1009 = vmatprep.subr.bf16.mxu0 0
  %1010 = vmatpush1.bf16.msra.mxu0 0
  %1011 = vmatprep.subr.bf16.mxu0 0
  %1012 = vmatpush1.bf16.msra.mxu0 0
  %1013 = vmatprep.subr.bf16.mxu0 0
  %1014 = vmatpush1.bf16.msra.mxu0 0
  %1015 = vmatprep.subr.bf16.mxu0 0
  %1016 = vmatpush1.bf16.msra.mxu0 0
  %1017 = vmatprep.subr.bf16.mxu0 0
  %1018 = vmatpush1.bf16.msra.mxu0 0
  %1019 = vmatprep.subr.bf16.mxu0 0
  %1020 = vmatpush1.bf16.msra.mxu0 0
  %1021 = vmatprep.subr.bf16.mxu0 0
  %1022 = vmatpush1.bf16.msra.mxu0 0
  %1023 = vmatprep.subr.bf16.mxu0 0
  %1024 = vmatpush1.bf16.msra.mxu0 0
  %1025 = vmatprep.mubr.bf16.mxu0 0
  %1026 = vmatmul.mubr.bf16.gmra.mrb[0].mxu0 %v988
  %v1027 = vpop.f32.mrb[0].mxu0
  %v1028 = vadd.f32 0.0, %v1027
  %v1029 = vpop.f32.mrb[0].mxu0
  %v1030 = vpop.f32.mrb[0].mxu0
  %v1031 = vadd.f32 0.0, %v1030
  %v1032 = vpop.f32.mrb[0].mxu0
  %1033 = vmatprep.mubr.bf16.mxu0 0
  %1034 = vmatmul.mubr.bf16.gmra.mrb[0].mxu0 %v991
  %v1035 = vpop.f32.mrb[0].mxu0
  %v1036 = vadd.f32 0.0, %v1035
  %v1037 = vpop.f32.mrb[0].mxu0
  %v1038 = vpop.f32.mrb[0].mxu0
  %v1039 = vadd.f32 0.0, %v1038
  %v1040 = vpop.f32.mrb[0].mxu0
  %1041 = vdwg.mxu0
  %v1042 = vadd.f32 %v851, %v1028
  %v1043 = vadd.f32 %v852, %v1031
  %v1044 = vadd.f32 %v853, %v1036
  %v1045 = vadd.f32 %v854, %v1039
  %v1046 = vpack.c.bf16 %v1043, %v1042
  %v1047 = vpack.c.bf16 %v1045, %v1044
  %v1048 = vld [vmem:[%s7] sm:$0xf]
  %v1049 = vld [vmem:[%s7 + $0x4] sm:$0xf]
  %v1050 = vld [vmem:[%s7 + $0x8] sm:$0xf]
  %v1051 = vld [vmem:[%s7 + $0xc] sm:$0xf]
  %v1052 = vld [vmem:[%s8] sm:$0x1]
  %v1054 = vlaneseq
  %v1055 = vshrl.u32 %v1054, 7
  %v1056 = vsub.s32 0, %v1055
  %v1057 = vrot.slane %v1052, %v1056
  %v1063 = vunpack.c.l.b16 %v1048
  %v1064 = vunpack.c.l.b16 %v1049
  %v1065 = vunpack.c.l.b16 %v1050
  %v1066 = vunpack.c.l.b16 %v1051
  %v1067 = vpack.c.b16 %v1064, %v1063
  %v1068 = vpack.c.b16 %v1066, %v1065
  %v1072 = vsel %vm217, %v1046, 0
  %v1075 = vsel %vm217, %v1047, 0
  %1077 = vmatprep.subr.bf16.mxu0 0
  %1078 = vmatpush1.bf16.msra.mxu0 %v1067
  %1079 = vmatprep.subr.bf16.mxu0 0
  %1080 = vmatpush1.bf16.msra.mxu0 %v1068
  %1081 = vmatprep.subr.bf16.mxu0 0
  %1082 = vmatpush1.bf16.msra.mxu0 0
  %1083 = vmatprep.subr.bf16.mxu0 0
  %1084 = vmatpush1.bf16.msra.mxu0 0
  %1085 = vmatprep.subr.bf16.mxu0 0
  %1086 = vmatpush1.bf16.msra.mxu0 0
  %1087 = vmatprep.subr.bf16.mxu0 0
  %1088 = vmatpush1.bf16.msra.mxu0 0
  %1089 = vmatprep.subr.bf16.mxu0 0
  %1090 = vmatpush1.bf16.msra.mxu0 0
  %1091 = vmatprep.subr.bf16.mxu0 0
  %1092 = vmatpush1.bf16.msra.mxu0 0
  %1093 = vmatprep.subr.bf16.mxu0 0
  %1094 = vmatpush1.bf16.msra.mxu0 0
  %1095 = vmatprep.subr.bf16.mxu0 0
  %1096 = vmatpush1.bf16.msra.mxu0 0
  %1097 = vmatprep.subr.bf16.mxu0 0
  %1098 = vmatpush1.bf16.msra.mxu0 0
  %1099 = vmatprep.subr.bf16.mxu0 0
  %1100 = vmatpush1.bf16.msra.mxu0 0
  %1101 = vmatprep.subr.bf16.mxu0 0
  %1102 = vmatpush1.bf16.msra.mxu0 0
  %1103 = vmatprep.subr.bf16.mxu0 0
  %1104 = vmatpush1.bf16.msra.mxu0 0
  %1105 = vmatprep.subr.bf16.mxu0 0
  %1106 = vmatpush1.bf16.msra.mxu0 0
  %1107 = vmatprep.subr.bf16.mxu0 0
  %1108 = vmatpush1.bf16.msra.mxu0 0
  %1109 = vmatprep.mubr.bf16.mxu0 0
  %1110 = vmatmul.mubr.bf16.gmra.mrb[0].mxu0 %v1072
  %v1111 = vpop.f32.mrb[0].mxu0
  %v1112 = vadd.f32 %v1057, %v1111
  %v1113 = vpop.f32.mrb[0].mxu0
  %v1114 = vpop.f32.mrb[0].mxu0
  %v1115 = vadd.f32 %v1057, %v1114
  %v1116 = vpop.f32.mrb[0].mxu0
  %1117 = vmatprep.mubr.bf16.mxu0 0
  %1118 = vmatmul.mubr.bf16.gmra.mrb[0].mxu0 %v1075
  %v1119 = vpop.f32.mrb[0].mxu0
  %v1120 = vadd.f32 %v1057, %v1119
  %v1121 = vpop.f32.mrb[0].mxu0
  %v1122 = vpop.f32.mrb[0].mxu0
  %v1123 = vadd.f32 %v1057, %v1122
  %v1124 = vpop.f32.mrb[0].mxu0
  %1125 = vdwg.mxu0
  %v1126 = vadd.f32 %v174, %v1112
  %v1127 = vadd.f32 %v179, %v1115
  %v1128 = vadd.f32 %v184, %v1120
  %v1129 = vadd.f32 %v189, %v1123
  %v1130 = vld [vmem:[%s9] sm:$0x1]
  %v1131 = vld [vmem:[%s10] sm:$0x1]
  %v1132 = vsel %vm217, %v1126, 0.0
  %1133 = vadd.xlane.f32.xlu0 %v1132
  %v1134 = vpop.xlane.xlu0 %1133
  %v1135 = vsel %vm217, %v1127, 0.0
  %1136 = vadd.xlane.f32.xlu0 %v1135
  %v1137 = vpop.xlane.xlu0 %1136
  %v1138 = vsel %vm217, %v1128, 0.0
  %1139 = vadd.xlane.f32.xlu0 %v1138
  %v1140 = vpop.xlane.xlu0 %1139
  %v1141 = vsel %vm217, %v1129, 0.0
  %1142 = vadd.xlane.f32.xlu0 %v1141
  %v1143 = vpop.xlane.xlu0 %1142
  %v1144 = vrcp.pop 32.0
  %v1145 = vmul.f32 %v1134, %v1144
  %v1146 = vmul.f32 %v1137, %v1144
  %v1147 = vmul.f32 %v1140, %v1144
  %v1148 = vmul.f32 %v1143, %v1144
  %v1149 = vsub.f32 %v1126, %v1145
  %v1150 = vsub.f32 %v1127, %v1146
  %v1151 = vsub.f32 %v1128, %v1147
  %v1152 = vsub.f32 %v1129, %v1148
  %v1153 = vmul.f32 %v1149, %v1149
  %v1154 = vmul.f32 %v1150, %v1150
  %v1155 = vmul.f32 %v1151, %v1151
  %v1156 = vmul.f32 %v1152, %v1152
  %v1157 = vsel %vm217, %v1153, 0.0
  %1158 = vadd.xlane.f32.xlu0 %v1157
  %v1159 = vpop.xlane.xlu0 %1158
  %v1160 = vsel %vm217, %v1154, 0.0
  %1161 = vadd.xlane.f32.xlu0 %v1160
  %v1162 = vpop.xlane.xlu0 %1161
  %v1163 = vsel %vm217, %v1155, 0.0
  %1164 = vadd.xlane.f32.xlu0 %v1163
  %v1165 = vpop.xlane.xlu0 %1164
  %v1166 = vsel %vm217, %v1156, 0.0
  %1167 = vadd.xlane.f32.xlu0 %v1166
  %v1168 = vpop.xlane.xlu0 %1167
  %v1169 = vmul.f32 %v1159, %v1144
  %v1170 = vmul.f32 %v1162, %v1144
  %v1171 = vmul.f32 %v1165, %v1144
  %v1172 = vmul.f32 %v1168, %v1144
  %v1173 = vadd.f32 %v1169, 1e-05
  %v1174 = vadd.f32 %v1170, 1e-05
  %v1175 = vadd.f32 %v1171, 1e-05
  %v1176 = vadd.f32 %v1172, 1e-05
  %v1177 = vrsqrt.pop %v1173
  %v1178 = vrsqrt.pop %v1174
  %v1179 = vrsqrt.pop %v1175
  %v1180 = vrsqrt.pop %v1176
  %v1181 = vmul.f32 %v1149, %v1177
  %v1182 = vmul.f32 %v1150, %v1178
  %v1183 = vmul.f32 %v1151, %v1179
  %v1184 = vmul.f32 %v1152, %v1180
  %v1186 = vlaneseq
  %v1187 = vshrl.u32 %v1186, 7
  %v1188 = vsub.s32 0, %v1187
  %v1189 = vrot.slane %v1130, %v1188
  %v1191 = vmul.f32 %v1181, %v1189
  %v1192 = vmul.f32 %v1182, %v1189
  %v1193 = vmul.f32 %v1183, %v1189
  %v1194 = vmul.f32 %v1184, %v1189
  %v1196 = vlaneseq
  %v1197 = vshrl.u32 %v1196, 7
  %v1198 = vsub.s32 0, %v1197
  %v1199 = vrot.slane %v1131, %v1198
  %v1201 = vadd.f32 %v1191, %v1199
  %v1202 = vadd.f32 %v1192, %v1199
  %v1203 = vadd.f32 %v1193, %v1199
  %v1204 = vadd.f32 %v1194, %v1199
  %v1205 = vpack.c.bf16 %v1202, %v1201
  %v1206 = vpack.c.bf16 %v1204, %v1203
  %v1207 = vld [vmem:[%s11] sm:$0xff]
  %v1208 = vld [vmem:[%s11 + $0x8] sm:$0xff]
  %v1209 = vld [vmem:[%s11 + $0x10] sm:$0xff]
  %v1210 = vld [vmem:[%s11 + $0x18] sm:$0xff]
  %v1211 = vld [vmem:[%s11 + $0x20] sm:$0xff]
  %v1212 = vld [vmem:[%s11 + $0x28] sm:$0xff]
  %v1213 = vld [vmem:[%s11 + $0x30] sm:$0xff]
  %v1214 = vld [vmem:[%s11 + $0x38] sm:$0xff]
  %v1215 = vld [vmem:[%s11 + $0x40] sm:$0xff]
  %v1216 = vld [vmem:[%s11 + $0x48] sm:$0xff]
  %v1217 = vld [vmem:[%s11 + $0x50] sm:$0xff]
  %v1218 = vld [vmem:[%s11 + $0x58] sm:$0xff]
  %v1219 = vld [vmem:[%s11 + $0x60] sm:$0xff]
  %v1220 = vld [vmem:[%s11 + $0x68] sm:$0xff]
  %v1221 = vld [vmem:[%s11 + $0x70] sm:$0xff]
  %v1222 = vld [vmem:[%s11 + $0x78] sm:$0xff]
  %v1223 = vld [vmem:[%s11 + $0x80] sm:$0xff]
  %v1224 = vld [vmem:[%s11 + $0x88] sm:$0xff]
  %v1225 = vld [vmem:[%s11 + $0x90] sm:$0xff]
  %v1226 = vld [vmem:[%s11 + $0x98] sm:$0xff]
  %v1227 = vld [vmem:[%s11 + $0xa0] sm:$0xff]
  %v1228 = vld [vmem:[%s11 + $0xa8] sm:$0xff]
  %v1229 = vld [vmem:[%s11 + $0xb0] sm:$0xff]
  %v1230 = vld [vmem:[%s11 + $0xb8] sm:$0xff]
  %v1231 = vld [vmem:[%s11 + $0xc0] sm:$0xff]
  %v1232 = vld [vmem:[%s11 + $0xc8] sm:$0xff]
  %v1233 = vld [vmem:[%s11 + $0xd0] sm:$0xff]
  %v1234 = vld [vmem:[%s11 + $0xd8] sm:$0xff]
  %v1235 = vld [vmem:[%s11 + $0xe0] sm:$0xff]
  %v1236 = vld [vmem:[%s11 + $0xe8] sm:$0xff]
  %v1237 = vld [vmem:[%s11 + $0xf0] sm:$0xff]
  %v1238 = vld [vmem:[%s11 + $0xf8] sm:$0xff]
  %v1239 = vld [vmem:[%s12] sm:$0xff]
  %v1240 = vld [vmem:[%s12 + $0x8] sm:$0xff]
  %v1243 = vlaneseq
  %v1244 = vshrl.u32 %v1243, 7
  %v1245 = vsub.s32 0, %v1244
  %v1246 = vrot.slane %v1239, %v1245
  %v1247 = vlaneseq
  %v1248 = vshrl.u32 %v1247, 7
  %v1249 = vsub.s32 1, %v1248
  %v1250 = vrot.slane %v1239, %v1249
  %v1251 = vlaneseq
  %v1252 = vshrl.u32 %v1251, 7
  %v1253 = vsub.s32 2, %v1252
  %v1254 = vrot.slane %v1239, %v1253
  %v1255 = vlaneseq
  %v1256 = vshrl.u32 %v1255, 7
  %v1257 = vsub.s32 3, %v1256
  %v1258 = vrot.slane %v1239, %v1257
  %v1259 = vlaneseq
  %v1260 = vshrl.u32 %v1259, 7
  %v1261 = vsub.s32 4, %v1260
  %v1262 = vrot.slane %v1239, %v1261
  %v1263 = vlaneseq
  %v1264 = vshrl.u32 %v1263, 7
  %v1265 = vsub.s32 5, %v1264
  %v1266 = vrot.slane %v1239, %v1265
  %v1267 = vlaneseq
  %v1268 = vshrl.u32 %v1267, 7
  %v1269 = vsub.s32 6, %v1268
  %v1270 = vrot.slane %v1239, %v1269
  %v1271 = vlaneseq
  %v1272 = vshrl.u32 %v1271, 7
  %v1273 = vsub.s32 7, %v1272
  %v1274 = vrot.slane %v1239, %v1273
  %v1275 = vlaneseq
  %v1276 = vshrl.u32 %v1275, 7
  %v1277 = vsub.s32 0, %v1276
  %v1278 = vrot.slane %v1240, %v1277
  %v1279 = vlaneseq
  %v1280 = vshrl.u32 %v1279, 7
  %v1281 = vsub.s32 1, %v1280
  %v1282 = vrot.slane %v1240, %v1281
  %v1283 = vlaneseq
  %v1284 = vshrl.u32 %v1283, 7
  %v1285 = vsub.s32 2, %v1284
  %v1286 = vrot.slane %v1240, %v1285
  %v1287 = vlaneseq
  %v1288 = vshrl.u32 %v1287, 7
  %v1289 = vsub.s32 3, %v1288
  %v1290 = vrot.slane %v1240, %v1289
  %v1291 = vlaneseq
  %v1292 = vshrl.u32 %v1291, 7
  %v1293 = vsub.s32 4, %v1292
  %v1294 = vrot.slane %v1240, %v1293
  %v1295 = vlaneseq
  %v1296 = vshrl.u32 %v1295, 7
  %v1297 = vsub.s32 5, %v1296
  %v1298 = vrot.slane %v1240, %v1297
  %v1299 = vlaneseq
  %v1300 = vshrl.u32 %v1299, 7
  %v1301 = vsub.s32 6, %v1300
  %v1302 = vrot.slane %v1240, %v1301
  %v1303 = vlaneseq
  %v1304 = vshrl.u32 %v1303, 7
  %v1305 = vsub.s32 7, %v1304
  %v1306 = vrot.slane %v1240, %v1305
  %v1355 = vunpack.c.l.b16 %v1207
  %v1356 = vunpack.c.h.b16 %v1207
  %v1357 = vunpack.c.l.b16 %v1208
  %v1358 = vunpack.c.h.b16 %v1208
  %v1359 = vunpack.c.l.b16 %v1209
  %v1360 = vunpack.c.h.b16 %v1209
  %v1361 = vunpack.c.l.b16 %v1210
  %v1362 = vunpack.c.h.b16 %v1210
  %v1363 = vunpack.c.l.b16 %v1211
  %v1364 = vunpack.c.h.b16 %v1211
  %v1365 = vunpack.c.l.b16 %v1212
  %v1366 = vunpack.c.h.b16 %v1212
  %v1367 = vunpack.c.l.b16 %v1213
  %v1368 = vunpack.c.h.b16 %v1213
  %v1369 = vunpack.c.l.b16 %v1214
  %v1370 = vunpack.c.h.b16 %v1214
  %v1371 = vunpack.c.l.b16 %v1215
  %v1372 = vunpack.c.h.b16 %v1215
  %v1373 = vunpack.c.l.b16 %v1216
  %v1374 = vunpack.c.h.b16 %v1216
  %v1375 = vunpack.c.l.b16 %v1217
  %v1376 = vunpack.c.h.b16 %v1217
  %v1377 = vunpack.c.l.b16 %v1218
  %v1378 = vunpack.c.h.b16 %v1218
  %v1379 = vunpack.c.l.b16 %v1219
  %v1380 = vunpack.c.h.b16 %v1219
  %v1381 = vunpack.c.l.b16 %v1220
  %v1382 = vunpack.c.h.b16 %v1220
  %v1383 = vunpack.c.l.b16 %v1221
  %v1384 = vunpack.c.h.b16 %v1221
  %v1385 = vunpack.c.l.b16 %v1222
  %v1386 = vunpack.c.h.b16 %v1222
  %v1387 = vunpack.c.l.b16 %v1223
  %v1388 = vunpack.c.h.b16 %v1223
  %v1389 = vunpack.c.l.b16 %v1224
  %v1390 = vunpack.c.h.b16 %v1224
  %v1391 = vunpack.c.l.b16 %v1225
  %v1392 = vunpack.c.h.b16 %v1225
  %v1393 = vunpack.c.l.b16 %v1226
  %v1394 = vunpack.c.h.b16 %v1226
  %v1395 = vunpack.c.l.b16 %v1227
  %v1396 = vunpack.c.h.b16 %v1227
  %v1397 = vunpack.c.l.b16 %v1228
  %v1398 = vunpack.c.h.b16 %v1228
  %v1399 = vunpack.c.l.b16 %v1229
  %v1400 = vunpack.c.h.b16 %v1229
  %v1401 = vunpack.c.l.b16 %v1230
  %v1402 = vunpack.c.h.b16 %v1230
  %v1403 = vunpack.c.l.b16 %v1231
  %v1404 = vunpack.c.h.b16 %v1231
  %v1405 = vunpack.c.l.b16 %v1232
  %v1406 = vunpack.c.h.b16 %v1232
  %v1407 = vunpack.c.l.b16 %v1233
  %v1408 = vunpack.c.h.b16 %v1233
  %v1409 = vunpack.c.l.b16 %v1234
  %v1410 = vunpack.c.h.b16 %v1234
  %v1411 = vunpack.c.l.b16 %v1235
  %v1412 = vunpack.c.h.b16 %v1235
  %v1413 = vunpack.c.l.b16 %v1236
  %v1414 = vunpack.c.h.b16 %v1236
  %v1415 = vunpack.c.l.b16 %v1237
  %v1416 = vunpack.c.h.b16 %v1237
  %v1417 = vunpack.c.l.b16 %v1238
  %v1418 = vunpack.c.h.b16 %v1238
  %v1419 = vpack.c.b16 %v1371, %v1355
  %v1420 = vpack.c.b16 %v1372, %v1356
  %v1421 = vpack.c.b16 %v1373, %v1357
  %v1422 = vpack.c.b16 %v1374, %v1358
  %v1423 = vpack.c.b16 %v1375, %v1359
  %v1424 = vpack.c.b16 %v1376, %v1360
  %v1425 = vpack.c.b16 %v1377, %v1361
  %v1426 = vpack.c.b16 %v1378, %v1362
  %v1427 = vpack.c.b16 %v1379, %v1363
  %v1428 = vpack.c.b16 %v1380, %v1364
  %v1429 = vpack.c.b16 %v1381, %v1365
  %v1430 = vpack.c.b16 %v1382, %v1366
  %v1431 = vpack.c.b16 %v1383, %v1367
  %v1432 = vpack.c.b16 %v1384, %v1368
  %v1433 = vpack.c.b16 %v1385, %v1369
  %v1434 = vpack.c.b16 %v1386, %v1370
  %v1435 = vpack.c.b16 %v1403, %v1387
  %v1436 = vpack.c.b16 %v1404, %v1388
  %v1437 = vpack.c.b16 %v1405, %v1389
  %v1438 = vpack.c.b16 %v1406, %v1390
  %v1439 = vpack.c.b16 %v1407, %v1391
  %v1440 = vpack.c.b16 %v1408, %v1392
  %v1441 = vpack.c.b16 %v1409, %v1393
  %v1442 = vpack.c.b16 %v1410, %v1394
  %v1443 = vpack.c.b16 %v1411, %v1395
  %v1444 = vpack.c.b16 %v1412, %v1396
  %v1445 = vpack.c.b16 %v1413, %v1397
  %v1446 = vpack.c.b16 %v1414, %v1398
  %v1447 = vpack.c.b16 %v1415, %v1399
  %v1448 = vpack.c.b16 %v1416, %v1400
  %v1449 = vpack.c.b16 %v1417, %v1401
  %v1450 = vpack.c.b16 %v1418, %v1402
  %v1484 = vsel %vm217, %v1205, 0
  %v1487 = vsel %vm217, %v1206, 0
  %1489 = vmatprep.subr.bf16.mxu0 %v1420
  %1490 = vmatpush1.bf16.msra.mxu0 %v1419
  %1491 = vmatprep.subr.bf16.mxu0 %v1436
  %1492 = vmatpush1.bf16.msra.mxu0 %v1435
  %1493 = vmatprep.subr.bf16.mxu0 0
  %1494 = vmatpush1.bf16.msra.mxu0 0
  %1495 = vmatprep.subr.bf16.mxu0 0
  %1496 = vmatpush1.bf16.msra.mxu0 0
  %1497 = vmatprep.subr.bf16.mxu0 0
  %1498 = vmatpush1.bf16.msra.mxu0 0
  %1499 = vmatprep.subr.bf16.mxu0 0
  %1500 = vmatpush1.bf16.msra.mxu0 0
  %1501 = vmatprep.subr.bf16.mxu0 0
  %1502 = vmatpush1.bf16.msra.mxu0 0
  %1503 = vmatprep.subr.bf16.mxu0 0
  %1504 = vmatpush1.bf16.msra.mxu0 0
  %1505 = vmatprep.subr.bf16.mxu0 0
  %1506 = vmatpush1.bf16.msra.mxu0 0
  %1507 = vmatprep.subr.bf16.mxu0 0
  %1508 = vmatpush1.bf16.msra.mxu0 0
  %1509 = vmatprep.subr.bf16.mxu0 0
  %1510 = vmatpush1.bf16.msra.mxu0 0
  %1511 = vmatprep.subr.bf16.mxu0 0
  %1512 = vmatpush1.bf16.msra.mxu0 0
  %1513 = vmatprep.subr.bf16.mxu0 0
  %1514 = vmatpush1.bf16.msra.mxu0 0
  %1515 = vmatprep.subr.bf16.mxu0 0
  %1516 = vmatpush1.bf16.msra.mxu0 0
  %1517 = vmatprep.subr.bf16.mxu0 0
  %1518 = vmatpush1.bf16.msra.mxu0 0
  %1519 = vmatprep.subr.bf16.mxu0 0
  %1520 = vmatpush1.bf16.msra.mxu0 0
  %1521 = vmatprep.mubr.bf16.mxu0 0
  %1522 = vmatmul.mubr.bf16.gmra.mrb[0].mxu0 %v1484
  %v1523 = vpop.f32.mrb[0].mxu0
  %v1524 = vadd.f32 %v1246, %v1523
  %v1525 = vpop.f32.mrb[0].mxu0
  %v1526 = vadd.f32 %v1250, %v1525
  %v1527 = vpop.f32.mrb[0].mxu0
  %v1528 = vadd.f32 %v1246, %v1527
  %v1529 = vpop.f32.mrb[0].mxu0
  %v1530 = vadd.f32 %v1250, %v1529
  %1531 = vmatprep.mubr.bf16.mxu0 0
  %1532 = vmatmul.mubr.bf16.gmra.mrb[0].mxu0 %v1487
  %v1533 = vpop.f32.mrb[0].mxu0
  %v1534 = vadd.f32 %v1246, %v1533
  %v1535 = vpop.f32.mrb[0].mxu0
  %v1536 = vadd.f32 %v1250, %v1535
  %v1537 = vpop.f32.mrb[0].mxu0
  %v1538 = vadd.f32 %v1246, %v1537
  %v1539 = vpop.f32.mrb[0].mxu0
  %v1540 = vadd.f32 %v1250, %v1539
  %1541 = vdwg.mxu0
  %1542 = vmatprep.subr.bf16.mxu0 %v1422
  %1543 = vmatpush1.bf16.msra.mxu0 %v1421
  %1544 = vmatprep.subr.bf16.mxu0 %v1438
  %1545 = vmatpush1.bf16.msra.mxu0 %v1437
  %1546 = vmatprep.subr.bf16.mxu0 0
  %1547 = vmatpush1.bf16.msra.mxu0 0
  %1548 = vmatprep.subr.bf16.mxu0 0
  %1549 = vmatpush1.bf16.msra.mxu0 0
  %1550 = vmatprep.subr.bf16.mxu0 0
  %1551 = vmatpush1.bf16.msra.mxu0 0
  %1552 = vmatprep.subr.bf16.mxu0 0
  %1553 = vmatpush1.bf16.msra.mxu0 0
  %1554 = vmatprep.subr.bf16.mxu0 0
  %1555 = vmatpush1.bf16.msra.mxu0 0
  %1556 = vmatprep.subr.bf16.mxu0 0
  %1557 = vmatpush1.bf16.msra.mxu0 0
  %1558 = vmatprep.subr.bf16.mxu0 0
  %1559 = vmatpush1.bf16.msra.mxu0 0
  %1560 = vmatprep.subr.bf16.mxu0 0
  %1561 = vmatpush1.bf16.msra.mxu0 0
  %1562 = vmatprep.subr.bf16.mxu0 0
  %1563 = vmatpush1.bf16.msra.mxu0 0
  %1564 = vmatprep.subr.bf16.mxu0 0
  %1565 = vmatpush1.bf16.msra.mxu0 0
  %1566 = vmatprep.subr.bf16.mxu0 0
  %1567 = vmatpush1.bf16.msra.mxu0 0
  %1568 = vmatprep.subr.bf16.mxu0 0
  %1569 = vmatpush1.bf16.msra.mxu0 0
  %1570 = vmatprep.subr.bf16.mxu0 0
  %1571 = vmatpush1.bf16.msra.mxu0 0
  %1572 = vmatprep.subr.bf16.mxu0 0
  %1573 = vmatpush1.bf16.msra.mxu0 0
  %1574 = vmatprep.mubr.bf16.mxu0 0
  %1575 = vmatmul.mubr.bf16.gmra.mrb[0].mxu0 %v1484
  %v1576 = vpop.f32.mrb[0].mxu0
  %v1577 = vadd.f32 %v1254, %v1576
  %v1578 = vpop.f32.mrb[0].mxu0
  %v1579 = vadd.f32 %v1258, %v1578
  %v1580 = vpop.f32.mrb[0].mxu0
  %v1581 = vadd.f32 %v1254, %v1580
  %v1582 = vpop.f32.mrb[0].mxu0
  %v1583 = vadd.f32 %v1258, %v1582
  %1584 = vmatprep.mubr.bf16.mxu0 0
  %1585 = vmatmul.mubr.bf16.gmra.mrb[0].mxu0 %v1487
  %v1586 = vpop.f32.mrb[0].mxu0
  %v1587 = vadd.f32 %v1254, %v1586
  %v1588 = vpop.f32.mrb[0].mxu0
  %v1589 = vadd.f32 %v1258, %v1588
  %v1590 = vpop.f32.mrb[0].mxu0
  %v1591 = vadd.f32 %v1254, %v1590
  %v1592 = vpop.f32.mrb[0].mxu0
  %v1593 = vadd.f32 %v1258, %v1592
  %1594 = vdwg.mxu0
  %1595 = vmatprep.subr.bf16.mxu0 %v1424
  %1596 = vmatpush1.bf16.msra.mxu0 %v1423
  %1597 = vmatprep.subr.bf16.mxu0 %v1440
  %1598 = vmatpush1.bf16.msra.mxu0 %v1439
  %1599 = vmatprep.subr.bf16.mxu0 0
  %1600 = vmatpush1.bf16.msra.mxu0 0
  %1601 = vmatprep.subr.bf16.mxu0 0
  %1602 = vmatpush1.bf16.msra.mxu0 0
  %1603 = vmatprep.subr.bf16.mxu0 0
  %1604 = vmatpush1.bf16.msra.mxu0 0
  %1605 = vmatprep.subr.bf16.mxu0 0
  %1606 = vmatpush1.bf16.msra.mxu0 0
  %1607 = vmatprep.subr.bf16.mxu0 0
  %1608 = vmatpush1.bf16.msra.mxu0 0
  %1609 = vmatprep.subr.bf16.mxu0 0
  %1610 = vmatpush1.bf16.msra.mxu0 0
  %1611 = vmatprep.subr.bf16.mxu0 0
  %1612 = vmatpush1.bf16.msra.mxu0 0
  %1613 = vmatprep.subr.bf16.mxu0 0
  %1614 = vmatpush1.bf16.msra.mxu0 0
  %1615 = vmatprep.subr.bf16.mxu0 0
  %1616 = vmatpush1.bf16.msra.mxu0 0
  %1617 = vmatprep.subr.bf16.mxu0 0
  %1618 = vmatpush1.bf16.msra.mxu0 0
  %1619 = vmatprep.subr.bf16.mxu0 0
  %1620 = vmatpush1.bf16.msra.mxu0 0
  %1621 = vmatprep.subr.bf16.mxu0 0
  %1622 = vmatpush1.bf16.msra.mxu0 0
  %1623 = vmatprep.subr.bf16.mxu0 0
  %1624 = vmatpush1.bf16.msra.mxu0 0
  %1625 = vmatprep.subr.bf16.mxu0 0
  %1626 = vmatpush1.bf16.msra.mxu0 0
  %1627 = vmatprep.mubr.bf16.mxu0 0
  %1628 = vmatmul.mubr.bf16.gmra.mrb[0].mxu0 %v1484
  %v1629 = vpop.f32.mrb[0].mxu0
  %v1630 = vadd.f32 %v1262, %v1629
  %v1631 = vpop.f32.mrb[0].mxu0
  %v1632 = vadd.f32 %v1266, %v1631
  %v1633 = vpop.f32.mrb[0].mxu0
  %v1634 = vadd.f32 %v1262, %v1633
  %v1635 = vpop.f32.mrb[0].mxu0
  %v1636 = vadd.f32 %v1266, %v1635
  %1637 = vmatprep.mubr.bf16.mxu0 0
  %1638 = vmatmul.mubr.bf16.gmra.mrb[0].mxu0 %v1487
  %v1639 = vpop.f32.mrb[0].mxu0
  %v1640 = vadd.f32 %v1262, %v1639
  %v1641 = vpop.f32.mrb[0].mxu0
  %v1642 = vadd.f32 %v1266, %v1641
  %v1643 = vpop.f32.mrb[0].mxu0
  %v1644 = vadd.f32 %v1262, %v1643
  %v1645 = vpop.f32.mrb[0].mxu0
  %v1646 = vadd.f32 %v1266, %v1645
  %1647 = vdwg.mxu0
  %1648 = vmatprep.subr.bf16.mxu0 %v1426
  %1649 = vmatpush1.bf16.msra.mxu0 %v1425
  %1650 = vmatprep.subr.bf16.mxu0 %v1442
  %1651 = vmatpush1.bf16.msra.mxu0 %v1441
  %1652 = vmatprep.subr.bf16.mxu0 0
  %1653 = vmatpush1.bf16.msra.mxu0 0
  %1654 = vmatprep.subr.bf16.mxu0 0
  %1655 = vmatpush1.bf16.msra.mxu0 0
  %1656 = vmatprep.subr.bf16.mxu0 0
  %1657 = vmatpush1.bf16.msra.mxu0 0
  %1658 = vmatprep.subr.bf16.mxu0 0
  %1659 = vmatpush1.bf16.msra.mxu0 0
  %1660 = vmatprep.subr.bf16.mxu0 0
  %1661 = vmatpush1.bf16.msra.mxu0 0
  %1662 = vmatprep.subr.bf16.mxu0 0
  %1663 = vmatpush1.bf16.msra.mxu0 0
  %1664 = vmatprep.subr.bf16.mxu0 0
  %1665 = vmatpush1.bf16.msra.mxu0 0
  %1666 = vmatprep.subr.bf16.mxu0 0
  %1667 = vmatpush1.bf16.msra.mxu0 0
  %1668 = vmatprep.subr.bf16.mxu0 0
  %1669 = vmatpush1.bf16.msra.mxu0 0
  %1670 = vmatprep.subr.bf16.mxu0 0
  %1671 = vmatpush1.bf16.msra.mxu0 0
  %1672 = vmatprep.subr.bf16.mxu0 0
  %1673 = vmatpush1.bf16.msra.mxu0 0
  %1674 = vmatprep.subr.bf16.mxu0 0
  %1675 = vmatpush1.bf16.msra.mxu0 0
  %1676 = vmatprep.subr.bf16.mxu0 0
  %1677 = vmatpush1.bf16.msra.mxu0 0
  %1678 = vmatprep.subr.bf16.mxu0 0
  %1679 = vmatpush1.bf16.msra.mxu0 0
  %1680 = vmatprep.mubr.bf16.mxu0 0
  %1681 = vmatmul.mubr.bf16.gmra.mrb[0].mxu0 %v1484
  %v1682 = vpop.f32.mrb[0].mxu0
  %v1683 = vadd.f32 %v1270, %v1682
  %v1684 = vpop.f32.mrb[0].mxu0
  %v1685 = vadd.f32 %v1274, %v1684
  %v1686 = vpop.f32.mrb[0].mxu0
  %v1687 = vadd.f32 %v1270, %v1686
  %v1688 = vpop.f32.mrb[0].mxu0
  %v1689 = vadd.f32 %v1274, %v1688
  %1690 = vmatprep.mubr.bf16.mxu0 0
  %1691 = vmatmul.mubr.bf16.gmra.mrb[0].mxu0 %v1487
  %v1692 = vpop.f32.mrb[0].mxu0
  %v1693 = vadd.f32 %v1270, %v1692
  %v1694 = vpop.f32.mrb[0].mxu0
  %v1695 = vadd.f32 %v1274, %v1694
  %v1696 = vpop.f32.mrb[0].mxu0
  %v1697 = vadd.f32 %v1270, %v1696
  %v1698 = vpop.f32.mrb[0].mxu0
  %v1699 = vadd.f32 %v1274, %v1698
  %1700 = vdwg.mxu0
  %1701 = vmatprep.subr.bf16.mxu0 %v1428
  %1702 = vmatpush1.bf16.msra.mxu0 %v1427
  %1703 = vmatprep.subr.bf16.mxu0 %v1444
  %1704 = vmatpush1.bf16.msra.mxu0 %v1443
  %1705 = vmatprep.subr.bf16.mxu0 0
  %1706 = vmatpush1.bf16.msra.mxu0 0
  %1707 = vmatprep.subr.bf16.mxu0 0
  %1708 = vmatpush1.bf16.msra.mxu0 0
  %1709 = vmatprep.subr.bf16.mxu0 0
  %1710 = vmatpush1.bf16.msra.mxu0 0
  %1711 = vmatprep.subr.bf16.mxu0 0
  %1712 = vmatpush1.bf16.msra.mxu0 0
  %1713 = vmatprep.subr.bf16.mxu0 0
  %1714 = vmatpush1.bf16.msra.mxu0 0
  %1715 = vmatprep.subr.bf16.mxu0 0
  %1716 = vmatpush1.bf16.msra.mxu0 0
  %1717 = vmatprep.subr.bf16.mxu0 0
  %1718 = vmatpush1.bf16.msra.mxu0 0
  %1719 = vmatprep.subr.bf16.mxu0 0
  %1720 = vmatpush1.bf16.msra.mxu0 0
  %1721 = vmatprep.subr.bf16.mxu0 0
  %1722 = vmatpush1.bf16.msra.mxu0 0
  %1723 = vmatprep.subr.bf16.mxu0 0
  %1724 = vmatpush1.bf16.msra.mxu0 0
  %1725 = vmatprep.subr.bf16.mxu0 0
  %1726 = vmatpush1.bf16.msra.mxu0 0
  %1727 = vmatprep.subr.bf16.mxu0 0
  %1728 = vmatpush1.bf16.msra.mxu0 0
  %1729 = vmatprep.subr.bf16.mxu0 0
  %1730 = vmatpush1.bf16.msra.mxu0 0
  %1731 = vmatprep.subr.bf16.mxu0 0
  %1732 = vmatpush1.bf16.msra.mxu0 0
  %1733 = vmatprep.mubr.bf16.mxu0 0
  %1734 = vmatmul.mubr.bf16.gmra.mrb[0].mxu0 %v1484
  %v1735 = vpop.f32.mrb[0].mxu0
  %v1736 = vadd.f32 %v1278, %v1735
  %v1737 = vpop.f32.mrb[0].mxu0
  %v1738 = vadd.f32 %v1282, %v1737
  %v1739 = vpop.f32.mrb[0].mxu0
  %v1740 = vadd.f32 %v1278, %v1739
  %v1741 = vpop.f32.mrb[0].mxu0
  %v1742 = vadd.f32 %v1282, %v1741
  %1743 = vmatprep.mubr.bf16.mxu0 0
  %1744 = vmatmul.mubr.bf16.gmra.mrb[0].mxu0 %v1487
  %v1745 = vpop.f32.mrb[0].mxu0
  %v1746 = vadd.f32 %v1278, %v1745
  %v1747 = vpop.f32.mrb[0].mxu0
  %v1748 = vadd.f32 %v1282, %v1747
  %v1749 = vpop.f32.mrb[0].mxu0
  %v1750 = vadd.f32 %v1278, %v1749
  %v1751 = vpop.f32.mrb[0].mxu0
  %v1752 = vadd.f32 %v1282, %v1751
  %1753 = vdwg.mxu0
  %1754 = vmatprep.subr.bf16.mxu0 %v1430
  %1755 = vmatpush1.bf16.msra.mxu0 %v1429
  %1756 = vmatprep.subr.bf16.mxu0 %v1446
  %1757 = vmatpush1.bf16.msra.mxu0 %v1445
  %1758 = vmatprep.subr.bf16.mxu0 0
  %1759 = vmatpush1.bf16.msra.mxu0 0
  %1760 = vmatprep.subr.bf16.mxu0 0
  %1761 = vmatpush1.bf16.msra.mxu0 0
  %1762 = vmatprep.subr.bf16.mxu0 0
  %1763 = vmatpush1.bf16.msra.mxu0 0
  %1764 = vmatprep.subr.bf16.mxu0 0
  %1765 = vmatpush1.bf16.msra.mxu0 0
  %1766 = vmatprep.subr.bf16.mxu0 0
  %1767 = vmatpush1.bf16.msra.mxu0 0
  %1768 = vmatprep.subr.bf16.mxu0 0
  %1769 = vmatpush1.bf16.msra.mxu0 0
  %1770 = vmatprep.subr.bf16.mxu0 0
  %1771 = vmatpush1.bf16.msra.mxu0 0
  %1772 = vmatprep.subr.bf16.mxu0 0
  %1773 = vmatpush1.bf16.msra.mxu0 0
  %1774 = vmatprep.subr.bf16.mxu0 0
  %1775 = vmatpush1.bf16.msra.mxu0 0
  %1776 = vmatprep.subr.bf16.mxu0 0
  %1777 = vmatpush1.bf16.msra.mxu0 0
  %1778 = vmatprep.subr.bf16.mxu0 0
  %1779 = vmatpush1.bf16.msra.mxu0 0
  %1780 = vmatprep.subr.bf16.mxu0 0
  %1781 = vmatpush1.bf16.msra.mxu0 0
  %1782 = vmatprep.subr.bf16.mxu0 0
  %1783 = vmatpush1.bf16.msra.mxu0 0
  %1784 = vmatprep.subr.bf16.mxu0 0
  %1785 = vmatpush1.bf16.msra.mxu0 0
  %1786 = vmatprep.mubr.bf16.mxu0 0
  %1787 = vmatmul.mubr.bf16.gmra.mrb[0].mxu0 %v1484
  %v1788 = vpop.f32.mrb[0].mxu0
  %v1789 = vadd.f32 %v1286, %v1788
  %v1790 = vpop.f32.mrb[0].mxu0
  %v1791 = vadd.f32 %v1290, %v1790
  %v1792 = vpop.f32.mrb[0].mxu0
  %v1793 = vadd.f32 %v1286, %v1792
  %v1794 = vpop.f32.mrb[0].mxu0
  %v1795 = vadd.f32 %v1290, %v1794
  %1796 = vmatprep.mubr.bf16.mxu0 0
  %1797 = vmatmul.mubr.bf16.gmra.mrb[0].mxu0 %v1487
  %v1798 = vpop.f32.mrb[0].mxu0
  %v1799 = vadd.f32 %v1286, %v1798
  %v1800 = vpop.f32.mrb[0].mxu0
  %v1801 = vadd.f32 %v1290, %v1800
  %v1802 = vpop.f32.mrb[0].mxu0
  %v1803 = vadd.f32 %v1286, %v1802
  %v1804 = vpop.f32.mrb[0].mxu0
  %v1805 = vadd.f32 %v1290, %v1804
  %1806 = vdwg.mxu0
  %1807 = vmatprep.subr.bf16.mxu0 %v1432
  %1808 = vmatpush1.bf16.msra.mxu0 %v1431
  %1809 = vmatprep.subr.bf16.mxu0 %v1448
  %1810 = vmatpush1.bf16.msra.mxu0 %v1447
  %1811 = vmatprep.subr.bf16.mxu0 0
  %1812 = vmatpush1.bf16.msra.mxu0 0
  %1813 = vmatprep.subr.bf16.mxu0 0
  %1814 = vmatpush1.bf16.msra.mxu0 0
  %1815 = vmatprep.subr.bf16.mxu0 0
  %1816 = vmatpush1.bf16.msra.mxu0 0
  %1817 = vmatprep.subr.bf16.mxu0 0
  %1818 = vmatpush1.bf16.msra.mxu0 0
  %1819 = vmatprep.subr.bf16.mxu0 0
  %1820 = vmatpush1.bf16.msra.mxu0 0
  %1821 = vmatprep.subr.bf16.mxu0 0
  %1822 = vmatpush1.bf16.msra.mxu0 0
  %1823 = vmatprep.subr.bf16.mxu0 0
  %1824 = vmatpush1.bf16.msra.mxu0 0
  %1825 = vmatprep.subr.bf16.mxu0 0
  %1826 = vmatpush1.bf16.msra.mxu0 0
  %1827 = vmatprep.subr.bf16.mxu0 0
  %1828 = vmatpush1.bf16.msra.mxu0 0
  %1829 = vmatprep.subr.bf16.mxu0 0
  %1830 = vmatpush1.bf16.msra.mxu0 0
  %1831 = vmatprep.subr.bf16.mxu0 0
  %1832 = vmatpush1.bf16.msra.mxu0 0
  %1833 = vmatprep.subr.bf16.mxu0 0
  %1834 = vmatpush1.bf16.msra.mxu0 0
  %1835 = vmatprep.subr.bf16.mxu0 0
  %1836 = vmatpush1.bf16.msra.mxu0 0
  %1837 = vmatprep.subr.bf16.mxu0 0
  %1838 = vmatpush1.bf16.msra.mxu0 0
  %1839 = vmatprep.mubr.bf16.mxu0 0
  %1840 = vmatmul.mubr.bf16.gmra.mrb[0].mxu0 %v1484
  %v1841 = vpop.f32.mrb[0].mxu0
  %v1842 = vadd.f32 %v1294, %v1841
  %v1843 = vpop.f32.mrb[0].mxu0
  %v1844 = vadd.f32 %v1298, %v1843
  %v1845 = vpop.f32.mrb[0].mxu0
  %v1846 = vadd.f32 %v1294, %v1845
  %v1847 = vpop.f32.mrb[0].mxu0
  %v1848 = vadd.f32 %v1298, %v1847
  %1849 = vmatprep.mubr.bf16.mxu0 0
  %1850 = vmatmul.mubr.bf16.gmra.mrb[0].mxu0 %v1487
  %v1851 = vpop.f32.mrb[0].mxu0
  %v1852 = vadd.f32 %v1294, %v1851
  %v1853 = vpop.f32.mrb[0].mxu0
  %v1854 = vadd.f32 %v1298, %v1853
  %v1855 = vpop.f32.mrb[0].mxu0
  %v1856 = vadd.f32 %v1294, %v1855
  %v1857 = vpop.f32.mrb[0].mxu0
  %v1858 = vadd.f32 %v1298, %v1857
  %1859 = vdwg.mxu0
  %1860 = vmatprep.subr.bf16.mxu0 %v1434
  %1861 = vmatpush1.bf16.msra.mxu0 %v1433
  %1862 = vmatprep.subr.bf16.mxu0 %v1450
  %1863 = vmatpush1.bf16.msra.mxu0 %v1449
  %1864 = vmatprep.subr.bf16.mxu0 0
  %1865 = vmatpush1.bf16.msra.mxu0 0
  %1866 = vmatprep.subr.bf16.mxu0 0
  %1867 = vmatpush1.bf16.msra.mxu0 0
  %1868 = vmatprep.subr.bf16.mxu0 0
  %1869 = vmatpush1.bf16.msra.mxu0 0
  %1870 = vmatprep.subr.bf16.mxu0 0
  %1871 = vmatpush1.bf16.msra.mxu0 0
  %1872 = vmatprep.subr.bf16.mxu0 0
  %1873 = vmatpush1.bf16.msra.mxu0 0
  %1874 = vmatprep.subr.bf16.mxu0 0
  %1875 = vmatpush1.bf16.msra.mxu0 0
  %1876 = vmatprep.subr.bf16.mxu0 0
  %1877 = vmatpush1.bf16.msra.mxu0 0
  %1878 = vmatprep.subr.bf16.mxu0 0
  %1879 = vmatpush1.bf16.msra.mxu0 0
  %1880 = vmatprep.subr.bf16.mxu0 0
  %1881 = vmatpush1.bf16.msra.mxu0 0
  %1882 = vmatprep.subr.bf16.mxu0 0
  %1883 = vmatpush1.bf16.msra.mxu0 0
  %1884 = vmatprep.subr.bf16.mxu0 0
  %1885 = vmatpush1.bf16.msra.mxu0 0
  %1886 = vmatprep.subr.bf16.mxu0 0
  %1887 = vmatpush1.bf16.msra.mxu0 0
  %1888 = vmatprep.subr.bf16.mxu0 0
  %1889 = vmatpush1.bf16.msra.mxu0 0
  %1890 = vmatprep.subr.bf16.mxu0 0
  %1891 = vmatpush1.bf16.msra.mxu0 0
  %1892 = vmatprep.mubr.bf16.mxu0 0
  %1893 = vmatmul.mubr.bf16.gmra.mrb[0].mxu0 %v1484
  %v1894 = vpop.f32.mrb[0].mxu0
  %v1895 = vadd.f32 %v1302, %v1894
  %v1896 = vpop.f32.mrb[0].mxu0
  %v1897 = vadd.f32 %v1306, %v1896
  %v1898 = vpop.f32.mrb[0].mxu0
  %v1899 = vadd.f32 %v1302, %v1898
  %v1900 = vpop.f32.mrb[0].mxu0
  %v1901 = vadd.f32 %v1306, %v1900
  %1902 = vmatprep.mubr.bf16.mxu0 0
  %1903 = vmatmul.mubr.bf16.gmra.mrb[0].mxu0 %v1487
  %v1904 = vpop.f32.mrb[0].mxu0
  %v1905 = vadd.f32 %v1302, %v1904
  %v1906 = vpop.f32.mrb[0].mxu0
  %v1907 = vadd.f32 %v1306, %v1906
  %v1908 = vpop.f32.mrb[0].mxu0
  %v1909 = vadd.f32 %v1302, %v1908
  %v1910 = vpop.f32.mrb[0].mxu0
  %v1911 = vadd.f32 %v1306, %v1910
  %1912 = vdwg.mxu0
  %v1913 = vmax.f32 %v1524, 0.0
  %v1914 = vmax.f32 %v1526, 0.0
  %v1915 = vmax.f32 %v1577, 0.0
  %v1916 = vmax.f32 %v1579, 0.0
  %v1917 = vmax.f32 %v1630, 0.0
  %v1918 = vmax.f32 %v1632, 0.0
  %v1919 = vmax.f32 %v1683, 0.0
  %v1920 = vmax.f32 %v1685, 0.0
  %v1921 = vmax.f32 %v1736, 0.0
  %v1922 = vmax.f32 %v1738, 0.0
  %v1923 = vmax.f32 %v1789, 0.0
  %v1924 = vmax.f32 %v1791, 0.0
  %v1925 = vmax.f32 %v1842, 0.0
  %v1926 = vmax.f32 %v1844, 0.0
  %v1927 = vmax.f32 %v1895, 0.0
  %v1928 = vmax.f32 %v1897, 0.0
  %v1929 = vmax.f32 %v1528, 0.0
  %v1930 = vmax.f32 %v1530, 0.0
  %v1931 = vmax.f32 %v1581, 0.0
  %v1932 = vmax.f32 %v1583, 0.0
  %v1933 = vmax.f32 %v1634, 0.0
  %v1934 = vmax.f32 %v1636, 0.0
  %v1935 = vmax.f32 %v1687, 0.0
  %v1936 = vmax.f32 %v1689, 0.0
  %v1937 = vmax.f32 %v1740, 0.0
  %v1938 = vmax.f32 %v1742, 0.0
  %v1939 = vmax.f32 %v1793, 0.0
  %v1940 = vmax.f32 %v1795, 0.0
  %v1941 = vmax.f32 %v1846, 0.0
  %v1942 = vmax.f32 %v1848, 0.0
  %v1943 = vmax.f32 %v1899, 0.0
  %v1944 = vmax.f32 %v1901, 0.0
  %v1945 = vmax.f32 %v1534, 0.0
  %v1946 = vmax.f32 %v1536, 0.0
  %v1947 = vmax.f32 %v1587, 0.0
  %v1948 = vmax.f32 %v1589, 0.0
  %v1949 = vmax.f32 %v1640, 0.0
  %v1950 = vmax.f32 %v1642, 0.0
  %v1951 = vmax.f32 %v1693, 0.0
  %v1952 = vmax.f32 %v1695, 0.0
  %v1953 = vmax.f32 %v1746, 0.0
  %v1954 = vmax.f32 %v1748, 0.0
  %v1955 = vmax.f32 %v1799, 0.0
  %v1956 = vmax.f32 %v1801, 0.0
  %v1957 = vmax.f32 %v1852, 0.0
  %v1958 = vmax.f32 %v1854, 0.0
  %v1959 = vmax.f32 %v1905, 0.0
  %v1960 = vmax.f32 %v1907, 0.0
  %v1961 = vmax.f32 %v1538, 0.0
  %v1962 = vmax.f32 %v1540, 0.0
  %v1963 = vmax.f32 %v1591, 0.0
  %v1964 = vmax.f32 %v1593, 0.0
  %v1965 = vmax.f32 %v1644, 0.0
  %v1966 = vmax.f32 %v1646, 0.0
  %v1967 = vmax.f32 %v1697, 0.0
  %v1968 = vmax.f32 %v1699, 0.0
  %v1969 = vmax.f32 %v1750, 0.0
  %v1970 = vmax.f32 %v1752, 0.0
  %v1971 = vmax.f32 %v1803, 0.0
  %v1972 = vmax.f32 %v1805, 0.0
  %v1973 = vmax.f32 %v1856, 0.0
  %v1974 = vmax.f32 %v1858, 0.0
  %v1975 = vmax.f32 %v1909, 0.0
  %v1976 = vmax.f32 %v1911, 0.0
  %v1977 = vpack.c.bf16 %v1929, %v1913
  %v1978 = vpack.c.bf16 %v1930, %v1914
  %v1979 = vpack.c.bf16 %v1931, %v1915
  %v1980 = vpack.c.bf16 %v1932, %v1916
  %v1981 = vpack.c.bf16 %v1933, %v1917
  %v1982 = vpack.c.bf16 %v1934, %v1918
  %v1983 = vpack.c.bf16 %v1935, %v1919
  %v1984 = vpack.c.bf16 %v1936, %v1920
  %v1985 = vpack.c.bf16 %v1937, %v1921
  %v1986 = vpack.c.bf16 %v1938, %v1922
  %v1987 = vpack.c.bf16 %v1939, %v1923
  %v1988 = vpack.c.bf16 %v1940, %v1924
  %v1989 = vpack.c.bf16 %v1941, %v1925
  %v1990 = vpack.c.bf16 %v1942, %v1926
  %v1991 = vpack.c.bf16 %v1943, %v1927
  %v1992 = vpack.c.bf16 %v1944, %v1928
  %v1993 = vpack.c.bf16 %v1961, %v1945
  %v1994 = vpack.c.bf16 %v1962, %v1946
  %v1995 = vpack.c.bf16 %v1963, %v1947
  %v1996 = vpack.c.bf16 %v1964, %v1948
  %v1997 = vpack.c.bf16 %v1965, %v1949
  %v1998 = vpack.c.bf16 %v1966, %v1950
  %v1999 = vpack.c.bf16 %v1967, %v1951
  %v2000 = vpack.c.bf16 %v1968, %v1952
  %v2001 = vpack.c.bf16 %v1969, %v1953
  %v2002 = vpack.c.bf16 %v1970, %v1954
  %v2003 = vpack.c.bf16 %v1971, %v1955
  %v2004 = vpack.c.bf16 %v1972, %v1956
  %v2005 = vpack.c.bf16 %v1973, %v1957
  %v2006 = vpack.c.bf16 %v1974, %v1958
  %v2007 = vpack.c.bf16 %v1975, %v1959
  %v2008 = vpack.c.bf16 %v1976, %v1960
  %v2009 = vld [vmem:[%s13] sm:$0xf]
  %v2010 = vld [vmem:[%s13 + $0x4] sm:$0xf]
  %v2011 = vld [vmem:[%s13 + $0x8] sm:$0xf]
  %v2012 = vld [vmem:[%s13 + $0xc] sm:$0xf]
  %v2013 = vld [vmem:[%s13 + $0x10] sm:$0xf]
  %v2014 = vld [vmem:[%s13 + $0x14] sm:$0xf]
  %v2015 = vld [vmem:[%s13 + $0x18] sm:$0xf]
  %v2016 = vld [vmem:[%s13 + $0x1c] sm:$0xf]
  %v2017 = vld [vmem:[%s13 + $0x20] sm:$0xf]
  %v2018 = vld [vmem:[%s13 + $0x24] sm:$0xf]
  %v2019 = vld [vmem:[%s13 + $0x28] sm:$0xf]
  %v2020 = vld [vmem:[%s13 + $0x2c] sm:$0xf]
  %v2021 = vld [vmem:[%s13 + $0x30] sm:$0xf]
  %v2022 = vld [vmem:[%s13 + $0x34] sm:$0xf]
  %v2023 = vld [vmem:[%s13 + $0x38] sm:$0xf]
  %v2024 = vld [vmem:[%s13 + $0x3c] sm:$0xf]
  %v2025 = vld [vmem:[%s13 + $0x40] sm:$0xf]
  %v2026 = vld [vmem:[%s13 + $0x44] sm:$0xf]
  %v2027 = vld [vmem:[%s13 + $0x48] sm:$0xf]
  %v2028 = vld [vmem:[%s13 + $0x4c] sm:$0xf]
  %v2029 = vld [vmem:[%s13 + $0x50] sm:$0xf]
  %v2030 = vld [vmem:[%s13 + $0x54] sm:$0xf]
  %v2031 = vld [vmem:[%s13 + $0x58] sm:$0xf]
  %v2032 = vld [vmem:[%s13 + $0x5c] sm:$0xf]
  %v2033 = vld [vmem:[%s13 + $0x60] sm:$0xf]
  %v2034 = vld [vmem:[%s13 + $0x64] sm:$0xf]
  %v2035 = vld [vmem:[%s13 + $0x68] sm:$0xf]
  %v2036 = vld [vmem:[%s13 + $0x6c] sm:$0xf]
  %v2037 = vld [vmem:[%s13 + $0x70] sm:$0xf]
  %v2038 = vld [vmem:[%s13 + $0x74] sm:$0xf]
  %v2039 = vld [vmem:[%s13 + $0x78] sm:$0xf]
  %v2040 = vld [vmem:[%s13 + $0x7c] sm:$0xf]
  %v2041 = vld [vmem:[%s13 + $0x80] sm:$0xf]
  %v2042 = vld [vmem:[%s13 + $0x84] sm:$0xf]
  %v2043 = vld [vmem:[%s13 + $0x88] sm:$0xf]
  %v2044 = vld [vmem:[%s13 + $0x8c] sm:$0xf]
  %v2045 = vld [vmem:[%s13 + $0x90] sm:$0xf]
  %v2046 = vld [vmem:[%s13 + $0x94] sm:$0xf]
  %v2047 = vld [vmem:[%s13 + $0x98] sm:$0xf]
  %v2048 = vld [vmem:[%s13 + $0x9c] sm:$0xf]
  %v2049 = vld [vmem:[%s13 + $0xa0] sm:$0xf]
  %v2050 = vld [vmem:[%s13 + $0xa4] sm:$0xf]
  %v2051 = vld [vmem:[%s13 + $0xa8] sm:$0xf]
  %v2052 = vld [vmem:[%s13 + $0xac] sm:$0xf]
  %v2053 = vld [vmem:[%s13 + $0xb0] sm:$0xf]
  %v2054 = vld [vmem:[%s13 + $0xb4] sm:$0xf]
  %v2055 = vld [vmem:[%s13 + $0xb8] sm:$0xf]
  %v2056 = vld [vmem:[%s13 + $0xbc] sm:$0xf]
  %v2057 = vld [vmem:[%s13 + $0xc0] sm:$0xf]
  %v2058 = vld [vmem:[%s13 + $0xc4] sm:$0xf]
  %v2059 = vld [vmem:[%s13 + $0xc8] sm:$0xf]
  %v2060 = vld [vmem:[%s13 + $0xcc] sm:$0xf]
  %v2061 = vld [vmem:[%s13 + $0xd0] sm:$0xf]
  %v2062 = vld [vmem:[%s13 + $0xd4] sm:$0xf]
  %v2063 = vld [vmem:[%s13 + $0xd8] sm:$0xf]
  %v2064 = vld [vmem:[%s13 + $0xdc] sm:$0xf]
  %v2065 = vld [vmem:[%s13 + $0xe0] sm:$0xf]
  %v2066 = vld [vmem:[%s13 + $0xe4] sm:$0xf]
  %v2067 = vld [vmem:[%s13 + $0xe8] sm:$0xf]
  %v2068 = vld [vmem:[%s13 + $0xec] sm:$0xf]
  %v2069 = vld [vmem:[%s13 + $0xf0] sm:$0xf]
  %v2070 = vld [vmem:[%s13 + $0xf4] sm:$0xf]
  %v2071 = vld [vmem:[%s13 + $0xf8] sm:$0xf]
  %v2072 = vld [vmem:[%s13 + $0xfc] sm:$0xf]
  %v2073 = vld [vmem:[%s13 + $0x100] sm:$0xf]
  %v2074 = vld [vmem:[%s13 + $0x104] sm:$0xf]
  %v2075 = vld [vmem:[%s13 + $0x108] sm:$0xf]
  %v2076 = vld [vmem:[%s13 + $0x10c] sm:$0xf]
  %v2077 = vld [vmem:[%s13 + $0x110] sm:$0xf]
  %v2078 = vld [vmem:[%s13 + $0x114] sm:$0xf]
  %v2079 = vld [vmem:[%s13 + $0x118] sm:$0xf]
  %v2080 = vld [vmem:[%s13 + $0x11c] sm:$0xf]
  %v2081 = vld [vmem:[%s13 + $0x120] sm:$0xf]
  %v2082 = vld [vmem:[%s13 + $0x124] sm:$0xf]
  %v2083 = vld [vmem:[%s13 + $0x128] sm:$0xf]
  %v2084 = vld [vmem:[%s13 + $0x12c] sm:$0xf]
  %v2085 = vld [vmem:[%s13 + $0x130] sm:$0xf]
  %v2086 = vld [vmem:[%s13 + $0x134] sm:$0xf]
  %v2087 = vld [vmem:[%s13 + $0x138] sm:$0xf]
  %v2088 = vld [vmem:[%s13 + $0x13c] sm:$0xf]
  %v2089 = vld [vmem:[%s13 + $0x140] sm:$0xf]
  %v2090 = vld [vmem:[%s13 + $0x144] sm:$0xf]
  %v2091 = vld [vmem:[%s13 + $0x148] sm:$0xf]
  %v2092 = vld [vmem:[%s13 + $0x14c] sm:$0xf]
  %v2093 = vld [vmem:[%s13 + $0x150] sm:$0xf]
  %v2094 = vld [vmem:[%s13 + $0x154] sm:$0xf]
  %v2095 = vld [vmem:[%s13 + $0x158] sm:$0xf]
  %v2096 = vld [vmem:[%s13 + $0x15c] sm:$0xf]
  %v2097 = vld [vmem:[%s13 + $0x160] sm:$0xf]
  %v2098 = vld [vmem:[%s13 + $0x164] sm:$0xf]
  %v2099 = vld [vmem:[%s13 + $0x168] sm:$0xf]
  %v2100 = vld [vmem:[%s13 + $0x16c] sm:$0xf]
  %v2101 = vld [vmem:[%s13 + $0x170] sm:$0xf]
  %v2102 = vld [vmem:[%s13 + $0x174] sm:$0xf]
  %v2103 = vld [vmem:[%s13 + $0x178] sm:$0xf]
  %v2104 = vld [vmem:[%s13 + $0x17c] sm:$0xf]
  %v2105 = vld [vmem:[%s13 + $0x180] sm:$0xf]
  %v2106 = vld [vmem:[%s13 + $0x184] sm:$0xf]
  %v2107 = vld [vmem:[%s13 + $0x188] sm:$0xf]
  %v2108 = vld [vmem:[%s13 + $0x18c] sm:$0xf]
  %v2109 = vld [vmem:[%s13 + $0x190] sm:$0xf]
  %v2110 = vld [vmem:[%s13 + $0x194] sm:$0xf]
  %v2111 = vld [vmem:[%s13 + $0x198] sm:$0xf]
  %v2112 = vld [vmem:[%s13 + $0x19c] sm:$0xf]
  %v2113 = vld [vmem:[%s13 + $0x1a0] sm:$0xf]
  %v2114 = vld [vmem:[%s13 + $0x1a4] sm:$0xf]
  %v2115 = vld [vmem:[%s13 + $0x1a8] sm:$0xf]
  %v2116 = vld [vmem:[%s13 + $0x1ac] sm:$0xf]
  %v2117 = vld [vmem:[%s13 + $0x1b0] sm:$0xf]
  %v2118 = vld [vmem:[%s13 + $0x1b4] sm:$0xf]
  %v2119 = vld [vmem:[%s13 + $0x1b8] sm:$0xf]
  %v2120 = vld [vmem:[%s13 + $0x1bc] sm:$0xf]
  %v2121 = vld [vmem:[%s13 + $0x1c0] sm:$0xf]
  %v2122 = vld [vmem:[%s13 + $0x1c4] sm:$0xf]
  %v2123 = vld [vmem:[%s13 + $0x1c8] sm:$0xf]
  %v2124 = vld [vmem:[%s13 + $0x1cc] sm:$0xf]
  %v2125 = vld [vmem:[%s13 + $0x1d0] sm:$0xf]
  %v2126 = vld [vmem:[%s13 + $0x1d4] sm:$0xf]
  %v2127 = vld [vmem:[%s13 + $0x1d8] sm:$0xf]
  %v2128 = vld [vmem:[%s13 + $0x1dc] sm:$0xf]
  %v2129 = vld [vmem:[%s13 + $0x1e0] sm:$0xf]
  %v2130 = vld [vmem:[%s13 + $0x1e4] sm:$0xf]
  %v2131 = vld [vmem:[%s13 + $0x1e8] sm:$0xf]
  %v2132 = vld [vmem:[%s13 + $0x1ec] sm:$0xf]
  %v2133 = vld [vmem:[%s13 + $0x1f0] sm:$0xf]
  %v2134 = vld [vmem:[%s13 + $0x1f4] sm:$0xf]
  %v2135 = vld [vmem:[%s13 + $0x1f8] sm:$0xf]
  %v2136 = vld [vmem:[%s13 + $0x1fc] sm:$0xf]
  %v2137 = vld [vmem:[%s13 + $0x200] sm:$0xf]
  %v2138 = vld [vmem:[%s13 + $0x204] sm:$0xf]
  %v2139 = vld [vmem:[%s13 + $0x208] sm:$0xf]
  %v2140 = vld [vmem:[%s13 + $0x20c] sm:$0xf]
  %v2141 = vld [vmem:[%s13 + $0x210] sm:$0xf]
  %v2142 = vld [vmem:[%s13 + $0x214] sm:$0xf]
  %v2143 = vld [vmem:[%s13 + $0x218] sm:$0xf]
  %v2144 = vld [vmem:[%s13 + $0x21c] sm:$0xf]
  %v2145 = vld [vmem:[%s13 + $0x220] sm:$0xf]
  %v2146 = vld [vmem:[%s13 + $0x224] sm:$0xf]
  %v2147 = vld [vmem:[%s13 + $0x228] sm:$0xf]
  %v2148 = vld [vmem:[%s13 + $0x22c] sm:$0xf]
  %v2149 = vld [vmem:[%s13 + $0x230] sm:$0xf]
  %v2150 = vld [vmem:[%s13 + $0x234] sm:$0xf]
  %v2151 = vld [vmem:[%s13 + $0x238] sm:$0xf]
  %v2152 = vld [vmem:[%s13 + $0x23c] sm:$0xf]
  %v2153 = vld [vmem:[%s13 + $0x240] sm:$0xf]
  %v2154 = vld [vmem:[%s13 + $0x244] sm:$0xf]
  %v2155 = vld [vmem:[%s13 + $0x248] sm:$0xf]
  %v2156 = vld [vmem:[%s13 + $0x24c] sm:$0xf]
  %v2157 = vld [vmem:[%s13 + $0x250] sm:$0xf]
  %v2158 = vld [vmem:[%s13 + $0x254] sm:$0xf]
  %v2159 = vld [vmem:[%s13 + $0x258] sm:$0xf]
  %v2160 = vld [vmem:[%s13 + $0x25c] sm:$0xf]
  %v2161 = vld [vmem:[%s13 + $0x260] sm:$0xf]
  %v2162 = vld [vmem:[%s13 + $0x264] sm:$0xf]
  %v2163 = vld [vmem:[%s13 + $0x268] sm:$0xf]
  %v2164 = vld [vmem:[%s13 + $0x26c] sm:$0xf]
  %v2165 = vld [vmem:[%s13 + $0x270] sm:$0xf]
  %v2166 = vld [vmem:[%s13 + $0x274] sm:$0xf]
  %v2167 = vld [vmem:[%s13 + $0x278] sm:$0xf]
  %v2168 = vld [vmem:[%s13 + $0x27c] sm:$0xf]
  %v2169 = vld [vmem:[%s13 + $0x280] sm:$0xf]
  %v2170 = vld [vmem:[%s13 + $0x284] sm:$0xf]
  %v2171 = vld [vmem:[%s13 + $0x288] sm:$0xf]
  %v2172 = vld [vmem:[%s13 + $0x28c] sm:$0xf]
  %v2173 = vld [vmem:[%s13 + $0x290] sm:$0xf]
  %v2174 = vld [vmem:[%s13 + $0x294] sm:$0xf]
  %v2175 = vld [vmem:[%s13 + $0x298] sm:$0xf]
  %v2176 = vld [vmem:[%s13 + $0x29c] sm:$0xf]
  %v2177 = vld [vmem:[%s13 + $0x2a0] sm:$0xf]
  %v2178 = vld [vmem:[%s13 + $0x2a4] sm:$0xf]
  %v2179 = vld [vmem:[%s13 + $0x2a8] sm:$0xf]
  %v2180 = vld [vmem:[%s13 + $0x2ac] sm:$0xf]
  %v2181 = vld [vmem:[%s13 + $0x2b0] sm:$0xf]
  %v2182 = vld [vmem:[%s13 + $0x2b4] sm:$0xf]
  %v2183 = vld [vmem:[%s13 + $0x2b8] sm:$0xf]
  %v2184 = vld [vmem:[%s13 + $0x2bc] sm:$0xf]
  %v2185 = vld [vmem:[%s13 + $0x2c0] sm:$0xf]
  %v2186 = vld [vmem:[%s13 + $0x2c4] sm:$0xf]
  %v2187 = vld [vmem:[%s13 + $0x2c8] sm:$0xf]
  %v2188 = vld [vmem:[%s13 + $0x2cc] sm:$0xf]
  %v2189 = vld [vmem:[%s13 + $0x2d0] sm:$0xf]
  %v2190 = vld [vmem:[%s13 + $0x2d4] sm:$0xf]
  %v2191 = vld [vmem:[%s13 + $0x2d8] sm:$0xf]
  %v2192 = vld [vmem:[%s13 + $0x2dc] sm:$0xf]
  %v2193 = vld [vmem:[%s13 + $0x2e0] sm:$0xf]
  %v2194 = vld [vmem:[%s13 + $0x2e4] sm:$0xf]
  %v2195 = vld [vmem:[%s13 + $0x2e8] sm:$0xf]
  %v2196 = vld [vmem:[%s13 + $0x2ec] sm:$0xf]
  %v2197 = vld [vmem:[%s13 + $0x2f0] sm:$0xf]
  %v2198 = vld [vmem:[%s13 + $0x2f4] sm:$0xf]
  %v2199 = vld [vmem:[%s13 + $0x2f8] sm:$0xf]
  %v2200 = vld [vmem:[%s13 + $0x2fc] sm:$0xf]
  %v2201 = vld [vmem:[%s13 + $0x300] sm:$0xf]
  %v2202 = vld [vmem:[%s13 + $0x304] sm:$0xf]
  %v2203 = vld [vmem:[%s13 + $0x308] sm:$0xf]
  %v2204 = vld [vmem:[%s13 + $0x30c] sm:$0xf]
  %v2205 = vld [vmem:[%s13 + $0x310] sm:$0xf]
  %v2206 = vld [vmem:[%s13 + $0x314] sm:$0xf]
  %v2207 = vld [vmem:[%s13 + $0x318] sm:$0xf]
  %v2208 = vld [vmem:[%s13 + $0x31c] sm:$0xf]
  %v2209 = vld [vmem:[%s13 + $0x320] sm:$0xf]
  %v2210 = vld [vmem:[%s13 + $0x324] sm:$0xf]
  %v2211 = vld [vmem:[%s13 + $0x328] sm:$0xf]
  %v2212 = vld [vmem:[%s13 + $0x32c] sm:$0xf]
  %v2213 = vld [vmem:[%s13 + $0x330] sm:$0xf]
  %v2214 = vld [vmem:[%s13 + $0x334] sm:$0xf]
  %v2215 = vld [vmem:[%s13 + $0x338] sm:$0xf]
  %v2216 = vld [vmem:[%s13 + $0x33c] sm:$0xf]
  %v2217 = vld [vmem:[%s13 + $0x340] sm:$0xf]
  %v2218 = vld [vmem:[%s13 + $0x344] sm:$0xf]
  %v2219 = vld [vmem:[%s13 + $0x348] sm:$0xf]
  %v2220 = vld [vmem:[%s13 + $0x34c] sm:$0xf]
  %v2221 = vld [vmem:[%s13 + $0x350] sm:$0xf]
  %v2222 = vld [vmem:[%s13 + $0x354] sm:$0xf]
  %v2223 = vld [vmem:[%s13 + $0x358] sm:$0xf]
  %v2224 = vld [vmem:[%s13 + $0x35c] sm:$0xf]
  %v2225 = vld [vmem:[%s13 + $0x360] sm:$0xf]
  %v2226 = vld [vmem:[%s13 + $0x364] sm:$0xf]
  %v2227 = vld [vmem:[%s13 + $0x368] sm:$0xf]
  %v2228 = vld [vmem:[%s13 + $0x36c] sm:$0xf]
  %v2229 = vld [vmem:[%s13 + $0x370] sm:$0xf]
  %v2230 = vld [vmem:[%s13 + $0x374] sm:$0xf]
  %v2231 = vld [vmem:[%s13 + $0x378] sm:$0xf]
  %v2232 = vld [vmem:[%s13 + $0x37c] sm:$0xf]
  %v2233 = vld [vmem:[%s13 + $0x380] sm:$0xf]
  %v2234 = vld [vmem:[%s13 + $0x384] sm:$0xf]
  %v2235 = vld [vmem:[%s13 + $0x388] sm:$0xf]
  %v2236 = vld [vmem:[%s13 + $0x38c] sm:$0xf]
  %v2237 = vld [vmem:[%s13 + $0x390] sm:$0xf]
  %v2238 = vld [vmem:[%s13 + $0x394] sm:$0xf]
  %v2239 = vld [vmem:[%s13 + $0x398] sm:$0xf]
  %v2240 = vld [vmem:[%s13 + $0x39c] sm:$0xf]
  %v2241 = vld [vmem:[%s13 + $0x3a0] sm:$0xf]
  %v2242 = vld [vmem:[%s13 + $0x3a4] sm:$0xf]
  %v2243 = vld [vmem:[%s13 + $0x3a8] sm:$0xf]
  %v2244 = vld [vmem:[%s13 + $0x3ac] sm:$0xf]
  %v2245 = vld [vmem:[%s13 + $0x3b0] sm:$0xf]
  %v2246 = vld [vmem:[%s13 + $0x3b4] sm:$0xf]
  %v2247 = vld [vmem:[%s13 + $0x3b8] sm:$0xf]
  %v2248 = vld [vmem:[%s13 + $0x3bc] sm:$0xf]
  %v2249 = vld [vmem:[%s13 + $0x3c0] sm:$0xf]
  %v2250 = vld [vmem:[%s13 + $0x3c4] sm:$0xf]
  %v2251 = vld [vmem:[%s13 + $0x3c8] sm:$0xf]
  %v2252 = vld [vmem:[%s13 + $0x3cc] sm:$0xf]
  %v2253 = vld [vmem:[%s13 + $0x3d0] sm:$0xf]
  %v2254 = vld [vmem:[%s13 + $0x3d4] sm:$0xf]
  %v2255 = vld [vmem:[%s13 + $0x3d8] sm:$0xf]
  %v2256 = vld [vmem:[%s13 + $0x3dc] sm:$0xf]
  %v2257 = vld [vmem:[%s13 + $0x3e0] sm:$0xf]
  %v2258 = vld [vmem:[%s13 + $0x3e4] sm:$0xf]
  %v2259 = vld [vmem:[%s13 + $0x3e8] sm:$0xf]
  %v2260 = vld [vmem:[%s13 + $0x3ec] sm:$0xf]
  %v2261 = vld [vmem:[%s13 + $0x3f0] sm:$0xf]
  %v2262 = vld [vmem:[%s13 + $0x3f4] sm:$0xf]
  %v2263 = vld [vmem:[%s13 + $0x3f8] sm:$0xf]
  %v2264 = vld [vmem:[%s13 + $0x3fc] sm:$0xf]
  %v2265 = vld [vmem:[%s14] sm:$0x1]
  %v2267 = vlaneseq
  %v2268 = vshrl.u32 %v2267, 7
  %v2269 = vsub.s32 0, %v2268
  %v2270 = vrot.slane %v2265, %v2269
  %v2528 = vunpack.c.l.b16 %v2009
  %v2529 = vunpack.c.l.b16 %v2010
  %v2530 = vunpack.c.l.b16 %v2011
  %v2531 = vunpack.c.l.b16 %v2012
  %v2532 = vunpack.c.l.b16 %v2013
  %v2533 = vunpack.c.l.b16 %v2014
  %v2534 = vunpack.c.l.b16 %v2015
  %v2535 = vunpack.c.l.b16 %v2016
  %v2536 = vunpack.c.l.b16 %v2017
  %v2537 = vunpack.c.l.b16 %v2018
  %v2538 = vunpack.c.l.b16 %v2019
  %v2539 = vunpack.c.l.b16 %v2020
  %v2540 = vunpack.c.l.b16 %v2021
  %v2541 = vunpack.c.l.b16 %v2022
  %v2542 = vunpack.c.l.b16 %v2023
  %v2543 = vunpack.c.l.b16 %v2024
  %v2544 = vunpack.c.l.b16 %v2025
  %v2545 = vunpack.c.l.b16 %v2026
  %v2546 = vunpack.c.l.b16 %v2027
  %v2547 = vunpack.c.l.b16 %v2028
  %v2548 = vunpack.c.l.b16 %v2029
  %v2549 = vunpack.c.l.b16 %v2030
  %v2550 = vunpack.c.l.b16 %v2031
  %v2551 = vunpack.c.l.b16 %v2032
  %v2552 = vunpack.c.l.b16 %v2033
  %v2553 = vunpack.c.l.b16 %v2034
  %v2554 = vunpack.c.l.b16 %v2035
  %v2555 = vunpack.c.l.b16 %v2036
  %v2556 = vunpack.c.l.b16 %v2037
  %v2557 = vunpack.c.l.b16 %v2038
  %v2558 = vunpack.c.l.b16 %v2039
  %v2559 = vunpack.c.l.b16 %v2040
  %v2560 = vunpack.c.l.b16 %v2041
  %v2561 = vunpack.c.l.b16 %v2042
  %v2562 = vunpack.c.l.b16 %v2043
  %v2563 = vunpack.c.l.b16 %v2044
  %v2564 = vunpack.c.l.b16 %v2045
  %v2565 = vunpack.c.l.b16 %v2046
  %v2566 = vunpack.c.l.b16 %v2047
  %v2567 = vunpack.c.l.b16 %v2048
  %v2568 = vunpack.c.l.b16 %v2049
  %v2569 = vunpack.c.l.b16 %v2050
  %v2570 = vunpack.c.l.b16 %v2051
  %v2571 = vunpack.c.l.b16 %v2052
  %v2572 = vunpack.c.l.b16 %v2053
  %v2573 = vunpack.c.l.b16 %v2054
  %v2574 = vunpack.c.l.b16 %v2055
  %v2575 = vunpack.c.l.b16 %v2056
  %v2576 = vunpack.c.l.b16 %v2057
  %v2577 = vunpack.c.l.b16 %v2058
  %v2578 = vunpack.c.l.b16 %v2059
  %v2579 = vunpack.c.l.b16 %v2060
  %v2580 = vunpack.c.l.b16 %v2061
  %v2581 = vunpack.c.l.b16 %v2062
  %v2582 = vunpack.c.l.b16 %v2063
  %v2583 = vunpack.c.l.b16 %v2064
  %v2584 = vunpack.c.l.b16 %v2065
  %v2585 = vunpack.c.l.b16 %v2066
  %v2586 = vunpack.c.l.b16 %v2067
  %v2587 = vunpack.c.l.b16 %v2068
  %v2588 = vunpack.c.l.b16 %v2069
  %v2589 = vunpack.c.l.b16 %v2070
  %v2590 = vunpack.c.l.b16 %v2071
  %v2591 = vunpack.c.l.b16 %v2072
  %v2592 = vunpack.c.l.b16 %v2073
  %v2593 = vunpack.c.l.b16 %v2074
  %v2594 = vunpack.c.l.b16 %v2075
  %v2595 = vunpack.c.l.b16 %v2076
  %v2596 = vunpack.c.l.b16 %v2077
  %v2597 = vunpack.c.l.b16 %v2078
  %v2598 = vunpack.c.l.b16 %v2079
  %v2599 = vunpack.c.l.b16 %v2080
  %v2600 = vunpack.c.l.b16 %v2081
  %v2601 = vunpack.c.l.b16 %v2082
  %v2602 = vunpack.c.l.b16 %v2083
  %v2603 = vunpack.c.l.b16 %v2084
  %v2604 = vunpack.c.l.b16 %v2085
  %v2605 = vunpack.c.l.b16 %v2086
  %v2606 = vunpack.c.l.b16 %v2087
  %v2607 = vunpack.c.l.b16 %v2088
  %v2608 = vunpack.c.l.b16 %v2089
  %v2609 = vunpack.c.l.b16 %v2090
  %v2610 = vunpack.c.l.b16 %v2091
  %v2611 = vunpack.c.l.b16 %v2092
  %v2612 = vunpack.c.l.b16 %v2093
  %v2613 = vunpack.c.l.b16 %v2094
  %v2614 = vunpack.c.l.b16 %v2095
  %v2615 = vunpack.c.l.b16 %v2096
  %v2616 = vunpack.c.l.b16 %v2097
  %v2617 = vunpack.c.l.b16 %v2098
  %v2618 = vunpack.c.l.b16 %v2099
  %v2619 = vunpack.c.l.b16 %v2100
  %v2620 = vunpack.c.l.b16 %v2101
  %v2621 = vunpack.c.l.b16 %v2102
  %v2622 = vunpack.c.l.b16 %v2103
  %v2623 = vunpack.c.l.b16 %v2104
  %v2624 = vunpack.c.l.b16 %v2105
  %v2625 = vunpack.c.l.b16 %v2106
  %v2626 = vunpack.c.l.b16 %v2107
  %v2627 = vunpack.c.l.b16 %v2108
  %v2628 = vunpack.c.l.b16 %v2109
  %v2629 = vunpack.c.l.b16 %v2110
  %v2630 = vunpack.c.l.b16 %v2111
  %v2631 = vunpack.c.l.b16 %v2112
  %v2632 = vunpack.c.l.b16 %v2113
  %v2633 = vunpack.c.l.b16 %v2114
  %v2634 = vunpack.c.l.b16 %v2115
  %v2635 = vunpack.c.l.b16 %v2116
  %v2636 = vunpack.c.l.b16 %v2117
  %v2637 = vunpack.c.l.b16 %v2118
  %v2638 = vunpack.c.l.b16 %v2119
  %v2639 = vunpack.c.l.b16 %v2120
  %v2640 = vunpack.c.l.b16 %v2121
  %v2641 = vunpack.c.l.b16 %v2122
  %v2642 = vunpack.c.l.b16 %v2123
  %v2643 = vunpack.c.l.b16 %v2124
  %v2644 = vunpack.c.l.b16 %v2125
  %v2645 = vunpack.c.l.b16 %v2126
  %v2646 = vunpack.c.l.b16 %v2127
  %v2647 = vunpack.c.l.b16 %v2128
  %v2648 = vunpack.c.l.b16 %v2129
  %v2649 = vunpack.c.l.b16 %v2130
  %v2650 = vunpack.c.l.b16 %v2131
  %v2651 = vunpack.c.l.b16 %v2132
  %v2652 = vunpack.c.l.b16 %v2133
  %v2653 = vunpack.c.l.b16 %v2134
  %v2654 = vunpack.c.l.b16 %v2135
  %v2655 = vunpack.c.l.b16 %v2136
  %v2656 = vunpack.c.l.b16 %v2137
  %v2657 = vunpack.c.l.b16 %v2138
  %v2658 = vunpack.c.l.b16 %v2139
  %v2659 = vunpack.c.l.b16 %v2140
  %v2660 = vunpack.c.l.b16 %v2141
  %v2661 = vunpack.c.l.b16 %v2142
  %v2662 = vunpack.c.l.b16 %v2143
  %v2663 = vunpack.c.l.b16 %v2144
  %v2664 = vunpack.c.l.b16 %v2145
  %v2665 = vunpack.c.l.b16 %v2146
  %v2666 = vunpack.c.l.b16 %v2147
  %v2667 = vunpack.c.l.b16 %v2148
  %v2668 = vunpack.c.l.b16 %v2149
  %v2669 = vunpack.c.l.b16 %v2150
  %v2670 = vunpack.c.l.b16 %v2151
  %v2671 = vunpack.c.l.b16 %v2152
  %v2672 = vunpack.c.l.b16 %v2153
  %v2673 = vunpack.c.l.b16 %v2154
  %v2674 = vunpack.c.l.b16 %v2155
  %v2675 = vunpack.c.l.b16 %v2156
  %v2676 = vunpack.c.l.b16 %v2157
  %v2677 = vunpack.c.l.b16 %v2158
  %v2678 = vunpack.c.l.b16 %v2159
  %v2679 = vunpack.c.l.b16 %v2160
  %v2680 = vunpack.c.l.b16 %v2161
  %v2681 = vunpack.c.l.b16 %v2162
  %v2682 = vunpack.c.l.b16 %v2163
  %v2683 = vunpack.c.l.b16 %v2164
  %v2684 = vunpack.c.l.b16 %v2165
  %v2685 = vunpack.c.l.b16 %v2166
  %v2686 = vunpack.c.l.b16 %v2167
  %v2687 = vunpack.c.l.b16 %v2168
  %v2688 = vunpack.c.l.b16 %v2169
  %v2689 = vunpack.c.l.b16 %v2170
  %v2690 = vunpack.c.l.b16 %v2171
  %v2691 = vunpack.c.l.b16 %v2172
  %v2692 = vunpack.c.l.b16 %v2173
  %v2693 = vunpack.c.l.b16 %v2174
  %v2694 = vunpack.c.l.b16 %v2175
  %v2695 = vunpack.c.l.b16 %v2176
  %v2696 = vunpack.c.l.b16 %v2177
  %v2697 = vunpack.c.l.b16 %v2178
  %v2698 = vunpack.c.l.b16 %v2179
  %v2699 = vunpack.c.l.b16 %v2180
  %v2700 = vunpack.c.l.b16 %v2181
  %v2701 = vunpack.c.l.b16 %v2182
  %v2702 = vunpack.c.l.b16 %v2183
  %v2703 = vunpack.c.l.b16 %v2184
  %v2704 = vunpack.c.l.b16 %v2185
  %v2705 = vunpack.c.l.b16 %v2186
  %v2706 = vunpack.c.l.b16 %v2187
  %v2707 = vunpack.c.l.b16 %v2188
  %v2708 = vunpack.c.l.b16 %v2189
  %v2709 = vunpack.c.l.b16 %v2190
  %v2710 = vunpack.c.l.b16 %v2191
  %v2711 = vunpack.c.l.b16 %v2192
  %v2712 = vunpack.c.l.b16 %v2193
  %v2713 = vunpack.c.l.b16 %v2194
  %v2714 = vunpack.c.l.b16 %v2195
  %v2715 = vunpack.c.l.b16 %v2196
  %v2716 = vunpack.c.l.b16 %v2197
  %v2717 = vunpack.c.l.b16 %v2198
  %v2718 = vunpack.c.l.b16 %v2199
  %v2719 = vunpack.c.l.b16 %v2200
  %v2720 = vunpack.c.l.b16 %v2201
  %v2721 = vunpack.c.l.b16 %v2202
  %v2722 = vunpack.c.l.b16 %v2203
  %v2723 = vunpack.c.l.b16 %v2204
  %v2724 = vunpack.c.l.b16 %v2205
  %v2725 = vunpack.c.l.b16 %v2206
  %v2726 = vunpack.c.l.b16 %v2207
  %v2727 = vunpack.c.l.b16 %v2208
  %v2728 = vunpack.c.l.b16 %v2209
  %v2729 = vunpack.c.l.b16 %v2210
  %v2730 = vunpack.c.l.b16 %v2211
  %v2731 = vunpack.c.l.b16 %v2212
  %v2732 = vunpack.c.l.b16 %v2213
  %v2733 = vunpack.c.l.b16 %v2214
  %v2734 = vunpack.c.l.b16 %v2215
  %v2735 = vunpack.c.l.b16 %v2216
  %v2736 = vunpack.c.l.b16 %v2217
  %v2737 = vunpack.c.l.b16 %v2218
  %v2738 = vunpack.c.l.b16 %v2219
  %v2739 = vunpack.c.l.b16 %v2220
  %v2740 = vunpack.c.l.b16 %v2221
  %v2741 = vunpack.c.l.b16 %v2222
  %v2742 = vunpack.c.l.b16 %v2223
  %v2743 = vunpack.c.l.b16 %v2224
  %v2744 = vunpack.c.l.b16 %v2225
  %v2745 = vunpack.c.l.b16 %v2226
  %v2746 = vunpack.c.l.b16 %v2227
  %v2747 = vunpack.c.l.b16 %v2228
  %v2748 = vunpack.c.l.b16 %v2229
  %v2749 = vunpack.c.l.b16 %v2230
  %v2750 = vunpack.c.l.b16 %v2231
  %v2751 = vunpack.c.l.b16 %v2232
  %v2752 = vunpack.c.l.b16 %v2233
  %v2753 = vunpack.c.l.b16 %v2234
  %v2754 = vunpack.c.l.b16 %v2235
  %v2755 = vunpack.c.l.b16 %v2236
  %v2756 = vunpack.c.l.b16 %v2237
  %v2757 = vunpack.c.l.b16 %v2238
  %v2758 = vunpack.c.l.b16 %v2239
  %v2759 = vunpack.c.l.b16 %v2240
  %v2760 = vunpack.c.l.b16 %v2241
  %v2761 = vunpack.c.l.b16 %v2242
  %v2762 = vunpack.c.l.b16 %v2243
  %v2763 = vunpack.c.l.b16 %v2244
  %v2764 = vunpack.c.l.b16 %v2245
  %v2765 = vunpack.c.l.b16 %v2246
  %v2766 = vunpack.c.l.b16 %v2247
  %v2767 = vunpack.c.l.b16 %v2248
  %v2768 = vunpack.c.l.b16 %v2249
  %v2769 = vunpack.c.l.b16 %v2250
  %v2770 = vunpack.c.l.b16 %v2251
  %v2771 = vunpack.c.l.b16 %v2252
  %v2772 = vunpack.c.l.b16 %v2253
  %v2773 = vunpack.c.l.b16 %v2254
  %v2774 = vunpack.c.l.b16 %v2255
  %v2775 = vunpack.c.l.b16 %v2256
  %v2776 = vunpack.c.l.b16 %v2257
  %v2777 = vunpack.c.l.b16 %v2258
  %v2778 = vunpack.c.l.b16 %v2259
  %v2779 = vunpack.c.l.b16 %v2260
  %v2780 = vunpack.c.l.b16 %v2261
  %v2781 = vunpack.c.l.b16 %v2262
  %v2782 = vunpack.c.l.b16 %v2263
  %v2783 = vunpack.c.l.b16 %v2264
  %v2784 = vpack.c.b16 %v2529, %v2528
  %v2785 = vpack.c.b16 %v2531, %v2530
  %v2786 = vpack.c.b16 %v2533, %v2532
  %v2787 = vpack.c.b16 %v2535, %v2534
  %v2788 = vpack.c.b16 %v2537, %v2536
  %v2789 = vpack.c.b16 %v2539, %v2538
  %v2790 = vpack.c.b16 %v2541, %v2540
  %v2791 = vpack.c.b16 %v2543, %v2542
  %v2792 = vpack.c.b16 %v2545, %v2544
  %v2793 = vpack.c.b16 %v2547, %v2546
  %v2794 = vpack.c.b16 %v2549, %v2548
  %v2795 = vpack.c.b16 %v2551, %v2550
  %v2796 = vpack.c.b16 %v2553, %v2552
  %v2797 = vpack.c.b16 %v2555, %v2554
  %v2798 = vpack.c.b16 %v2557, %v2556
  %v2799 = vpack.c.b16 %v2559, %v2558
  %v2800 = vpack.c.b16 %v2561, %v2560
  %v2801 = vpack.c.b16 %v2563, %v2562
  %v2802 = vpack.c.b16 %v2565, %v2564
  %v2803 = vpack.c.b16 %v2567, %v2566
  %v2804 = vpack.c.b16 %v2569, %v2568
  %v2805 = vpack.c.b16 %v2571, %v2570
  %v2806 = vpack.c.b16 %v2573, %v2572
  %v2807 = vpack.c.b16 %v2575, %v2574
  %v2808 = vpack.c.b16 %v2577, %v2576
  %v2809 = vpack.c.b16 %v2579, %v2578
  %v2810 = vpack.c.b16 %v2581, %v2580
  %v2811 = vpack.c.b16 %v2583, %v2582
  %v2812 = vpack.c.b16 %v2585, %v2584
  %v2813 = vpack.c.b16 %v2587, %v2586
  %v2814 = vpack.c.b16 %v2589, %v2588
  %v2815 = vpack.c.b16 %v2591, %v2590
  %v2816 = vpack.c.b16 %v2593, %v2592
  %v2817 = vpack.c.b16 %v2595, %v2594
  %v2818 = vpack.c.b16 %v2597, %v2596
  %v2819 = vpack.c.b16 %v2599, %v2598
  %v2820 = vpack.c.b16 %v2601, %v2600
  %v2821 = vpack.c.b16 %v2603, %v2602
  %v2822 = vpack.c.b16 %v2605, %v2604
  %v2823 = vpack.c.b16 %v2607, %v2606
  %v2824 = vpack.c.b16 %v2609, %v2608
  %v2825 = vpack.c.b16 %v2611, %v2610
  %v2826 = vpack.c.b16 %v2613, %v2612
  %v2827 = vpack.c.b16 %v2615, %v2614
  %v2828 = vpack.c.b16 %v2617, %v2616
  %v2829 = vpack.c.b16 %v2619, %v2618
  %v2830 = vpack.c.b16 %v2621, %v2620
  %v2831 = vpack.c.b16 %v2623, %v2622
  %v2832 = vpack.c.b16 %v2625, %v2624
  %v2833 = vpack.c.b16 %v2627, %v2626
  %v2834 = vpack.c.b16 %v2629, %v2628
  %v2835 = vpack.c.b16 %v2631, %v2630
  %v2836 = vpack.c.b16 %v2633, %v2632
  %v2837 = vpack.c.b16 %v2635, %v2634
  %v2838 = vpack.c.b16 %v2637, %v2636
  %v2839 = vpack.c.b16 %v2639, %v2638
  %v2840 = vpack.c.b16 %v2641, %v2640
  %v2841 = vpack.c.b16 %v2643, %v2642
  %v2842 = vpack.c.b16 %v2645, %v2644
  %v2843 = vpack.c.b16 %v2647, %v2646
  %v2844 = vpack.c.b16 %v2649, %v2648
  %v2845 = vpack.c.b16 %v2651, %v2650
  %v2846 = vpack.c.b16 %v2653, %v2652
  %v2847 = vpack.c.b16 %v2655, %v2654
  %v2848 = vpack.c.b16 %v2657, %v2656
  %v2849 = vpack.c.b16 %v2659, %v2658
  %v2850 = vpack.c.b16 %v2661, %v2660
  %v2851 = vpack.c.b16 %v2663, %v2662
  %v2852 = vpack.c.b16 %v2665, %v2664
  %v2853 = vpack.c.b16 %v2667, %v2666
  %v2854 = vpack.c.b16 %v2669, %v2668
  %v2855 = vpack.c.b16 %v2671, %v2670
  %v2856 = vpack.c.b16 %v2673, %v2672
  %v2857 = vpack.c.b16 %v2675, %v2674
  %v2858 = vpack.c.b16 %v2677, %v2676
  %v2859 = vpack.c.b16 %v2679, %v2678
  %v2860 = vpack.c.b16 %v2681, %v2680
  %v2861 = vpack.c.b16 %v2683, %v2682
  %v2862 = vpack.c.b16 %v2685, %v2684
  %v2863 = vpack.c.b16 %v2687, %v2686
  %v2864 = vpack.c.b16 %v2689, %v2688
  %v2865 = vpack.c.b16 %v2691, %v2690
  %v2866 = vpack.c.b16 %v2693, %v2692
  %v2867 = vpack.c.b16 %v2695, %v2694
  %v2868 = vpack.c.b16 %v2697, %v2696
  %v2869 = vpack.c.b16 %v2699, %v2698
  %v2870 = vpack.c.b16 %v2701, %v2700
  %v2871 = vpack.c.b16 %v2703, %v2702
  %v2872 = vpack.c.b16 %v2705, %v2704
  %v2873 = vpack.c.b16 %v2707, %v2706
  %v2874 = vpack.c.b16 %v2709, %v2708
  %v2875 = vpack.c.b16 %v2711, %v2710
  %v2876 = vpack.c.b16 %v2713, %v2712
  %v2877 = vpack.c.b16 %v2715, %v2714
  %v2878 = vpack.c.b16 %v2717, %v2716
  %v2879 = vpack.c.b16 %v2719, %v2718
  %v2880 = vpack.c.b16 %v2721, %v2720
  %v2881 = vpack.c.b16 %v2723, %v2722
  %v2882 = vpack.c.b16 %v2725, %v2724
  %v2883 = vpack.c.b16 %v2727, %v2726
  %v2884 = vpack.c.b16 %v2729, %v2728
  %v2885 = vpack.c.b16 %v2731, %v2730
  %v2886 = vpack.c.b16 %v2733, %v2732
  %v2887 = vpack.c.b16 %v2735, %v2734
  %v2888 = vpack.c.b16 %v2737, %v2736
  %v2889 = vpack.c.b16 %v2739, %v2738
  %v2890 = vpack.c.b16 %v2741, %v2740
  %v2891 = vpack.c.b16 %v2743, %v2742
  %v2892 = vpack.c.b16 %v2745, %v2744
  %v2893 = vpack.c.b16 %v2747, %v2746
  %v2894 = vpack.c.b16 %v2749, %v2748
  %v2895 = vpack.c.b16 %v2751, %v2750
  %v2896 = vpack.c.b16 %v2753, %v2752
  %v2897 = vpack.c.b16 %v2755, %v2754
  %v2898 = vpack.c.b16 %v2757, %v2756
  %v2899 = vpack.c.b16 %v2759, %v2758
  %v2900 = vpack.c.b16 %v2761, %v2760
  %v2901 = vpack.c.b16 %v2763, %v2762
  %v2902 = vpack.c.b16 %v2765, %v2764
  %v2903 = vpack.c.b16 %v2767, %v2766
  %v2904 = vpack.c.b16 %v2769, %v2768
  %v2905 = vpack.c.b16 %v2771, %v2770
  %v2906 = vpack.c.b16 %v2773, %v2772
  %v2907 = vpack.c.b16 %v2775, %v2774
  %v2908 = vpack.c.b16 %v2777, %v2776
  %v2909 = vpack.c.b16 %v2779, %v2778
  %v2910 = vpack.c.b16 %v2781, %v2780
  %v2911 = vpack.c.b16 %v2783, %v2782
  %3040 = vmatprep.subr.bf16.mxu0 0
  %3041 = vmatpush1.bf16.msra.mxu0 %v2784
  %3042 = vmatprep.subr.bf16.mxu0 0
  %3043 = vmatpush1.bf16.msra.mxu0 %v2785
  %3044 = vmatprep.subr.bf16.mxu0 0
  %3045 = vmatpush1.bf16.msra.mxu0 %v2786
  %3046 = vmatprep.subr.bf16.mxu0 0
  %3047 = vmatpush1.bf16.msra.mxu0 %v2787
  %3048 = vmatprep.subr.bf16.mxu0 0
  %3049 = vmatpush1.bf16.msra.mxu0 %v2788
  %3050 = vmatprep.subr.bf16.mxu0 0
  %3051 = vmatpush1.bf16.msra.mxu0 %v2789
  %3052 = vmatprep.subr.bf16.mxu0 0
  %3053 = vmatpush1.bf16.msra.mxu0 %v2790
  %3054 = vmatprep.subr.bf16.mxu0 0
  %3055 = vmatpush1.bf16.msra.mxu0 %v2791
  %3056 = vmatprep.subr.bf16.mxu0 0
  %3057 = vmatpush1.bf16.msra.mxu0 %v2792
  %3058 = vmatprep.subr.bf16.mxu0 0
  %3059 = vmatpush1.bf16.msra.mxu0 %v2793
  %3060 = vmatprep.subr.bf16.mxu0 0
  %3061 = vmatpush1.bf16.msra.mxu0 %v2794
  %3062 = vmatprep.subr.bf16.mxu0 0
  %3063 = vmatpush1.bf16.msra.mxu0 %v2795
  %3064 = vmatprep.subr.bf16.mxu0 0
  %3065 = vmatpush1.bf16.msra.mxu0 %v2796
  %3066 = vmatprep.subr.bf16.mxu0 0
  %3067 = vmatpush1.bf16.msra.mxu0 %v2797
  %3068 = vmatprep.subr.bf16.mxu0 0
  %3069 = vmatpush1.bf16.msra.mxu0 %v2798
  %3070 = vmatprep.subr.bf16.mxu0 0
  %3071 = vmatpush1.bf16.msra.mxu0 %v2799
  %3072 = vmatprep.mubr.bf16.mxu0 %v1978
  %3073 = vmatmul.mubr.bf16.gmra.mrb[0].mxu0 %v1977
  %v3074 = vpop.f32.mrb[0].mxu0
  %v3075 = vadd.f32 %v2270, %v3074
  %v3076 = vpop.f32.mrb[0].mxu0
  %v3077 = vpop.f32.mrb[0].mxu0
  %v3078 = vadd.f32 %v2270, %v3077
  %v3079 = vpop.f32.mrb[0].mxu0
  %3080 = vmatprep.mubr.bf16.mxu0 %v1994
  %3081 = vmatmul.mubr.bf16.gmra.mrb[0].mxu0 %v1993
  %v3082 = vpop.f32.mrb[0].mxu0
  %v3083 = vadd.f32 %v2270, %v3082
  %v3084 = vpop.f32.mrb[0].mxu0
  %v3085 = vpop.f32.mrb[0].mxu0
  %v3086 = vadd.f32 %v2270, %v3085
  %v3087 = vpop.f32.mrb[0].mxu0
  %3088 = vdwg.mxu0
  %3089 = vmatprep.subr.bf16.mxu0 0
  %3090 = vmatpush1.bf16.msra.mxu0 %v2800
  %3091 = vmatprep.subr.bf16.mxu0 0
  %3092 = vmatpush1.bf16.msra.mxu0 %v2801
  %3093 = vmatprep.subr.bf16.mxu0 0
  %3094 = vmatpush1.bf16.msra.mxu0 %v2802
  %3095 = vmatprep.subr.bf16.mxu0 0
  %3096 = vmatpush1.bf16.msra.mxu0 %v2803
  %3097 = vmatprep.subr.bf16.mxu0 0
  %3098 = vmatpush1.bf16.msra.mxu0 %v2804
  %3099 = vmatprep.subr.bf16.mxu0 0
  %3100 = vmatpush1.bf16.msra.mxu0 %v2805
  %3101 = vmatprep.subr.bf16.mxu0 0
  %3102 = vmatpush1.bf16.msra.mxu0 %v2806
  %3103 = vmatprep.subr.bf16.mxu0 0
  %3104 = vmatpush1.bf16.msra.mxu0 %v2807
  %3105 = vmatprep.subr.bf16.mxu0 0
  %3106 = vmatpush1.bf16.msra.mxu0 %v2808
  %3107 = vmatprep.subr.bf16.mxu0 0
  %3108 = vmatpush1.bf16.msra.mxu0 %v2809
  %3109 = vmatprep.subr.bf16.mxu0 0
  %3110 = vmatpush1.bf16.msra.mxu0 %v2810
  %3111 = vmatprep.subr.bf16.mxu0 0
  %3112 = vmatpush1.bf16.msra.mxu0 %v2811
  %3113 = vmatprep.subr.bf16.mxu0 0
  %3114 = vmatpush1.bf16.msra.mxu0 %v2812
  %3115 = vmatprep.subr.bf16.mxu0 0
  %3116 = vmatpush1.bf16.msra.mxu0 %v2813
  %3117 = vmatprep.subr.bf16.mxu0 0
  %3118 = vmatpush1.bf16.msra.mxu0 %v2814
  %3119 = vmatprep.subr.bf16.mxu0 0
  %3120 = vmatpush1.bf16.msra.mxu0 %v2815
  %3121 = vmatprep.mubr.bf16.mxu0 %v1980
  %3122 = vmatmul.mubr.bf16.gmra.mrb[0].mxu0 %v1979
  %v3123 = vpop.f32.mrb[0].mxu0
  %v3124 = vadd.f32 %v3075, %v3123
  %v3125 = vpop.f32.mrb[0].mxu0
  %v3126 = vpop.f32.mrb[0].mxu0
  %v3127 = vadd.f32 %v3078, %v3126
  %v3128 = vpop.f32.mrb[0].mxu0
  %3129 = vmatprep.mubr.bf16.mxu0 %v1996
  %3130 = vmatmul.mubr.bf16.gmra.mrb[0].mxu0 %v1995
  %v3131 = vpop.f32.mrb[0].mxu0
  %v3132 = vadd.f32 %v3083, %v3131
  %v3133 = vpop.f32.mrb[0].mxu0
  %v3134 = vpop.f32.mrb[0].mxu0
  %v3135 = vadd.f32 %v3086, %v3134
  %v3136 = vpop.f32.mrb[0].mxu0
  %3137 = vdwg.mxu0
  %3138 = vmatprep.subr.bf16.mxu0 0
  %3139 = vmatpush1.bf16.msra.mxu0 %v2816
  %3140 = vmatprep.subr.bf16.mxu0 0
  %3141 = vmatpush1.bf16.msra.mxu0 %v2817
  %3142 = vmatprep.subr.bf16.mxu0 0
  %3143 = vmatpush1.bf16.msra.mxu0 %v2818
  %3144 = vmatprep.subr.bf16.mxu0 0
  %3145 = vmatpush1.bf16.msra.mxu0 %v2819
  %3146 = vmatprep.subr.bf16.mxu0 0
  %3147 = vmatpush1.bf16.msra.mxu0 %v2820
  %3148 = vmatprep.subr.bf16.mxu0 0
  %3149 = vmatpush1.bf16.msra.mxu0 %v2821
  %3150 = vmatprep.subr.bf16.mxu0 0
  %3151 = vmatpush1.bf16.msra.mxu0 %v2822
  %3152 = vmatprep.subr.bf16.mxu0 0
  %3153 = vmatpush1.bf16.msra.mxu0 %v2823
  %3154 = vmatprep.subr.bf16.mxu0 0
  %3155 = vmatpush1.bf16.msra.mxu0 %v2824
  %3156 = vmatprep.subr.bf16.mxu0 0
  %3157 = vmatpush1.bf16.msra.mxu0 %v2825
  %3158 = vmatprep.subr.bf16.mxu0 0
  %3159 = vmatpush1.bf16.msra.mxu0 %v2826
  %3160 = vmatprep.subr.bf16.mxu0 0
  %3161 = vmatpush1.bf16.msra.mxu0 %v2827
  %3162 = vmatprep.subr.bf16.mxu0 0
  %3163 = vmatpush1.bf16.msra.mxu0 %v2828
  %3164 = vmatprep.subr.bf16.mxu0 0
  %3165 = vmatpush1.bf16.msra.mxu0 %v2829
  %3166 = vmatprep.subr.bf16.mxu0 0
  %3167 = vmatpush1.bf16.msra.mxu0 %v2830
  %3168 = vmatprep.subr.bf16.mxu0 0
  %3169 = vmatpush1.bf16.msra.mxu0 %v2831
  %3170 = vmatprep.mubr.bf16.mxu0 %v1982
  %3171 = vmatmul.mubr.bf16.gmra.mrb[0].mxu0 %v1981
  %v3172 = vpop.f32.mrb[0].mxu0
  %v3173 = vadd.f32 %v3124, %v3172
  %v3174 = vpop.f32.mrb[0].mxu0
  %v3175 = vpop.f32.mrb[0].mxu0
  %v3176 = vadd.f32 %v3127, %v3175
  %v3177 = vpop.f32.mrb[0].mxu0
  %3178 = vmatprep.mubr.bf16.mxu0 %v1998
  %3179 = vmatmul.mubr.bf16.gmra.mrb[0].mxu0 %v1997
  %v3180 = vpop.f32.mrb[0].mxu0
  %v3181 = vadd.f32 %v3132, %v3180
  %v3182 = vpop.f32.mrb[0].mxu0
  %v3183 = vpop.f32.mrb[0].mxu0
  %v3184 = vadd.f32 %v3135, %v3183
  %v3185 = vpop.f32.mrb[0].mxu0
  %3186 = vdwg.mxu0
  %3187 = vmatprep.subr.bf16.mxu0 0
  %3188 = vmatpush1.bf16.msra.mxu0 %v2832
  %3189 = vmatprep.subr.bf16.mxu0 0
  %3190 = vmatpush1.bf16.msra.mxu0 %v2833
  %3191 = vmatprep.subr.bf16.mxu0 0
  %3192 = vmatpush1.bf16.msra.mxu0 %v2834
  %3193 = vmatprep.subr.bf16.mxu0 0
  %3194 = vmatpush1.bf16.msra.mxu0 %v2835
  %3195 = vmatprep.subr.bf16.mxu0 0
  %3196 = vmatpush1.bf16.msra.mxu0 %v2836
  %3197 = vmatprep.subr.bf16.mxu0 0
  %3198 = vmatpush1.bf16.msra.mxu0 %v2837
  %3199 = vmatprep.subr.bf16.mxu0 0
  %3200 = vmatpush1.bf16.msra.mxu0 %v2838
  %3201 = vmatprep.subr.bf16.mxu0 0
  %3202 = vmatpush1.bf16.msra.mxu0 %v2839
  %3203 = vmatprep.subr.bf16.mxu0 0
  %3204 = vmatpush1.bf16.msra.mxu0 %v2840
  %3205 = vmatprep.subr.bf16.mxu0 0
  %3206 = vmatpush1.bf16.msra.mxu0 %v2841
  %3207 = vmatprep.subr.bf16.mxu0 0
  %3208 = vmatpush1.bf16.msra.mxu0 %v2842
  %3209 = vmatprep.subr.bf16.mxu0 0
  %3210 = vmatpush1.bf16.msra.mxu0 %v2843
  %3211 = vmatprep.subr.bf16.mxu0 0
  %3212 = vmatpush1.bf16.msra.mxu0 %v2844
  %3213 = vmatprep.subr.bf16.mxu0 0
  %3214 = vmatpush1.bf16.msra.mxu0 %v2845
  %3215 = vmatprep.subr.bf16.mxu0 0
  %3216 = vmatpush1.bf16.msra.mxu0 %v2846
  %3217 = vmatprep.subr.bf16.mxu0 0
  %3218 = vmatpush1.bf16.msra.mxu0 %v2847
  %3219 = vmatprep.mubr.bf16.mxu0 %v1984
  %3220 = vmatmul.mubr.bf16.gmra.mrb[0].mxu0 %v1983
  %v3221 = vpop.f32.mrb[0].mxu0
  %v3222 = vadd.f32 %v3173, %v3221
  %v3223 = vpop.f32.mrb[0].mxu0
  %v3224 = vpop.f32.mrb[0].mxu0
  %v3225 = vadd.f32 %v3176, %v3224
  %v3226 = vpop.f32.mrb[0].mxu0
  %3227 = vmatprep.mubr.bf16.mxu0 %v2000
  %3228 = vmatmul.mubr.bf16.gmra.mrb[0].mxu0 %v1999
  %v3229 = vpop.f32.mrb[0].mxu0
  %v3230 = vadd.f32 %v3181, %v3229
  %v3231 = vpop.f32.mrb[0].mxu0
  %v3232 = vpop.f32.mrb[0].mxu0
  %v3233 = vadd.f32 %v3184, %v3232
  %v3234 = vpop.f32.mrb[0].mxu0
  %3235 = vdwg.mxu0
  %3236 = vmatprep.subr.bf16.mxu0 0
  %3237 = vmatpush1.bf16.msra.mxu0 %v2848
  %3238 = vmatprep.subr.bf16.mxu0 0
  %3239 = vmatpush1.bf16.msra.mxu0 %v2849
  %3240 = vmatprep.subr.bf16.mxu0 0
  %3241 = vmatpush1.bf16.msra.mxu0 %v2850
  %3242 = vmatprep.subr.bf16.mxu0 0
  %3243 = vmatpush1.bf16.msra.mxu0 %v2851
  %3244 = vmatprep.subr.bf16.mxu0 0
  %3245 = vmatpush1.bf16.msra.mxu0 %v2852
  %3246 = vmatprep.subr.bf16.mxu0 0
  %3247 = vmatpush1.bf16.msra.mxu0 %v2853
  %3248 = vmatprep.subr.bf16.mxu0 0
  %3249 = vmatpush1.bf16.msra.mxu0 %v2854
  %3250 = vmatprep.subr.bf16.mxu0 0
  %3251 = vmatpush1.bf16.msra.mxu0 %v2855
  %3252 = vmatprep.subr.bf16.mxu0 0
  %3253 = vmatpush1.bf16.msra.mxu0 %v2856
  %3254 = vmatprep.subr.bf16.mxu0 0
  %3255 = vmatpush1.bf16.msra.mxu0 %v2857
  %3256 = vmatprep.subr.bf16.mxu0 0
  %3257 = vmatpush1.bf16.msra.mxu0 %v2858
  %3258 = vmatprep.subr.bf16.mxu0 0
  %3259 = vmatpush1.bf16.msra.mxu0 %v2859
  %3260 = vmatprep.subr.bf16.mxu0 0
  %3261 = vmatpush1.bf16.msra.mxu0 %v2860
  %3262 = vmatprep.subr.bf16.mxu0 0
  %3263 = vmatpush1.bf16.msra.mxu0 %v2861
  %3264 = vmatprep.subr.bf16.mxu0 0
  %3265 = vmatpush1.bf16.msra.mxu0 %v2862
  %3266 = vmatprep.subr.bf16.mxu0 0
  %3267 = vmatpush1.bf16.msra.mxu0 %v2863
  %3268 = vmatprep.mubr.bf16.mxu0 %v1986
  %3269 = vmatmul.mubr.bf16.gmra.mrb[0].mxu0 %v1985
  %v3270 = vpop.f32.mrb[0].mxu0
  %v3271 = vadd.f32 %v3222, %v3270
  %v3272 = vpop.f32.mrb[0].mxu0
  %v3273 = vpop.f32.mrb[0].mxu0
  %v3274 = vadd.f32 %v3225, %v3273
  %v3275 = vpop.f32.mrb[0].mxu0
  %3276 = vmatprep.mubr.bf16.mxu0 %v2002
  %3277 = vmatmul.mubr.bf16.gmra.mrb[0].mxu0 %v2001
  %v3278 = vpop.f32.mrb[0].mxu0
  %v3279 = vadd.f32 %v3230, %v3278
  %v3280 = vpop.f32.mrb[0].mxu0
  %v3281 = vpop.f32.mrb[0].mxu0
  %v3282 = vadd.f32 %v3233, %v3281
  %v3283 = vpop.f32.mrb[0].mxu0
  %3284 = vdwg.mxu0
  %3285 = vmatprep.subr.bf16.mxu0 0
  %3286 = vmatpush1.bf16.msra.mxu0 %v2864
  %3287 = vmatprep.subr.bf16.mxu0 0
  %3288 = vmatpush1.bf16.msra.mxu0 %v2865
  %3289 = vmatprep.subr.bf16.mxu0 0
  %3290 = vmatpush1.bf16.msra.mxu0 %v2866
  %3291 = vmatprep.subr.bf16.mxu0 0
  %3292 = vmatpush1.bf16.msra.mxu0 %v2867
  %3293 = vmatprep.subr.bf16.mxu0 0
  %3294 = vmatpush1.bf16.msra.mxu0 %v2868
  %3295 = vmatprep.subr.bf16.mxu0 0
  %3296 = vmatpush1.bf16.msra.mxu0 %v2869
  %3297 = vmatprep.subr.bf16.mxu0 0
  %3298 = vmatpush1.bf16.msra.mxu0 %v2870
  %3299 = vmatprep.subr.bf16.mxu0 0
  %3300 = vmatpush1.bf16.msra.mxu0 %v2871
  %3301 = vmatprep.subr.bf16.mxu0 0
  %3302 = vmatpush1.bf16.msra.mxu0 %v2872
  %3303 = vmatprep.subr.bf16.mxu0 0
  %3304 = vmatpush1.bf16.msra.mxu0 %v2873
  %3305 = vmatprep.subr.bf16.mxu0 0
  %3306 = vmatpush1.bf16.msra.mxu0 %v2874
  %3307 = vmatprep.subr.bf16.mxu0 0
  %3308 = vmatpush1.bf16.msra.mxu0 %v2875
  %3309 = vmatprep.subr.bf16.mxu0 0
  %3310 = vmatpush1.bf16.msra.mxu0 %v2876
  %3311 = vmatprep.subr.bf16.mxu0 0
  %3312 = vmatpush1.bf16.msra.mxu0 %v2877
  %3313 = vmatprep.subr.bf16.mxu0 0
  %3314 = vmatpush1.bf16.msra.mxu0 %v2878
  %3315 = vmatprep.subr.bf16.mxu0 0
  %3316 = vmatpush1.bf16.msra.mxu0 %v2879
  %3317 = vmatprep.mubr.bf16.mxu0 %v1988
  %3318 = vmatmul.mubr.bf16.gmra.mrb[0].mxu0 %v1987
  %v3319 = vpop.f32.mrb[0].mxu0
  %v3320 = vadd.f32 %v3271, %v3319
  %v3321 = vpop.f32.mrb[0].mxu0
  %v3322 = vpop.f32.mrb[0].mxu0
  %v3323 = vadd.f32 %v3274, %v3322
  %v3324 = vpop.f32.mrb[0].mxu0
  %3325 = vmatprep.mubr.bf16.mxu0 %v2004
  %3326 = vmatmul.mubr.bf16.gmra.mrb[0].mxu0 %v2003
  %v3327 = vpop.f32.mrb[0].mxu0
  %v3328 = vadd.f32 %v3279, %v3327
  %v3329 = vpop.f32.mrb[0].mxu0
  %v3330 = vpop.f32.mrb[0].mxu0
  %v3331 = vadd.f32 %v3282, %v3330
  %v3332 = vpop.f32.mrb[0].mxu0
  %3333 = vdwg.mxu0
  %3334 = vmatprep.subr.bf16.mxu0 0
  %3335 = vmatpush1.bf16.msra.mxu0 %v2880
  %3336 = vmatprep.subr.bf16.mxu0 0
  %3337 = vmatpush1.bf16.msra.mxu0 %v2881
  %3338 = vmatprep.subr.bf16.mxu0 0
  %3339 = vmatpush1.bf16.msra.mxu0 %v2882
  %3340 = vmatprep.subr.bf16.mxu0 0
  %3341 = vmatpush1.bf16.msra.mxu0 %v2883
  %3342 = vmatprep.subr.bf16.mxu0 0
  %3343 = vmatpush1.bf16.msra.mxu0 %v2884
  %3344 = vmatprep.subr.bf16.mxu0 0
  %3345 = vmatpush1.bf16.msra.mxu0 %v2885
  %3346 = vmatprep.subr.bf16.mxu0 0
  %3347 = vmatpush1.bf16.msra.mxu0 %v2886
  %3348 = vmatprep.subr.bf16.mxu0 0
  %3349 = vmatpush1.bf16.msra.mxu0 %v2887
  %3350 = vmatprep.subr.bf16.mxu0 0
  %3351 = vmatpush1.bf16.msra.mxu0 %v2888
  %3352 = vmatprep.subr.bf16.mxu0 0
  %3353 = vmatpush1.bf16.msra.mxu0 %v2889
  %3354 = vmatprep.subr.bf16.mxu0 0
  %3355 = vmatpush1.bf16.msra.mxu0 %v2890
  %3356 = vmatprep.subr.bf16.mxu0 0
  %3357 = vmatpush1.bf16.msra.mxu0 %v2891
  %3358 = vmatprep.subr.bf16.mxu0 0
  %3359 = vmatpush1.bf16.msra.mxu0 %v2892
  %3360 = vmatprep.subr.bf16.mxu0 0
  %3361 = vmatpush1.bf16.msra.mxu0 %v2893
  %3362 = vmatprep.subr.bf16.mxu0 0
  %3363 = vmatpush1.bf16.msra.mxu0 %v2894
  %3364 = vmatprep.subr.bf16.mxu0 0
  %3365 = vmatpush1.bf16.msra.mxu0 %v2895
  %3366 = vmatprep.mubr.bf16.mxu0 %v1990
  %3367 = vmatmul.mubr.bf16.gmra.mrb[0].mxu0 %v1989
  %v3368 = vpop.f32.mrb[0].mxu0
  %v3369 = vadd.f32 %v3320, %v3368
  %v3370 = vpop.f32.mrb[0].mxu0
  %v3371 = vpop.f32.mrb[0].mxu0
  %v3372 = vadd.f32 %v3323, %v3371
  %v3373 = vpop.f32.mrb[0].mxu0
  %3374 = vmatprep.mubr.bf16.mxu0 %v2006
  %3375 = vmatmul.mubr.bf16.gmra.mrb[0].mxu0 %v2005
  %v3376 = vpop.f32.mrb[0].mxu0
  %v3377 = vadd.f32 %v3328, %v3376
  %v3378 = vpop.f32.mrb[0].mxu0
  %v3379 = vpop.f32.mrb[0].mxu0
  %v3380 = vadd.f32 %v3331, %v3379
  %v3381 = vpop.f32.mrb[0].mxu0
  %3382 = vdwg.mxu0
  %3383 = vmatprep.subr.bf16.mxu0 0
  %3384 = vmatpush1.bf16.msra.mxu0 %v2896
  %3385 = vmatprep.subr.bf16.mxu0 0
  %3386 = vmatpush1.bf16.msra.mxu0 %v2897
  %3387 = vmatprep.subr.bf16.mxu0 0
  %3388 = vmatpush1.bf16.msra.mxu0 %v2898
  %3389 = vmatprep.subr.bf16.mxu0 0
  %3390 = vmatpush1.bf16.msra.mxu0 %v2899
  %3391 = vmatprep.subr.bf16.mxu0 0
  %3392 = vmatpush1.bf16.msra.mxu0 %v2900
  %3393 = vmatprep.subr.bf16.mxu0 0
  %3394 = vmatpush1.bf16.msra.mxu0 %v2901
  %3395 = vmatprep.subr.bf16.mxu0 0
  %3396 = vmatpush1.bf16.msra.mxu0 %v2902
  %3397 = vmatprep.subr.bf16.mxu0 0
  %3398 = vmatpush1.bf16.msra.mxu0 %v2903
  %3399 = vmatprep.subr.bf16.mxu0 0
  %3400 = vmatpush1.bf16.msra.mxu0 %v2904
  %3401 = vmatprep.subr.bf16.mxu0 0
  %3402 = vmatpush1.bf16.msra.mxu0 %v2905
  %3403 = vmatprep.subr.bf16.mxu0 0
  %3404 = vmatpush1.bf16.msra.mxu0 %v2906
  %3405 = vmatprep.subr.bf16.mxu0 0
  %3406 = vmatpush1.bf16.msra.mxu0 %v2907
  %3407 = vmatprep.subr.bf16.mxu0 0
  %3408 = vmatpush1.bf16.msra.mxu0 %v2908
  %3409 = vmatprep.subr.bf16.mxu0 0
  %3410 = vmatpush1.bf16.msra.mxu0 %v2909
  %3411 = vmatprep.subr.bf16.mxu0 0
  %3412 = vmatpush1.bf16.msra.mxu0 %v2910
  %3413 = vmatprep.subr.bf16.mxu0 0
  %3414 = vmatpush1.bf16.msra.mxu0 %v2911
  %3415 = vmatprep.mubr.bf16.mxu0 %v1992
  %3416 = vmatmul.mubr.bf16.gmra.mrb[0].mxu0 %v1991
  %v3417 = vpop.f32.mrb[0].mxu0
  %v3418 = vadd.f32 %v3369, %v3417
  %v3419 = vpop.f32.mrb[0].mxu0
  %v3420 = vpop.f32.mrb[0].mxu0
  %v3421 = vadd.f32 %v3372, %v3420
  %v3422 = vpop.f32.mrb[0].mxu0
  %3423 = vmatprep.mubr.bf16.mxu0 %v2008
  %3424 = vmatmul.mubr.bf16.gmra.mrb[0].mxu0 %v2007
  %v3425 = vpop.f32.mrb[0].mxu0
  %v3426 = vadd.f32 %v3377, %v3425
  %v3427 = vpop.f32.mrb[0].mxu0
  %v3428 = vpop.f32.mrb[0].mxu0
  %v3429 = vadd.f32 %v3380, %v3428
  %v3430 = vpop.f32.mrb[0].mxu0
  %3431 = vdwg.mxu0
  %v3432 = vadd.f32 %v1201, %v3418
  %v3433 = vadd.f32 %v1202, %v3421
  %v3434 = vadd.f32 %v1203, %v3426
  %v3435 = vadd.f32 %v1204, %v3429
  %v3436 = vld [vmem:[%s15] sm:$0x1]
  %v3437 = vld [vmem:[%s16] sm:$0x1]
  %v3438 = vsel %vm217, %v3432, 0.0
  %3439 = vadd.xlane.f32.xlu0 %v3438
  %v3440 = vpop.xlane.xlu0 %3439
  %v3441 = vsel %vm217, %v3433, 0.0
  %3442 = vadd.xlane.f32.xlu0 %v3441
  %v3443 = vpop.xlane.xlu0 %3442
  %v3444 = vsel %vm217, %v3434, 0.0
  %3445 = vadd.xlane.f32.xlu0 %v3444
  %v3446 = vpop.xlane.xlu0 %3445
  %v3447 = vsel %vm217, %v3435, 0.0
  %3448 = vadd.xlane.f32.xlu0 %v3447
  %v3449 = vpop.xlane.xlu0 %3448
  %v3450 = vmul.f32 %v3440, %v1144
  %v3451 = vmul.f32 %v3443, %v1144
  %v3452 = vmul.f32 %v3446, %v1144
  %v3453 = vmul.f32 %v3449, %v1144
  %v3454 = vsub.f32 %v3432, %v3450
  %v3455 = vsub.f32 %v3433, %v3451
  %v3456 = vsub.f32 %v3434, %v3452
  %v3457 = vsub.f32 %v3435, %v3453
  %v3458 = vmul.f32 %v3454, %v3454
  %v3459 = vmul.f32 %v3455, %v3455
  %v3460 = vmul.f32 %v3456, %v3456
  %v3461 = vmul.f32 %v3457, %v3457
  %v3462 = vsel %vm217, %v3458, 0.0
  %3463 = vadd.xlane.f32.xlu0 %v3462
  %v3464 = vpop.xlane.xlu0 %3463
  %v3465 = vsel %vm217, %v3459, 0.0
  %3466 = vadd.xlane.f32.xlu0 %v3465
  %v3467 = vpop.xlane.xlu0 %3466
  %v3468 = vsel %vm217, %v3460, 0.0
  %3469 = vadd.xlane.f32.xlu0 %v3468
  %v3470 = vpop.xlane.xlu0 %3469
  %v3471 = vsel %vm217, %v3461, 0.0
  %3472 = vadd.xlane.f32.xlu0 %v3471
  %v3473 = vpop.xlane.xlu0 %3472
  %v3474 = vmul.f32 %v3464, %v1144
  %v3475 = vmul.f32 %v3467, %v1144
  %v3476 = vmul.f32 %v3470, %v1144
  %v3477 = vmul.f32 %v3473, %v1144
  %v3478 = vadd.f32 %v3474, 1e-05
  %v3479 = vadd.f32 %v3475, 1e-05
  %v3480 = vadd.f32 %v3476, 1e-05
  %v3481 = vadd.f32 %v3477, 1e-05
  %v3482 = vrsqrt.pop %v3478
  %v3483 = vrsqrt.pop %v3479
  %v3484 = vrsqrt.pop %v3480
  %v3485 = vrsqrt.pop %v3481
  %v3486 = vmul.f32 %v3454, %v3482
  %v3487 = vmul.f32 %v3455, %v3483
  %v3488 = vmul.f32 %v3456, %v3484
  %v3489 = vmul.f32 %v3457, %v3485
  %v3491 = vlaneseq
  %v3492 = vshrl.u32 %v3491, 7
  %v3493 = vsub.s32 0, %v3492
  %v3494 = vrot.slane %v3436, %v3493
  %v3496 = vmul.f32 %v3486, %v3494
  %v3497 = vmul.f32 %v3487, %v3494
  %v3498 = vmul.f32 %v3488, %v3494
  %v3499 = vmul.f32 %v3489, %v3494
  %v3501 = vlaneseq
  %v3502 = vshrl.u32 %v3501, 7
  %v3503 = vsub.s32 0, %v3502
  %v3504 = vrot.slane %v3437, %v3503
  %v3506 = vadd.f32 %v3496, %v3504
  %v3507 = vadd.f32 %v3497, %v3504
  %v3508 = vadd.f32 %v3498, %v3504
  %v3509 = vadd.f32 %v3499, %v3504
  %3510 = vst.msk [vmem:[%s17] sm:$0xff] %vm217, %v3506
  %3511 = vst.msk [vmem:[%s17 + $0x8] sm:$0xff] %vm217, %v3507
  %3512 = vst.msk [vmem:[%s17 + $0x10] sm:$0xff] %vm217, %v3508
  %3513 = vst.msk [vmem:[%s17 + $0x18] sm:$0xff] %vm217, %v3509
  // Predicated region
  $region70: #{topic_transformer_forward.1} parent=0 // pred_check
    _
  $region71: #{topic_transformer_forward.1} parent=0 // pred_check_branch
    %3515 = sbr.rel (0) target = $region73
  $region72: #{topic_transformer_forward.1} parent=0 // pred_region
    _
  $region73: #{topic_transformer_forward.1} parent=0 // pred_fallthru
    _
  // Predicated region
  $region74: #{topic_transformer_forward.1} parent=0 // pred_check
    _
  $region75: #{topic_transformer_forward.1} parent=0 // pred_check_branch
    %3517 = sbr.rel (0) target = $region77
  $region76: #{topic_transformer_forward.1} parent=0 // pred_region
    _
  $region77: #{topic_transformer_forward.1} parent=0 // pred_fallthru
    _

</llo_original>
